<compile_context>
chip_gen: v7x
topology: tpu7x:2x2x1
jax: 0.10.0
libtpu: 0.0.40
codegen_flags: <defaults>
</compile_context>

<pallas_src>
import functools

import jax
import jax.numpy as jnp
from jax import lax
from jax.experimental import pallas as pl
from jax.experimental.pallas import tpu as pltpu


# ----------------------------------------------------------------------------
# Fused residual-tower kernel: one grid step == one conv+BN(+res)+ReLU layer.
# ----------------------------------------------------------------------------
def _tower_kernel(x_ref, w_ref, b_ref, g_ref, m_ref, o_ref, act_ref, res_ref, *, width):
    # x_ref  : (M, C)         flattened NHWC network input (resident, read at layer 0)
    # w_ref  : (1, 9, C, C)   this layer's 3x3 weights with BN scale folded in
    # b_ref  : (1, 1, C)      this layer's folded BN shift (bias)
    # g_ref  : (1, 1, 1)      1.0 if this layer adds the residual, else 0.0
    # m_ref  : (9, M, 1)      per-tap validity masks (implements zero padding)
    # o_ref  : (M, C)         final hidden state (resident, written at last layer)
    # act_ref: (M + 2*r0, C)  f32 activation carry (flat rows, zero halo rows)
    # res_ref: (M, C)         f32 residual carry
    l = pl.program_id(0)
    n_layers = pl.num_programs(0)
    mp, c = act_ref.shape
    m = o_ref.shape[0]
    r0 = (mp - m) // 2  # halo rows on each side (multiple of 8, >= width + 1)

    # Layer 0: stage the network input into the zero-haloed VMEM activation buffer.
    @pl.when(l == 0)
    def _():
        act_ref[...] = jnp.zeros_like(act_ref)
        res_ref[...] = jnp.zeros_like(res_ref)
        act_ref[r0:r0 + m, :] = x_ref[...].astype(jnp.float32)

    # Odd layers are conv1 of a residual block: remember the block input.
    @pl.when(l % 2 == 1)
    def _():
        res_ref[...] = act_ref[r0:r0 + m, :]

    # 3x3 conv (pad=1, stride=1) as 9 shifted, masked (M, C) x (C, C) matmuls.
    acc = jnp.zeros((m, c), jnp.float32)
    for t in range(9):
        dy, dx = t // 3, t % 3
        off = (dy - 1) * width + (dx - 1)          # flat row offset of this tap
        xs = act_ref[r0 + off:r0 + off + m, :] * m_ref[t]
        acc = acc + jnp.dot(xs, w_ref[0, t], preferred_element_type=jnp.float32)

    acc = acc + b_ref[0]                 # folded BatchNorm shift
    acc = acc + g_ref[0] * res_ref[...]  # residual add (gate is 0.0 / 1.0 per layer)
    y = jnp.maximum(acc, 0.0)            # ReLU

    # Carry the activation to the next layer (halo rows stay zero).
    act_ref[r0:r0 + m, :] = y

    @pl.when(l == n_layers - 1)
    def _():
        o_ref[...] = y.astype(o_ref.dtype)


def _make_tap_masks(n, h, w):
    """(9, M, 1) f32 masks: 1 where the 3x3 tap falls inside the image, else 0."""
    r = jnp.arange(n * h * w)
    i = (r // w) % h
    j = r % w
    masks = []
    for dy in range(3):
        for dx in range(3):
            ii = i + dy - 1
            jj = j + dx - 1
            masks.append(((ii >= 0) & (ii < h) & (jj >= 0) & (jj < w)).astype(jnp.float32))
    return jnp.stack(masks, axis=0)[:, :, None]


def dynamics_forward(x_nchw, packed):
    """Pallas forward: NCHW in -> NCHW out, entire tower in one pallas_call."""
    ws, bs, gs = packed                      # (L,9,C,C), (L,1,C), (L,1,1)
    n, c, h, w = x_nchw.shape
    n_layers = ws.shape[0]
    m = n * h * w
    r0 = ((w + 1 + 7) // 8) * 8              # halo rows, 8-aligned, >= w + 1

    x_flat = jnp.transpose(x_nchw, (0, 2, 3, 1)).reshape(m, c)
    masks = _make_tap_masks(n, h, w)

    kernel = functools.partial(_tower_kernel, width=w)
    # TODO(synk): if N*H*W grows large, tile the row dim (and split it across v7x's
    # two TensorCores); at this size everything fits in VMEM so a single block is best.
    out_flat = pl.pallas_call(
        kernel,
        out_shape=jax.ShapeDtypeStruct((m, c), x_nchw.dtype),
        grid_spec=pltpu.PrefetchScalarGridSpec(
            num_scalar_prefetch=0,
            grid=(n_layers,),
            in_specs=[
                pl.BlockSpec((m, c), lambda l: (0, 0)),              # x (resident)
                pl.BlockSpec((1, 9, c, c), lambda l: (l, 0, 0, 0)),  # per-layer weights
                pl.BlockSpec((1, 1, c), lambda l: (l, 0, 0)),        # per-layer BN shift
                pl.BlockSpec((1, 1, 1), lambda l: (l, 0, 0)),        # per-layer res gate
                pl.BlockSpec((9, m, 1), lambda l: (0, 0, 0)),        # tap masks (resident)
            ],
            out_specs=pl.BlockSpec((m, c), lambda l: (0, 0)),
            scratch_shapes=[
                pltpu.VMEM((m + 2 * r0, c), jnp.float32),            # activation carry
                pltpu.VMEM((m, c), jnp.float32),                     # residual carry
            ],
        ),
        compiler_params=pltpu.CompilerParams(
            dimension_semantics=("arbitrary",),  # layers are sequential (carry in scratch)
        ),
    )(x_flat, ws, bs, gs, masks)

    return jnp.transpose(out_flat.reshape(n, h, w, c), (0, 3, 1, 2))


# ----------------------------------------------------------------------------
# Parameter construction (deterministic, synthetic) + packing for the kernel
# ----------------------------------------------------------------------------
def _bn_params(key, c, eps=1e-5):
    k1, k2, k3, k4 = jax.random.split(key, 4)
    gamma = 1.0 + 0.1 * jax.random.normal(k1, (c,), jnp.float32)
    beta = 0.1 * jax.random.normal(k2, (c,), jnp.float32)
    running_mean = 0.1 * jax.random.normal(k3, (c,), jnp.float32)
    running_var = 1.0 + 0.1 * jnp.abs(jax.random.normal(k4, (c,), jnp.float32))
    scale = gamma / jnp.sqrt(running_var + eps)     # eval-mode BN folded to scale/shift
    shift = beta - running_mean * scale
    return scale, shift


def make_params(key, num_blocks, c):
    """Per-layer raw params [(torch-layout conv weight, bn scale, bn shift), ...].

    Layer order: stem, block0.conv1, block0.conv2, block1.conv1, block1.conv2, ...
    """
    n_layers = 1 + 2 * num_blocks
    keys = jax.random.split(key, 2 * n_layers)
    layers = []
    for i in range(n_layers):
        kw, kb = keys[2 * i], keys[2 * i + 1]
        w = jax.random.normal(kw, (c, c, 3, 3), jnp.float32) / jnp.sqrt(9.0 * c)
        scale, shift = _bn_params(kb, c)
        layers.append((w, scale, shift))
    return layers


def pack_params(layers):
    """Fold BN scale into weights and stack everything for the fused kernel."""
    ws, bs, gs = [], [], []
    for idx, (w, scale, shift) in enumerate(layers):
        c_out, c_in = w.shape[0], w.shape[1]
        # torch (Cout, Cin, kh, kw) * scale -> (kh*kw, Cin, Cout)
        wf = jnp.transpose(w * scale[:, None, None, None], (2, 3, 1, 0)).reshape(9, c_in, c_out)
        ws.append(wf)
        bs.append(shift.reshape(1, c_out))
        gs.append(1.0 if (idx >= 2 and idx % 2 == 0) else 0.0)  # conv2 of each block
    return (jnp.stack(ws, axis=0),
            jnp.stack(bs, axis=0),
            jnp.asarray(gs, jnp.float32).reshape(-1, 1, 1))


# ----------------------------------------------------------------------------
# Plain-JAX reference (uses the RAW, un-folded params — validates BN folding too)
# ----------------------------------------------------------------------------
def dynamics_forward_ref(x_nchw, layers):
    def conv_bn(x, w, scale, shift):
        y = lax.conv_general_dilated(
            x, w, window_strides=(1, 1), padding=((1, 1), (1, 1)),
            dimension_numbers=("NCHW", "OIHW", "NCHW"),
            precision=lax.Precision.HIGHEST)
        return y * scale[None, :, None, None] + shift[None, :, None, None]

    w0, s0, sh0 = layers[0]
    out = jnp.maximum(conv_bn(x_nchw, w0, s0, sh0), 0.0)
    for b in range((len(layers) - 1) // 2):
        w1, s1, sh1 = layers[1 + 2 * b]
        w2, s2, sh2 = layers[2 + 2 * b]
        h = jnp.maximum(conv_bn(out, w1, s1, sh1), 0.0)
        out = jnp.maximum(conv_bn(h, w2, s2, sh2) + out, 0.0)
    return out


if __name__ == "__main__":
    # Module defaults: num_channels=33 -> hidden state has 32 channels.
    NUM_BLOCKS = 16
    C = 32          # num_channels - 1
    N, H, W = 2, 8, 8

    key = jax.random.PRNGKey(0)
    kx, kp = jax.random.split(key)
    x = jax.random.normal(kx, (N, C, H, W), jnp.float32)   # NCHW input, like torch
    layers = make_params(kp, NUM_BLOCKS, C)
    packed = pack_params(layers)

    fwd = jax.jit(dynamics_forward)
    state = fwd(x, packed)
    jax.block_until_ready(state)
    assert state.shape == (N, C, H, W), state.shape

    ref = jax.jit(dynamics_forward_ref)(x, layers)
    jax.block_until_ready(ref)
    err = float(jnp.max(jnp.abs(state - ref)))
    assert err < 2e-3, f"max abs diff {err}"

    print("KERNEL_OK")
</pallas_src>

<mosaic_0001>
module attributes {stable_mosaic.version = 11 : i64} {
  func.func @_tower_kernel(%arg0: i32, %arg1: memref<128x32xf32, #tpu.memory_space<vmem>>, %arg2: memref<1x9x32x32xf32, #tpu.memory_space<vmem>>, %arg3: memref<1x1x32xf32, #tpu.memory_space<vmem>>, %arg4: memref<1x1x1xf32, #tpu.memory_space<vmem>>, %arg5: memref<9x128x1xf32, #tpu.memory_space<vmem>>, %arg6: memref<128x32xf32, #tpu.memory_space<vmem>>, %arg7: memref<160x32xf32, #tpu.memory_space<vmem>>, %arg8: memref<128x32xf32, #tpu.memory_space<vmem>>) attributes {dimension_semantics = [#tpu.dimension_semantics<arbitrary>], iteration_bounds = array<i64: 33>, scalar_prefetch = 0 : i64, scratch_operands = 2 : i64, tpu.core_type = #tpu.core_type<tc>, window_params = [{pipeline_mode = #tpu.pipeline_mode<synchronous>, transform_indices = @transform_0, window_bounds = array<i64: 128, 32>}, {transform_indices = @transform_1, window_bounds = array<i64: 1, 9, 32, 32>}, {transform_indices = @transform_2, window_bounds = array<i64: 1, 1, 32>}, {transform_indices = @transform_3, window_bounds = array<i64: 1, 1, 1>}, {pipeline_mode = #tpu.pipeline_mode<synchronous>, transform_indices = @transform_4, window_bounds = array<i64: 9, 128, 1>}, {pipeline_mode = #tpu.pipeline_mode<synchronous>, transform_indices = @transform_5, window_bounds = array<i64: 128, 32>}]} {
    %c0_i32 = arith.constant 0 : i32
    %0 = arith.cmpi eq, %arg0, %c0_i32 : i32
    %1 = arith.extui %0 : i1 to i32
    %c0_i32_0 = arith.constant 0 : i32
    %2 = arith.cmpi ne, %1, %c0_i32_0 : i32
    scf.if %2 {
      %cst_93 = arith.constant 0.000000e+00 : f32
      %114 = vector.broadcast %cst_93 : f32 to vector<160x32xf32>
      %c0_94 = arith.constant 0 : index
      %c0_95 = arith.constant 0 : index
      %115 = vector.load %arg7[%c0_94, %c0_95] : memref<160x32xf32, #tpu.memory_space<vmem>>, vector<160x32xf32>
      tpu.vector_store %arg7[%c0_94, %c0_95], %114 {strides = array<i32>} : memref<160x32xf32, #tpu.memory_space<vmem>>, vector<160x32xf32>,
      %cst_96 = arith.constant 0.000000e+00 : f32
      %116 = vector.broadcast %cst_96 : f32 to vector<128x32xf32>
      %c0_97 = arith.constant 0 : index
      %c0_98 = arith.constant 0 : index
      %117 = vector.load %arg8[%c0_97, %c0_98] : memref<128x32xf32, #tpu.memory_space<vmem>>, vector<128x32xf32>
      tpu.vector_store %arg8[%c0_97, %c0_98], %116 {strides = array<i32>} : memref<128x32xf32, #tpu.memory_space<vmem>>, vector<128x32xf32>,
      %c0_99 = arith.constant 0 : index
      %c0_100 = arith.constant 0 : index
      %118 = vector.load %arg1[%c0_99, %c0_100] : memref<128x32xf32, #tpu.memory_space<vmem>>, vector<128x32xf32>
      %c16_101 = arith.constant 16 : index
      %c0_102 = arith.constant 0 : index
      %119 = vector.load %arg7[%c16_101, %c0_102] : memref<160x32xf32, #tpu.memory_space<vmem>>, vector<128x32xf32>
      tpu.vector_store %arg7[%c16_101, %c0_102], %118 {strides = array<i32>} : memref<160x32xf32, #tpu.memory_space<vmem>>, vector<128x32xf32>,
    } else {
    }
    %c2_i32 = arith.constant 2 : i32
    %c0_i32_1 = arith.constant 0 : i32
    %3 = arith.cmpi eq, %c2_i32, %c0_i32_1 : i32
    %c1_i32 = arith.constant 1 : i32
    %4 = arith.select %3, %c1_i32, %c2_i32 : i32
    %5 = arith.remsi %arg0, %4 : i32
    %c0_i32_2 = arith.constant 0 : i32
    %6 = arith.cmpi ne, %5, %c0_i32_2 : i32
    %c0_i32_3 = arith.constant 0 : i32
    %7 = arith.cmpi slt, %5, %c0_i32_3 : i32
    %c0_i32_4 = arith.constant 0 : i32
    %8 = arith.cmpi slt, %4, %c0_i32_4 : i32
    %9 = arith.xori %7, %8 : i1
    %10 = arith.andi %9, %6 : i1
    %11 = arith.addi %5, %4 : i32
    %12 = arith.select %10, %11, %5 : i32
    %c1_i32_5 = arith.constant 1 : i32
    %13 = arith.cmpi eq, %12, %c1_i32_5 : i32
    %14 = arith.extui %13 : i1 to i32
    %c0_i32_6 = arith.constant 0 : i32
    %15 = arith.cmpi ne, %14, %c0_i32_6 : i32
    scf.if %15 {
      %c16_93 = arith.constant 16 : index
      %c0_94 = arith.constant 0 : index
      %114 = vector.load %arg7[%c16_93, %c0_94] : memref<160x32xf32, #tpu.memory_space<vmem>>, vector<128x32xf32>
      %c0_95 = arith.constant 0 : index
      %c0_96 = arith.constant 0 : index
      %115 = vector.load %arg8[%c0_95, %c0_96] : memref<128x32xf32, #tpu.memory_space<vmem>>, vector<128x32xf32>
      tpu.vector_store %arg8[%c0_95, %c0_96], %114 {strides = array<i32>} : memref<128x32xf32, #tpu.memory_space<vmem>>, vector<128x32xf32>,
    } else {
    }
    %cst = arith.constant 0.000000e+00 : f32
    %16 = vector.broadcast %cst : f32 to vector<128x32xf32>
    %c7 = arith.constant 7 : index
    %c0 = arith.constant 0 : index
    %17 = vector.load %arg7[%c7, %c0] : memref<160x32xf32, #tpu.memory_space<vmem>>, vector<128x32xf32>
    %c0_7 = arith.constant 0 : index
    %c0_8 = arith.constant 0 : index
    %c0_9 = arith.constant 0 : index
    %18 = vector.load %arg5[%c0_7, %c0_8, %c0_9] : memref<9x128x1xf32, #tpu.memory_space<vmem>>, vector<1x128x1xf32>
    %19 = vector.shape_cast %18 : vector<1x128x1xf32> to vector<128x1xf32>
    %20 = vector.broadcast %19 : vector<128x1xf32> to vector<128x32xf32>
    %21 = arith.mulf %17, %20 : vector<128x32xf32>
    %c0_10 = arith.constant 0 : index
    %c0_11 = arith.constant 0 : index
    %c0_12 = arith.constant 0 : index
    %c0_13 = arith.constant 0 : index
    %22 = vector.load %arg2[%c0_10, %c0_11, %c0_12, %c0_13] : memref<1x9x32x32xf32, #tpu.memory_space<vmem>>, vector<1x1x32x32xf32>
    %23 = vector.shape_cast %22 : vector<1x1x32x32xf32> to vector<32x32xf32>
    %cst_14 = arith.constant dense<0.000000e+00> : vector<128x32xf32>
    %24 = tpu.matmul %21, %23, %cst_14 {dimension_numbers = #tpu.dot_dimension_numbers<[1], [0], [0], [1], [0, 0, 1, 1], [], []>} : vector<128x32xf32>, vector<32x32xf32>, vector<128x32xf32> -> vector<128x32xf32>
    %25 = arith.addf %16, %24 : vector<128x32xf32>
    %c8 = arith.constant 8 : index
    %c0_15 = arith.constant 0 : index
    %26 = vector.load %arg7[%c8, %c0_15] : memref<160x32xf32, #tpu.memory_space<vmem>>, vector<128x32xf32>
    %c1 = arith.constant 1 : index
    %c0_16 = arith.constant 0 : index
    %c0_17 = arith.constant 0 : index
    %27 = vector.load %arg5[%c1, %c0_16, %c0_17] : memref<9x128x1xf32, #tpu.memory_space<vmem>>, vector<1x128x1xf32>
    %28 = vector.shape_cast %27 : vector<1x128x1xf32> to vector<128x1xf32>
    %29 = vector.broadcast %28 : vector<128x1xf32> to vector<128x32xf32>
    %30 = arith.mulf %26, %29 : vector<128x32xf32>
    %c0_18 = arith.constant 0 : index
    %c1_19 = arith.constant 1 : index
    %c0_20 = arith.constant 0 : index
    %c0_21 = arith.constant 0 : index
    %31 = vector.load %arg2[%c0_18, %c1_19, %c0_20, %c0_21] : memref<1x9x32x32xf32, #tpu.memory_space<vmem>>, vector<1x1x32x32xf32>
    %32 = vector.shape_cast %31 : vector<1x1x32x32xf32> to vector<32x32xf32>
    %cst_22 = arith.constant dense<0.000000e+00> : vector<128x32xf32>
    %33 = tpu.matmul %30, %32, %cst_22 {dimension_numbers = #tpu.dot_dimension_numbers<[1], [0], [0], [1], [0, 0, 1, 1], [], []>} : vector<128x32xf32>, vector<32x32xf32>, vector<128x32xf32> -> vector<128x32xf32>
    %34 = arith.addf %25, %33 : vector<128x32xf32>
    %c9 = arith.constant 9 : index
    %c0_23 = arith.constant 0 : index
    %35 = vector.load %arg7[%c9, %c0_23] : memref<160x32xf32, #tpu.memory_space<vmem>>, vector<128x32xf32>
    %c2 = arith.constant 2 : index
    %c0_24 = arith.constant 0 : index
    %c0_25 = arith.constant 0 : index
    %36 = vector.load %arg5[%c2, %c0_24, %c0_25] : memref<9x128x1xf32, #tpu.memory_space<vmem>>, vector<1x128x1xf32>
    %37 = vector.shape_cast %36 : vector<1x128x1xf32> to vector<128x1xf32>
    %38 = vector.broadcast %37 : vector<128x1xf32> to vector<128x32xf32>
    %39 = arith.mulf %35, %38 : vector<128x32xf32>
    %c0_26 = arith.constant 0 : index
    %c2_27 = arith.constant 2 : index
    %c0_28 = arith.constant 0 : index
    %c0_29 = arith.constant 0 : index
    %40 = vector.load %arg2[%c0_26, %c2_27, %c0_28, %c0_29] : memref<1x9x32x32xf32, #tpu.memory_space<vmem>>, vector<1x1x32x32xf32>
    %41 = vector.shape_cast %40 : vector<1x1x32x32xf32> to vector<32x32xf32>
    %cst_30 = arith.constant dense<0.000000e+00> : vector<128x32xf32>
    %42 = tpu.matmul %39, %41, %cst_30 {dimension_numbers = #tpu.dot_dimension_numbers<[1], [0], [0], [1], [0, 0, 1, 1], [], []>} : vector<128x32xf32>, vector<32x32xf32>, vector<128x32xf32> -> vector<128x32xf32>
    %43 = arith.addf %34, %42 : vector<128x32xf32>
    %c15 = arith.constant 15 : index
    %c0_31 = arith.constant 0 : index
    %44 = vector.load %arg7[%c15, %c0_31] : memref<160x32xf32, #tpu.memory_space<vmem>>, vector<128x32xf32>
    %c3 = arith.constant 3 : index
    %c0_32 = arith.constant 0 : index
    %c0_33 = arith.constant 0 : index
    %45 = vector.load %arg5[%c3, %c0_32, %c0_33] : memref<9x128x1xf32, #tpu.memory_space<vmem>>, vector<1x128x1xf32>
    %46 = vector.shape_cast %45 : vector<1x128x1xf32> to vector<128x1xf32>
    %47 = vector.broadcast %46 : vector<128x1xf32> to vector<128x32xf32>
    %48 = arith.mulf %44, %47 : vector<128x32xf32>
    %c0_34 = arith.constant 0 : index
    %c3_35 = arith.constant 3 : index
    %c0_36 = arith.constant 0 : index
    %c0_37 = arith.constant 0 : index
    %49 = vector.load %arg2[%c0_34, %c3_35, %c0_36, %c0_37] : memref<1x9x32x32xf32, #tpu.memory_space<vmem>>, vector<1x1x32x32xf32>
    %50 = vector.shape_cast %49 : vector<1x1x32x32xf32> to vector<32x32xf32>
    %cst_38 = arith.constant dense<0.000000e+00> : vector<128x32xf32>
    %51 = tpu.matmul %48, %50, %cst_38 {dimension_numbers = #tpu.dot_dimension_numbers<[1], [0], [0], [1], [0, 0, 1, 1], [], []>} : vector<128x32xf32>, vector<32x32xf32>, vector<128x32xf32> -> vector<128x32xf32>
    %52 = arith.addf %43, %51 : vector<128x32xf32>
    %c16 = arith.constant 16 : index
    %c0_39 = arith.constant 0 : index
    %53 = vector.load %arg7[%c16, %c0_39] : memref<160x32xf32, #tpu.memory_space<vmem>>, vector<128x32xf32>
    %c4 = arith.constant 4 : index
    %c0_40 = arith.constant 0 : index
    %c0_41 = arith.constant 0 : index
    %54 = vector.load %arg5[%c4, %c0_40, %c0_41] : memref<9x128x1xf32, #tpu.memory_space<vmem>>, vector<1x128x1xf32>
    %55 = vector.shape_cast %54 : vector<1x128x1xf32> to vector<128x1xf32>
    %56 = vector.broadcast %55 : vector<128x1xf32> to vector<128x32xf32>
    %57 = arith.mulf %53, %56 : vector<128x32xf32>
    %c0_42 = arith.constant 0 : index
    %c4_43 = arith.constant 4 : index
    %c0_44 = arith.constant 0 : index
    %c0_45 = arith.constant 0 : index
    %58 = vector.load %arg2[%c0_42, %c4_43, %c0_44, %c0_45] : memref<1x9x32x32xf32, #tpu.memory_space<vmem>>, vector<1x1x32x32xf32>
    %59 = vector.shape_cast %58 : vector<1x1x32x32xf32> to vector<32x32xf32>
    %cst_46 = arith.constant dense<0.000000e+00> : vector<128x32xf32>
    %60 = tpu.matmul %57, %59, %cst_46 {dimension_numbers = #tpu.dot_dimension_numbers<[1], [0], [0], [1], [0, 0, 1, 1], [], []>} : vector<128x32xf32>, vector<32x32xf32>, vector<128x32xf32> -> vector<128x32xf32>
    %61 = arith.addf %52, %60 : vector<128x32xf32>
    %c17 = arith.constant 17 : index
    %c0_47 = arith.constant 0 : index
    %62 = vector.load %arg7[%c17, %c0_47] : memref<160x32xf32, #tpu.memory_space<vmem>>, vector<128x32xf32>
    %c5 = arith.constant 5 : index
    %c0_48 = arith.constant 0 : index
    %c0_49 = arith.constant 0 : index
    %63 = vector.load %arg5[%c5, %c0_48, %c0_49] : memref<9x128x1xf32, #tpu.memory_space<vmem>>, vector<1x128x1xf32>
    %64 = vector.shape_cast %63 : vector<1x128x1xf32> to vector<128x1xf32>
    %65 = vector.broadcast %64 : vector<128x1xf32> to vector<128x32xf32>
    %66 = arith.mulf %62, %65 : vector<128x32xf32>
    %c0_50 = arith.constant 0 : index
    %c5_51 = arith.constant 5 : index
    %c0_52 = arith.constant 0 : index
    %c0_53 = arith.constant 0 : index
    %67 = vector.load %arg2[%c0_50, %c5_51, %c0_52, %c0_53] : memref<1x9x32x32xf32, #tpu.memory_space<vmem>>, vector<1x1x32x32xf32>
    %68 = vector.shape_cast %67 : vector<1x1x32x32xf32> to vector<32x32xf32>
    %cst_54 = arith.constant dense<0.000000e+00> : vector<128x32xf32>
    %69 = tpu.matmul %66, %68, %cst_54 {dimension_numbers = #tpu.dot_dimension_numbers<[1], [0], [0], [1], [0, 0, 1, 1], [], []>} : vector<128x32xf32>, vector<32x32xf32>, vector<128x32xf32> -> vector<128x32xf32>
    %70 = arith.addf %61, %69 : vector<128x32xf32>
    %c23 = arith.constant 23 : index
    %c0_55 = arith.constant 0 : index
    %71 = vector.load %arg7[%c23, %c0_55] : memref<160x32xf32, #tpu.memory_space<vmem>>, vector<128x32xf32>
    %c6 = arith.constant 6 : index
    %c0_56 = arith.constant 0 : index
    %c0_57 = arith.constant 0 : index
    %72 = vector.load %arg5[%c6, %c0_56, %c0_57] : memref<9x128x1xf32, #tpu.memory_space<vmem>>, vector<1x128x1xf32>
    %73 = vector.shape_cast %72 : vector<1x128x1xf32> to vector<128x1xf32>
    %74 = vector.broadcast %73 : vector<128x1xf32> to vector<128x32xf32>
    %75 = arith.mulf %71, %74 : vector<128x32xf32>
    %c0_58 = arith.constant 0 : index
    %c6_59 = arith.constant 6 : index
    %c0_60 = arith.constant 0 : index
    %c0_61 = arith.constant 0 : index
    %76 = vector.load %arg2[%c0_58, %c6_59, %c0_60, %c0_61] : memref<1x9x32x32xf32, #tpu.memory_space<vmem>>, vector<1x1x32x32xf32>
    %77 = vector.shape_cast %76 : vector<1x1x32x32xf32> to vector<32x32xf32>
    %cst_62 = arith.constant dense<0.000000e+00> : vector<128x32xf32>
    %78 = tpu.matmul %75, %77, %cst_62 {dimension_numbers = #tpu.dot_dimension_numbers<[1], [0], [0], [1], [0, 0, 1, 1], [], []>} : vector<128x32xf32>, vector<32x32xf32>, vector<128x32xf32> -> vector<128x32xf32>
    %79 = arith.addf %70, %78 : vector<128x32xf32>
    %c24 = arith.constant 24 : index
    %c0_63 = arith.constant 0 : index
    %80 = vector.load %arg7[%c24, %c0_63] : memref<160x32xf32, #tpu.memory_space<vmem>>, vector<128x32xf32>
    %c7_64 = arith.constant 7 : index
    %c0_65 = arith.constant 0 : index
    %c0_66 = arith.constant 0 : index
    %81 = vector.load %arg5[%c7_64, %c0_65, %c0_66] : memref<9x128x1xf32, #tpu.memory_space<vmem>>, vector<1x128x1xf32>
    %82 = vector.shape_cast %81 : vector<1x128x1xf32> to vector<128x1xf32>
    %83 = vector.broadcast %82 : vector<128x1xf32> to vector<128x32xf32>
    %84 = arith.mulf %80, %83 : vector<128x32xf32>
    %c0_67 = arith.constant 0 : index
    %c7_68 = arith.constant 7 : index
    %c0_69 = arith.constant 0 : index
    %c0_70 = arith.constant 0 : index
    %85 = vector.load %arg2[%c0_67, %c7_68, %c0_69, %c0_70] : memref<1x9x32x32xf32, #tpu.memory_space<vmem>>, vector<1x1x32x32xf32>
    %86 = vector.shape_cast %85 : vector<1x1x32x32xf32> to vector<32x32xf32>
    %cst_71 = arith.constant dense<0.000000e+00> : vector<128x32xf32>
    %87 = tpu.matmul %84, %86, %cst_71 {dimension_numbers = #tpu.dot_dimension_numbers<[1], [0], [0], [1], [0, 0, 1, 1], [], []>} : vector<128x32xf32>, vector<32x32xf32>, vector<128x32xf32> -> vector<128x32xf32>
    %88 = arith.addf %79, %87 : vector<128x32xf32>
    %c25 = arith.constant 25 : index
    %c0_72 = arith.constant 0 : index
    %89 = vector.load %arg7[%c25, %c0_72] : memref<160x32xf32, #tpu.memory_space<vmem>>, vector<128x32xf32>
    %c8_73 = arith.constant 8 : index
    %c0_74 = arith.constant 0 : index
    %c0_75 = arith.constant 0 : index
    %90 = vector.load %arg5[%c8_73, %c0_74, %c0_75] : memref<9x128x1xf32, #tpu.memory_space<vmem>>, vector<1x128x1xf32>
    %91 = vector.shape_cast %90 : vector<1x128x1xf32> to vector<128x1xf32>
    %92 = vector.broadcast %91 : vector<128x1xf32> to vector<128x32xf32>
    %93 = arith.mulf %89, %92 : vector<128x32xf32>
    %c0_76 = arith.constant 0 : index
    %c8_77 = arith.constant 8 : index
    %c0_78 = arith.constant 0 : index
    %c0_79 = arith.constant 0 : index
    %94 = vector.load %arg2[%c0_76, %c8_77, %c0_78, %c0_79] : memref<1x9x32x32xf32, #tpu.memory_space<vmem>>, vector<1x1x32x32xf32>
    %95 = vector.shape_cast %94 : vector<1x1x32x32xf32> to vector<32x32xf32>
    %cst_80 = arith.constant dense<0.000000e+00> : vector<128x32xf32>
    %96 = tpu.matmul %93, %95, %cst_80 {dimension_numbers = #tpu.dot_dimension_numbers<[1], [0], [0], [1], [0, 0, 1, 1], [], []>} : vector<128x32xf32>, vector<32x32xf32>, vector<128x32xf32> -> vector<128x32xf32>
    %97 = arith.addf %88, %96 : vector<128x32xf32>
    %c0_81 = arith.constant 0 : index
    %c0_82 = arith.constant 0 : index
    %c0_83 = arith.constant 0 : index
    %98 = vector.load %arg3[%c0_81, %c0_82, %c0_83] : memref<1x1x32xf32, #tpu.memory_space<vmem>>, vector<1x1x32xf32>
    %99 = vector.shape_cast %98 : vector<1x1x32xf32> to vector<1x32xf32>
    %100 = vector.broadcast %99 : vector<1x32xf32> to vector<128x32xf32>
    %101 = arith.addf %97, %100 : vector<128x32xf32>
    %c0_84 = arith.constant 0 : index
    %c0_85 = arith.constant 0 : index
    %c0_86 = arith.constant 0 : index
    %102 = vector.load %arg4[%c0_84, %c0_85, %c0_86] : memref<1x1x1xf32, #tpu.memory_space<vmem>>, vector<1x1x1xf32>
    %103 = vector.shape_cast %102 : vector<1x1x1xf32> to vector<1x1xf32>
    %c0_87 = arith.constant 0 : index
    %c0_88 = arith.constant 0 : index
    %104 = vector.load %arg8[%c0_87, %c0_88] : memref<128x32xf32, #tpu.memory_space<vmem>>, vector<128x32xf32>
    %105 = vector.broadcast %103 : vector<1x1xf32> to vector<128x32xf32>
    %106 = arith.mulf %105, %104 : vector<128x32xf32>
    %107 = arith.addf %101, %106 : vector<128x32xf32>
    %cst_89 = arith.constant 0.000000e+00 : f32
    %108 = vector.broadcast %cst_89 : f32 to vector<128x32xf32>
    %109 = arith.maximumf %107, %108 : vector<128x32xf32>
    %c16_90 = arith.constant 16 : index
    %c0_91 = arith.constant 0 : index
    %110 = vector.load %arg7[%c16_90, %c0_91] : memref<160x32xf32, #tpu.memory_space<vmem>>, vector<128x32xf32>
    tpu.vector_store %arg7[%c16_90, %c0_91], %109 {strides = array<i32>} : memref<160x32xf32, #tpu.memory_space<vmem>>, vector<128x32xf32>,
    %c32_i32 = arith.constant 32 : i32
    %111 = arith.cmpi eq, %arg0, %c32_i32 : i32
    %112 = arith.extui %111 : i1 to i32
    %c0_i32_92 = arith.constant 0 : i32
    %113 = arith.cmpi ne, %112, %c0_i32_92 : i32
    scf.if %113 {
      %c0_93 = arith.constant 0 : index
      %c0_94 = arith.constant 0 : index
      %114 = vector.load %arg6[%c0_93, %c0_94] : memref<128x32xf32, #tpu.memory_space<vmem>>, vector<128x32xf32>
      tpu.vector_store %arg6[%c0_93, %c0_94], %109 {strides = array<i32>} : memref<128x32xf32, #tpu.memory_space<vmem>>, vector<128x32xf32>,
    } else {
    }
    return
  }
  func.func @transform_0(%arg0: i32) -> (i32, i32) {
    %c0_i32 = arith.constant 0 : i32
    %c0_i32_0 = arith.constant 0 : i32
    %c0_i32_1 = arith.constant 0 : i32
    return %c0_i32, %c0_i32_0 : i32, i32
  }
  func.func @transform_1(%arg0: i32) -> (i32, i32, i32, i32) {
    %c0_i32 = arith.constant 0 : i32
    %c0_i32_0 = arith.constant 0 : i32
    %c0_i32_1 = arith.constant 0 : i32
    %c0_i32_2 = arith.constant 0 : i32
    return %arg0, %c0_i32, %c0_i32_0, %c0_i32_1 : i32, i32, i32, i32
  }
  func.func @transform_2(%arg0: i32) -> (i32, i32, i32) {
    %c0_i32 = arith.constant 0 : i32
    %c0_i32_0 = arith.constant 0 : i32
    %c0_i32_1 = arith.constant 0 : i32
    return %arg0, %c0_i32, %c0_i32_0 : i32, i32, i32
  }
  func.func @transform_3(%arg0: i32) -> (i32, i32, i32) {
    %c0_i32 = arith.constant 0 : i32
    %c0_i32_0 = arith.constant 0 : i32
    %c0_i32_1 = arith.constant 0 : i32
    return %arg0, %c0_i32, %c0_i32_0 : i32, i32, i32
  }
  func.func @transform_4(%arg0: i32) -> (i32, i32, i32) {
    %c0_i32 = arith.constant 0 : i32
    %c0_i32_0 = arith.constant 0 : i32
    %c0_i32_1 = arith.constant 0 : i32
    %c0_i32_2 = arith.constant 0 : i32
    return %c0_i32, %c0_i32_0, %c0_i32_1 : i32, i32, i32
  }
  func.func @transform_5(%arg0: i32) -> (i32, i32) {
    %c0_i32 = arith.constant 0 : i32
    %c0_i32_0 = arith.constant 0 : i32
    %c0_i32_1 = arith.constant 0 : i32
    return %c0_i32, %c0_i32_0 : i32, i32
  }
}

</mosaic_0001>

<llo_original>
// kernel: dynamics_forward.1
$region0: #{dynamics_forward.1}
  #allocation0 [shape = 'u32[]', space=smem, size = 0x4, offset = 0x4, fixed_abs, tag = 'smem constant byte address 0x4 - core index']
  #allocation1 [shape = 'u32[144,128]{1,0:T(1,128)}', space=vmem, size = 0x12000, scoped, tag = 'internal scratch']
  #allocation2 [shape = 'f32[160,32]{1,0:T(8,128)}', space=vmem, size = 0x14000, scoped, tag = 'scratch operand']
  #allocation3 [shape = 'f32[128,32]{1,0:T(8,128)}', space=vmem, size = 0x10000, scoped, tag = 'scratch operand']
  %s0 = inlined_call_operand.vmem [shape: f32[128,32], index: 0, kind: input, shape index: {}]
  %s1 = inlined_call_operand.vmem [shape: f32[33,9,32,32], index: 1, kind: input, shape index: {}]
  %s2 = inlined_call_operand.vmem [shape: f32[33,1,32], index: 2, kind: input, shape index: {}]
  %s3 = inlined_call_operand.vmem [shape: f32[33,1,1], index: 3, kind: input, shape index: {}]
  %s4 = inlined_call_operand.vmem [shape: f32[9,128,1], index: 4, kind: input, shape index: {}]
  %s5 = inlined_call_operand.hbm [shape: f32[128,32], index: 5, kind: output, shape index: {}]
  %s6 = sld [smem:[#allocation0]]
  $region65: #{dynamics_forward.1} parent=0
    _
  %s8 = ssub.s32 1, %s6
  %s9 = scalar_select 0, %s8, %s6
  $region1: #{dynamics_forward.1} parent=0
    #allocation4 [shape = 'u8[65536]{0}', space=vmem, size = 0x10000, scoped, tag = 'output window, operand 0, single buffered']
    #allocation5 [shape = 's32[2]{0}', space=sflag, size = 0x8, scoped, tag = 'scoped memory for dynamics_forward.1']
    %10 = vsyncpa [#allocation5], 0
    loop: start=0, step=1, limit=35
    $region2: #{dynamics_forward.1} parent=1 // loop_pre_header
      _
    $region3: #{dynamics_forward.1} parent=1 // loop_header
      %s12 = sphi 0, %s16
      %p13 = scmp.ge.s32.totalorder %s12, 35
      %s20 = sphi 0, %s20
      %s22 = sphi 0, %s20
      %s23 = sphi 0, %s22
      %s37 = sphi 0, %s23
      %s43 = sphi 0, %s45
      %s46 = sphi 0, %s43
      %s47 = sphi 0, %s46
      %s63 = sphi 0, %s47
      %s69 = sphi 0, %s71
      %s72 = sphi 0, %s69
      %s73 = sphi 0, %s72
      %s89 = sphi 0, %s73
      %s95 = sphi 0, %s97
      %s98 = sphi 0, %s95
      %s99 = sphi 0, %s98
      %s115 = sphi 0, %s99
      %s119 = sphi 0, %s119
      %s121 = sphi 0, %s119
      %s122 = sphi 0, %s121
      %s136 = sphi 0, %s122
      %s140 = sphi 0, %s140
      %s142 = sphi 0, %s140
      %s143 = sphi 0, %s142
      %s157 = sphi 0, %s143
    $region4: #{dynamics_forward.1} parent=1 // loop_header_branch
      %15 = sbr.rel (%p13) target = $region8
    $region5: #{dynamics_forward.1} parent=1 // loop_body
      %s17 = ssub.s32 %s12, 1
      %s18 = ssub.s32 %s12, 2
      %s19 = sadd.s32 %s12, 1
      %s21 = sadd.s32 %s20, 1
      %p24 = scmp.eq.s32.totalorder %s12, 32
      %p25 = scmp.ne.s32.totalorder %s20, %s22
      %p26 = scmp.eq.s32.totalorder %s12, 0
      %p27 = por %p25, %p26
      %p28 = scmp.ne.s32.totalorder %s20, %s22
      %p29 = scmp.eq.s32.totalorder %s17, 32
      %p30 = por %p28, %p29
      %p31 = scmp.ne.s32.totalorder %s22, %s23
      %p32 = scmp.eq.s32.totalorder %s17, 0
      %p33 = por %p31, %p32
      %p34 = scmp.ne.s32.totalorder %s22, %s23
      %p35 = scmp.eq.s32.totalorder %s18, 32
      %p36 = por %p34, %p35
      %p38 = scmp.ne.s32.totalorder %s23, %s37
      %p39 = scmp.eq.s32.totalorder %s18, 0
      %p40 = por %p38, %p39
      %s41 = ssub.s32 %s12, %s19
      %p42 = scmp.eq.s32.totalorder %s41, 0
      %s44 = sadd.s32 %s43, 1
      %s45 = scalar_select %p42, %s43, %s44
      %p48 = pneg %p42
      %p49 = scmp.eq.s32.totalorder %s12, 32
      %p50 = por %p48, %p49
      %p51 = scmp.ne.s32.totalorder %s43, %s46
      %p52 = scmp.eq.s32.totalorder %s12, 0
      %p53 = por %p51, %p52
      %p54 = scmp.ne.s32.totalorder %s43, %s46
      %p55 = scmp.eq.s32.totalorder %s17, 32
      %p56 = por %p54, %p55
      %p57 = scmp.ne.s32.totalorder %s46, %s47
      %p58 = scmp.eq.s32.totalorder %s17, 0
      %p59 = por %p57, %p58
      %p60 = scmp.ne.s32.totalorder %s46, %s47
      %p61 = scmp.eq.s32.totalorder %s18, 32
      %p62 = por %p60, %p61
      %p64 = scmp.ne.s32.totalorder %s47, %s63
      %p65 = scmp.eq.s32.totalorder %s18, 0
      %p66 = por %p64, %p65
      %s67 = ssub.s32 %s12, %s19
      %p68 = scmp.eq.s32.totalorder %s67, 0
      %s70 = sadd.s32 %s69, 1
      %s71 = scalar_select %p68, %s69, %s70
      %p74 = pneg %p68
      %p75 = scmp.eq.s32.totalorder %s12, 32
      %p76 = por %p74, %p75
      %p77 = scmp.ne.s32.totalorder %s69, %s72
      %p78 = scmp.eq.s32.totalorder %s12, 0
      %p79 = por %p77, %p78
      %p80 = scmp.ne.s32.totalorder %s69, %s72
      %p81 = scmp.eq.s32.totalorder %s17, 32
      %p82 = por %p80, %p81
      %p83 = scmp.ne.s32.totalorder %s72, %s73
      %p84 = scmp.eq.s32.totalorder %s17, 0
      %p85 = por %p83, %p84
      %p86 = scmp.ne.s32.totalorder %s72, %s73
      %p87 = scmp.eq.s32.totalorder %s18, 32
      %p88 = por %p86, %p87
      %p90 = scmp.ne.s32.totalorder %s73, %s89
      %p91 = scmp.eq.s32.totalorder %s18, 0
      %p92 = por %p90, %p91
      %s93 = ssub.s32 %s12, %s19
      %p94 = scmp.eq.s32.totalorder %s93, 0
      %s96 = sadd.s32 %s95, 1
      %s97 = scalar_select %p94, %s95, %s96
      %p100 = pneg %p94
      %p101 = scmp.eq.s32.totalorder %s12, 32
      %p102 = por %p100, %p101
      %p103 = scmp.ne.s32.totalorder %s95, %s98
      %p104 = scmp.eq.s32.totalorder %s12, 0
      %p105 = por %p103, %p104
      %p106 = scmp.ne.s32.totalorder %s95, %s98
      %p107 = scmp.eq.s32.totalorder %s17, 32
      %p108 = por %p106, %p107
      %p109 = scmp.ne.s32.totalorder %s98, %s99
      %p110 = scmp.eq.s32.totalorder %s17, 0
      %p111 = por %p109, %p110
      %p112 = scmp.ne.s32.totalorder %s98, %s99
      %p113 = scmp.eq.s32.totalorder %s18, 32
      %p114 = por %p112, %p113
      %p116 = scmp.ne.s32.totalorder %s99, %s115
      %p117 = scmp.eq.s32.totalorder %s18, 0
      %p118 = por %p116, %p117
      %s120 = sadd.s32 %s119, 1
      %p123 = scmp.eq.s32.totalorder %s12, 32
      %p124 = scmp.ne.s32.totalorder %s119, %s121
      %p125 = scmp.eq.s32.totalorder %s12, 0
      %p126 = por %p124, %p125
      %p127 = scmp.ne.s32.totalorder %s119, %s121
      %p128 = scmp.eq.s32.totalorder %s17, 32
      %p129 = por %p127, %p128
      %p130 = scmp.ne.s32.totalorder %s121, %s122
      %p131 = scmp.eq.s32.totalorder %s17, 0
      %p132 = por %p130, %p131
      %p133 = scmp.ne.s32.totalorder %s121, %s122
      %p134 = scmp.eq.s32.totalorder %s18, 32
      %p135 = por %p133, %p134
      %p137 = scmp.ne.s32.totalorder %s122, %s136
      %p138 = scmp.eq.s32.totalorder %s18, 0
      %p139 = por %p137, %p138
      %s141 = sadd.s32 %s140, 1
      %p144 = scmp.eq.s32.totalorder %s12, 32
      %p145 = scmp.ne.s32.totalorder %s140, %s142
      %p146 = scmp.eq.s32.totalorder %s12, 0
      %p147 = por %p145, %p146
      %p148 = scmp.ne.s32.totalorder %s140, %s142
      %p149 = scmp.eq.s32.totalorder %s17, 32
      %p150 = por %p148, %p149
      %p151 = scmp.ne.s32.totalorder %s142, %s143
      %p152 = scmp.eq.s32.totalorder %s17, 0
      %p153 = por %p151, %p152
      %p154 = scmp.ne.s32.totalorder %s142, %s143
      %p155 = scmp.eq.s32.totalorder %s18, 32
      %p156 = por %p154, %p155
      %p158 = scmp.ne.s32.totalorder %s143, %s157
      %p159 = scmp.eq.s32.totalorder %s18, 0
      %p160 = por %p158, %p159
      %p161 = scmp.le.s32.totalorder 1, %s12
      %p162 = scmp.lt.s32.totalorder %s12, 34
      %p163 = pnand %p161, %p162
      %p164 = pneg %p163
      // Predicated region
      $region9: #{dynamics_forward.1} parent=5 // pred_check
        _
      $region10: #{dynamics_forward.1} parent=5 // pred_check_branch
        %166 = sbr.rel (%p163) target = $region12
      $region11: #{dynamics_forward.1} parent=5 // pred_region
        %s167 = ssub.s32 %s12, 1
        // Predicated region
        $region13: #{dynamics_forward.1} parent=11 // pred_check
          %p168 = pneg %p33
        $region14: #{dynamics_forward.1} parent=11 // pred_check_branch
          %170 = sbr.rel (%p168) target = $region16
        $region15: #{dynamics_forward.1} parent=11 // pred_region
          _
        $region16: #{dynamics_forward.1} parent=11 // pred_fallthru
          _
        // Predicated region
        $region17: #{dynamics_forward.1} parent=11 // pred_check
          %p171 = pneg %p132
        $region18: #{dynamics_forward.1} parent=11 // pred_check_branch
          %173 = sbr.rel (%p171) target = $region20
        $region19: #{dynamics_forward.1} parent=11 // pred_region
          _
        $region20: #{dynamics_forward.1} parent=11 // pred_fallthru
          _
      $region12: #{dynamics_forward.1} parent=5 // pred_fallthru
        _
      %p174 = scmp.lt.s32.totalorder %s12, 33
      // Predicated region
      $region21: #{dynamics_forward.1} parent=5 // pred_check
        %p175 = pneg %p174
      $region22: #{dynamics_forward.1} parent=5 // pred_check_branch
        %177 = sbr.rel (%p175) target = $region24
      $region23: #{dynamics_forward.1} parent=5 // pred_region
        // Predicated region
        $region25: #{dynamics_forward.1} parent=23 // pred_check
          %p178 = pneg %p53
        $region26: #{dynamics_forward.1} parent=23 // pred_check_branch
          %180 = sbr.rel (%p178) target = $region28
        $region27: #{dynamics_forward.1} parent=23 // pred_region
          %p181 = scmp.lt.s32.totalorder %s12, 32
          %s182 = scalar_select %p181, %s12, 32
          %s183 = smul.addr %s182, 36
          %s184 = smul.addr %s183, 8
          %s185 = scalar_lea.vmem %s1, %s184
        $region28: #{dynamics_forward.1} parent=23 // pred_fallthru
          _
        // Predicated region
        $region29: #{dynamics_forward.1} parent=23 // pred_check
          %p186 = pneg %p79
        $region30: #{dynamics_forward.1} parent=23 // pred_check_branch
          %188 = sbr.rel (%p186) target = $region32
        $region31: #{dynamics_forward.1} parent=23 // pred_region
          %p189 = scmp.lt.s32.totalorder %s12, 32
          %s190 = scalar_select %p189, %s12, 32
          %s191 = scalar_lea.vmem %s2, %s190
        $region32: #{dynamics_forward.1} parent=23 // pred_fallthru
          _
        // Predicated region
        $region33: #{dynamics_forward.1} parent=23 // pred_check
          %p192 = pneg %p105
        $region34: #{dynamics_forward.1} parent=23 // pred_check_branch
          %194 = sbr.rel (%p192) target = $region36
        $region35: #{dynamics_forward.1} parent=23 // pred_region
          %p195 = scmp.lt.s32.totalorder %s12, 32
          %s196 = scalar_select %p195, %s12, 32
          %s197 = scalar_lea.vmem %s3, %s196
        $region36: #{dynamics_forward.1} parent=23 // pred_fallthru
          _
      $region24: #{dynamics_forward.1} parent=5 // pred_fallthru
        _
      %p198 = scmp.le.s32.totalorder 1, %s12
      %p199 = scmp.lt.s32.totalorder %s12, 34
      %p200 = pnand %p198, %p199
      %p201 = pneg %p200
      // Predicated region
      $region37: #{dynamics_forward.1} parent=5 // pred_check
        _
      $region38: #{dynamics_forward.1} parent=5 // pred_check_branch
        %203 = sbr.rel (%p200) target = $region40
      $region39: #{dynamics_forward.1} parent=5 // pred_region
        %s204 = ssub.s32 %s12, 1
        %p205 = pneg %p33
        %p206 = pneg %p30
        %p207 = scmp.lt.s32.totalorder %s17, 32
        %s208 = scalar_select %p207, %s17, 32
        %s209 = smul.addr %s208, 36
        %s210 = smul.addr %s209, 8
        %s211 = scalar_lea.vmem %s1, %s210
        %p212 = pneg %p59
        %p213 = pneg %p56
        %p214 = scmp.lt.s32.totalorder %s17, 32
        %s215 = scalar_select %p214, %s17, 32
        %s216 = scalar_lea.vmem %s2, %s215
        %p217 = pneg %p85
        %p218 = pneg %p82
        %p219 = scmp.lt.s32.totalorder %s17, 32
        %s220 = scalar_select %p219, %s17, 32
        %s221 = scalar_lea.vmem %s3, %s220
        %p222 = pneg %p111
        %p223 = pneg %p108
        %p224 = pneg %p132
        %p225 = pneg %p129
        %p226 = pneg %p153
        %p227 = pneg %p150
        %p228 = scmp.lt.s32.totalorder %s17, 32
        %s229 = scalar_select %p228, %s17, 32
        %s230 = smul.addr %s229, 36
        %s231 = smul.addr %s230, 8
        %s232 = scalar_lea.vmem %s1, %s231
        %p233 = scmp.lt.s32.totalorder %s17, 32
        %s234 = scalar_select %p233, %s17, 32
        %s235 = scalar_lea.vmem %s2, %s234
        %p236 = scmp.lt.s32.totalorder %s17, 32
        %s237 = scalar_select %p236, %s17, 32
        %s238 = scalar_lea.vmem %s3, %s237
        %p239 = scmp.eq.s32.totalorder %s17, 0
        // Predicated region
        $region41: #{dynamics_forward.1} parent=39 // pred_check
          %p240 = pneg %p239
        $region42: #{dynamics_forward.1} parent=39 // pred_check_branch
          %242 = sbr.rel (%p240) target = $region44
        $region43: #{dynamics_forward.1} parent=39 // pred_region
          %vm243 = vcmask 261120
          %244 = vst.msk [vmem:[#allocation2] sm:$0xff] %vm243, 0.0
          %245 = vst.msk [vmem:[#allocation2 + $0x8] sm:$0xff] %vm243, 0.0
          %246 = vst.msk [vmem:[#allocation2 + $0x10] sm:$0xff] %vm243, 0.0
          %247 = vst.msk [vmem:[#allocation2 + $0x18] sm:$0xff] %vm243, 0.0
          %248 = vst.msk [vmem:[#allocation2 + $0x20] sm:$0xff] %vm243, 0.0
          %249 = vst.msk [vmem:[#allocation2 + $0x28] sm:$0xff] %vm243, 0.0
          %250 = vst.msk [vmem:[#allocation2 + $0x30] sm:$0xff] %vm243, 0.0
          %251 = vst.msk [vmem:[#allocation2 + $0x38] sm:$0xff] %vm243, 0.0
          %252 = vst.msk [vmem:[#allocation2 + $0x40] sm:$0xff] %vm243, 0.0
          %253 = vst.msk [vmem:[#allocation2 + $0x48] sm:$0xff] %vm243, 0.0
          %254 = vst.msk [vmem:[#allocation2 + $0x50] sm:$0xff] %vm243, 0.0
          %255 = vst.msk [vmem:[#allocation2 + $0x58] sm:$0xff] %vm243, 0.0
          %256 = vst.msk [vmem:[#allocation2 + $0x60] sm:$0xff] %vm243, 0.0
          %257 = vst.msk [vmem:[#allocation2 + $0x68] sm:$0xff] %vm243, 0.0
          %258 = vst.msk [vmem:[#allocation2 + $0x70] sm:$0xff] %vm243, 0.0
          %259 = vst.msk [vmem:[#allocation2 + $0x78] sm:$0xff] %vm243, 0.0
          %260 = vst.msk [vmem:[#allocation2 + $0x80] sm:$0xff] %vm243, 0.0
          %261 = vst.msk [vmem:[#allocation2 + $0x88] sm:$0xff] %vm243, 0.0
          %262 = vst.msk [vmem:[#allocation2 + $0x90] sm:$0xff] %vm243, 0.0
          %263 = vst.msk [vmem:[#allocation2 + $0x98] sm:$0xff] %vm243, 0.0
          %264 = vst.msk [vmem:[#allocation3] sm:$0xff] %vm243, 0.0
          %265 = vst.msk [vmem:[#allocation3 + $0x8] sm:$0xff] %vm243, 0.0
          %266 = vst.msk [vmem:[#allocation3 + $0x10] sm:$0xff] %vm243, 0.0
          %267 = vst.msk [vmem:[#allocation3 + $0x18] sm:$0xff] %vm243, 0.0
          %268 = vst.msk [vmem:[#allocation3 + $0x20] sm:$0xff] %vm243, 0.0
          %269 = vst.msk [vmem:[#allocation3 + $0x28] sm:$0xff] %vm243, 0.0
          %270 = vst.msk [vmem:[#allocation3 + $0x30] sm:$0xff] %vm243, 0.0
          %271 = vst.msk [vmem:[#allocation3 + $0x38] sm:$0xff] %vm243, 0.0
          %272 = vst.msk [vmem:[#allocation3 + $0x40] sm:$0xff] %vm243, 0.0
          %273 = vst.msk [vmem:[#allocation3 + $0x48] sm:$0xff] %vm243, 0.0
          %274 = vst.msk [vmem:[#allocation3 + $0x50] sm:$0xff] %vm243, 0.0
          %275 = vst.msk [vmem:[#allocation3 + $0x58] sm:$0xff] %vm243, 0.0
          %276 = vst.msk [vmem:[#allocation3 + $0x60] sm:$0xff] %vm243, 0.0
          %277 = vst.msk [vmem:[#allocation3 + $0x68] sm:$0xff] %vm243, 0.0
          %278 = vst.msk [vmem:[#allocation3 + $0x70] sm:$0xff] %vm243, 0.0
          %279 = vst.msk [vmem:[#allocation3 + $0x78] sm:$0xff] %vm243, 0.0
          %v280 = vld [vmem:[%s0] sm:$0xff]
          %v281 = vld [vmem:[%s0 + $0x8] sm:$0xff]
          %v282 = vld [vmem:[%s0 + $0x10] sm:$0xff]
          %v283 = vld [vmem:[%s0 + $0x18] sm:$0xff]
          %v284 = vld [vmem:[%s0 + $0x20] sm:$0xff]
          %v285 = vld [vmem:[%s0 + $0x28] sm:$0xff]
          %v286 = vld [vmem:[%s0 + $0x30] sm:$0xff]
          %v287 = vld [vmem:[%s0 + $0x38] sm:$0xff]
          %v288 = vld [vmem:[%s0 + $0x40] sm:$0xff]
          %v289 = vld [vmem:[%s0 + $0x48] sm:$0xff]
          %v290 = vld [vmem:[%s0 + $0x50] sm:$0xff]
          %v291 = vld [vmem:[%s0 + $0x58] sm:$0xff]
          %v292 = vld [vmem:[%s0 + $0x60] sm:$0xff]
          %v293 = vld [vmem:[%s0 + $0x68] sm:$0xff]
          %v294 = vld [vmem:[%s0 + $0x70] sm:$0xff]
          %v295 = vld [vmem:[%s0 + $0x78] sm:$0xff]
          %296 = vst.msk [vmem:[#allocation2 + $0x10] sm:$0xff] %vm243, %v280
          %297 = vst.msk [vmem:[#allocation2 + $0x18] sm:$0xff] %vm243, %v281
          %298 = vst.msk [vmem:[#allocation2 + $0x20] sm:$0xff] %vm243, %v282
          %299 = vst.msk [vmem:[#allocation2 + $0x28] sm:$0xff] %vm243, %v283
          %300 = vst.msk [vmem:[#allocation2 + $0x30] sm:$0xff] %vm243, %v284
          %301 = vst.msk [vmem:[#allocation2 + $0x38] sm:$0xff] %vm243, %v285
          %302 = vst.msk [vmem:[#allocation2 + $0x40] sm:$0xff] %vm243, %v286
          %303 = vst.msk [vmem:[#allocation2 + $0x48] sm:$0xff] %vm243, %v287
          %304 = vst.msk [vmem:[#allocation2 + $0x50] sm:$0xff] %vm243, %v288
          %305 = vst.msk [vmem:[#allocation2 + $0x58] sm:$0xff] %vm243, %v289
          %306 = vst.msk [vmem:[#allocation2 + $0x60] sm:$0xff] %vm243, %v290
          %307 = vst.msk [vmem:[#allocation2 + $0x68] sm:$0xff] %vm243, %v291
          %308 = vst.msk [vmem:[#allocation2 + $0x70] sm:$0xff] %vm243, %v292
          %309 = vst.msk [vmem:[#allocation2 + $0x78] sm:$0xff] %vm243, %v293
          %310 = vst.msk [vmem:[#allocation2 + $0x80] sm:$0xff] %vm243, %v294
          %311 = vst.msk [vmem:[#allocation2 + $0x88] sm:$0xff] %vm243, %v295
        $region44: #{dynamics_forward.1} parent=39 // pred_fallthru
          _
        %p312 = scmp.lt.s32.totalorder %s17, 0
        %s313 = ssub.s32 0, %s17
        %s314 = scalar_select %p312, %s313, %s17
        %s315 = sand.u32 %s314, 1
        %s316 = ssub.s32 0, %s315
        %s317 = scalar_select %p312, %s316, %s315
        %p318 = scmp.ne.s32.totalorder %s317, 0
        %p319 = scmp.lt.s32.totalorder %s317, 0
        %p320 = pnand %p319, %p318
        %p321 = pneg %p320
        %s322 = sadd.s32 %s317, 2
        %s323 = scalar_select %p321, %s322, %s317
        %p324 = scmp.eq.s32.totalorder %s323, 1
        // Predicated region
        $region45: #{dynamics_forward.1} parent=39 // pred_check
          %p325 = pneg %p324
        $region46: #{dynamics_forward.1} parent=39 // pred_check_branch
          %327 = sbr.rel (%p325) target = $region48
        $region47: #{dynamics_forward.1} parent=39 // pred_region
          %v328 = vld [vmem:[#allocation2 + $0x10] sm:$0xff]
          %v329 = vld [vmem:[#allocation2 + $0x18] sm:$0xff]
          %v330 = vld [vmem:[#allocation2 + $0x20] sm:$0xff]
          %v331 = vld [vmem:[#allocation2 + $0x28] sm:$0xff]
          %v332 = vld [vmem:[#allocation2 + $0x30] sm:$0xff]
          %v333 = vld [vmem:[#allocation2 + $0x38] sm:$0xff]
          %v334 = vld [vmem:[#allocation2 + $0x40] sm:$0xff]
          %v335 = vld [vmem:[#allocation2 + $0x48] sm:$0xff]
          %v336 = vld [vmem:[#allocation2 + $0x50] sm:$0xff]
          %v337 = vld [vmem:[#allocation2 + $0x58] sm:$0xff]
          %v338 = vld [vmem:[#allocation2 + $0x60] sm:$0xff]
          %v339 = vld [vmem:[#allocation2 + $0x68] sm:$0xff]
          %v340 = vld [vmem:[#allocation2 + $0x70] sm:$0xff]
          %v341 = vld [vmem:[#allocation2 + $0x78] sm:$0xff]
          %v342 = vld [vmem:[#allocation2 + $0x80] sm:$0xff]
          %v343 = vld [vmem:[#allocation2 + $0x88] sm:$0xff]
          %vm344 = vcmask 261120
          %345 = vst.msk [vmem:[#allocation3] sm:$0xff] %vm344, %v328
          %346 = vst.msk [vmem:[#allocation3 + $0x8] sm:$0xff] %vm344, %v329
          %347 = vst.msk [vmem:[#allocation3 + $0x10] sm:$0xff] %vm344, %v330
          %348 = vst.msk [vmem:[#allocation3 + $0x18] sm:$0xff] %vm344, %v331
          %349 = vst.msk [vmem:[#allocation3 + $0x20] sm:$0xff] %vm344, %v332
          %350 = vst.msk [vmem:[#allocation3 + $0x28] sm:$0xff] %vm344, %v333
          %351 = vst.msk [vmem:[#allocation3 + $0x30] sm:$0xff] %vm344, %v334
          %352 = vst.msk [vmem:[#allocation3 + $0x38] sm:$0xff] %vm344, %v335
          %353 = vst.msk [vmem:[#allocation3 + $0x40] sm:$0xff] %vm344, %v336
          %354 = vst.msk [vmem:[#allocation3 + $0x48] sm:$0xff] %vm344, %v337
          %355 = vst.msk [vmem:[#allocation3 + $0x50] sm:$0xff] %vm344, %v338
          %356 = vst.msk [vmem:[#allocation3 + $0x58] sm:$0xff] %vm344, %v339
          %357 = vst.msk [vmem:[#allocation3 + $0x60] sm:$0xff] %vm344, %v340
          %358 = vst.msk [vmem:[#allocation3 + $0x68] sm:$0xff] %vm344, %v341
          %359 = vst.msk [vmem:[#allocation3 + $0x70] sm:$0xff] %vm344, %v342
          %360 = vst.msk [vmem:[#allocation3 + $0x78] sm:$0xff] %vm344, %v343
        $region48: #{dynamics_forward.1} parent=39 // pred_fallthru
          _
        %v361 = vld [vmem:[#allocation2 + $0x7] sm:$0xff]
        %v362 = vld [vmem:[#allocation2 + $0xf] sm:$0xff]
        %v363 = vld [vmem:[#allocation2 + $0x17] sm:$0xff]
        %v364 = vld [vmem:[#allocation2 + $0x1f] sm:$0xff]
        %v365 = vld [vmem:[#allocation2 + $0x27] sm:$0xff]
        %v366 = vld [vmem:[#allocation2 + $0x2f] sm:$0xff]
        %v367 = vld [vmem:[#allocation2 + $0x37] sm:$0xff]
        %v368 = vld [vmem:[#allocation2 + $0x3f] sm:$0xff]
        %v369 = vld [vmem:[#allocation2 + $0x47] sm:$0xff]
        %v370 = vld [vmem:[#allocation2 + $0x4f] sm:$0xff]
        %v371 = vld [vmem:[#allocation2 + $0x57] sm:$0xff]
        %v372 = vld [vmem:[#allocation2 + $0x5f] sm:$0xff]
        %v373 = vld [vmem:[#allocation2 + $0x67] sm:$0xff]
        %v374 = vld [vmem:[#allocation2 + $0x6f] sm:$0xff]
        %v375 = vld [vmem:[#allocation2 + $0x77] sm:$0xff]
        %v376 = vld [vmem:[#allocation2 + $0x7f] sm:$0xff]
        %v377 = vld [vmem:[%s4] sm:$0xff]
        %v378 = vld [vmem:[%s4 + $0x8] sm:$0xff]
        %v379 = vld [vmem:[%s4 + $0x10] sm:$0xff]
        %v380 = vld [vmem:[%s4 + $0x18] sm:$0xff]
        %v381 = vld [vmem:[%s4 + $0x20] sm:$0xff]
        %v382 = vld [vmem:[%s4 + $0x28] sm:$0xff]
        %v383 = vld [vmem:[%s4 + $0x30] sm:$0xff]
        %v384 = vld [vmem:[%s4 + $0x38] sm:$0xff]
        %v385 = vld [vmem:[%s4 + $0x40] sm:$0xff]
        %v386 = vld [vmem:[%s4 + $0x48] sm:$0xff]
        %v387 = vld [vmem:[%s4 + $0x50] sm:$0xff]
        %v388 = vld [vmem:[%s4 + $0x58] sm:$0xff]
        %v389 = vld [vmem:[%s4 + $0x60] sm:$0xff]
        %v390 = vld [vmem:[%s4 + $0x68] sm:$0xff]
        %v391 = vld [vmem:[%s4 + $0x70] sm:$0xff]
        %v392 = vld [vmem:[%s4 + $0x78] sm:$0xff]
        %394 = vset.pattern.permute.xlu0 0
        %395 = vperm.xlu0 %394, %v377
        %v396 = vpop.permute.xlu0 %395
        %399 = vset.pattern.permute.xlu0 0
        %400 = vperm.xlu0 %399, %v378
        %v401 = vpop.permute.xlu0 %400
        %404 = vset.pattern.permute.xlu0 0
        %405 = vperm.xlu0 %404, %v379
        %v406 = vpop.permute.xlu0 %405
        %409 = vset.pattern.permute.xlu0 0
        %410 = vperm.xlu0 %409, %v380
        %v411 = vpop.permute.xlu0 %410
        %414 = vset.pattern.permute.xlu0 0
        %415 = vperm.xlu0 %414, %v381
        %v416 = vpop.permute.xlu0 %415
        %419 = vset.pattern.permute.xlu0 0
        %420 = vperm.xlu0 %419, %v382
        %v421 = vpop.permute.xlu0 %420
        %424 = vset.pattern.permute.xlu0 0
        %425 = vperm.xlu0 %424, %v383
        %v426 = vpop.permute.xlu0 %425
        %429 = vset.pattern.permute.xlu0 0
        %430 = vperm.xlu0 %429, %v384
        %v431 = vpop.permute.xlu0 %430
        %434 = vset.pattern.permute.xlu0 0
        %435 = vperm.xlu0 %434, %v385
        %v436 = vpop.permute.xlu0 %435
        %439 = vset.pattern.permute.xlu0 0
        %440 = vperm.xlu0 %439, %v386
        %v441 = vpop.permute.xlu0 %440
        %444 = vset.pattern.permute.xlu0 0
        %445 = vperm.xlu0 %444, %v387
        %v446 = vpop.permute.xlu0 %445
        %449 = vset.pattern.permute.xlu0 0
        %450 = vperm.xlu0 %449, %v388
        %v451 = vpop.permute.xlu0 %450
        %454 = vset.pattern.permute.xlu0 0
        %455 = vperm.xlu0 %454, %v389
        %v456 = vpop.permute.xlu0 %455
        %459 = vset.pattern.permute.xlu0 0
        %460 = vperm.xlu0 %459, %v390
        %v461 = vpop.permute.xlu0 %460
        %464 = vset.pattern.permute.xlu0 0
        %465 = vperm.xlu0 %464, %v391
        %v466 = vpop.permute.xlu0 %465
        %469 = vset.pattern.permute.xlu0 0
        %470 = vperm.xlu0 %469, %v392
        %v471 = vpop.permute.xlu0 %470
        %v473 = vmul.f32 %v361, %v396
        %v474 = vmul.f32 %v362, %v401
        %v475 = vmul.f32 %v363, %v406
        %v476 = vmul.f32 %v364, %v411
        %v477 = vmul.f32 %v365, %v416
        %v478 = vmul.f32 %v366, %v421
        %v479 = vmul.f32 %v367, %v426
        %v480 = vmul.f32 %v368, %v431
        %v481 = vmul.f32 %v369, %v436
        %v482 = vmul.f32 %v370, %v441
        %v483 = vmul.f32 %v371, %v446
        %v484 = vmul.f32 %v372, %v451
        %v485 = vmul.f32 %v373, %v456
        %v486 = vmul.f32 %v374, %v461
        %v487 = vmul.f32 %v375, %v466
        %v488 = vmul.f32 %v376, %v471
        %v489 = vld [vmem:[%s232] sm:$0xff]
        %v490 = vld [vmem:[%s232 + $0x8] sm:$0xff]
        %v491 = vld [vmem:[%s232 + $0x10] sm:$0xff]
        %v492 = vld [vmem:[%s232 + $0x18] sm:$0xff]
        %v493 = vld [vmem:[#allocation2 + $0x8] sm:$0xff]
        %v494 = vld [vmem:[#allocation2 + $0x10] sm:$0xff]
        %v495 = vld [vmem:[#allocation2 + $0x18] sm:$0xff]
        %v496 = vld [vmem:[#allocation2 + $0x20] sm:$0xff]
        %v497 = vld [vmem:[#allocation2 + $0x28] sm:$0xff]
        %v498 = vld [vmem:[#allocation2 + $0x30] sm:$0xff]
        %v499 = vld [vmem:[#allocation2 + $0x38] sm:$0xff]
        %v500 = vld [vmem:[#allocation2 + $0x40] sm:$0xff]
        %v501 = vld [vmem:[#allocation2 + $0x48] sm:$0xff]
        %v502 = vld [vmem:[#allocation2 + $0x50] sm:$0xff]
        %v503 = vld [vmem:[#allocation2 + $0x58] sm:$0xff]
        %v504 = vld [vmem:[#allocation2 + $0x60] sm:$0xff]
        %v505 = vld [vmem:[#allocation2 + $0x68] sm:$0xff]
        %v506 = vld [vmem:[#allocation2 + $0x70] sm:$0xff]
        %v507 = vld [vmem:[#allocation2 + $0x78] sm:$0xff]
        %v508 = vld [vmem:[#allocation2 + $0x80] sm:$0xff]
        %s509 = scalar_lea.vmem %s4, 128
        %v510 = vld [vmem:[%s509] sm:$0xff]
        %v511 = vld [vmem:[%s509 + $0x8] sm:$0xff]
        %v512 = vld [vmem:[%s509 + $0x10] sm:$0xff]
        %v513 = vld [vmem:[%s509 + $0x18] sm:$0xff]
        %v514 = vld [vmem:[%s509 + $0x20] sm:$0xff]
        %v515 = vld [vmem:[%s509 + $0x28] sm:$0xff]
        %v516 = vld [vmem:[%s509 + $0x30] sm:$0xff]
        %v517 = vld [vmem:[%s509 + $0x38] sm:$0xff]
        %v518 = vld [vmem:[%s509 + $0x40] sm:$0xff]
        %v519 = vld [vmem:[%s509 + $0x48] sm:$0xff]
        %v520 = vld [vmem:[%s509 + $0x50] sm:$0xff]
        %v521 = vld [vmem:[%s509 + $0x58] sm:$0xff]
        %v522 = vld [vmem:[%s509 + $0x60] sm:$0xff]
        %v523 = vld [vmem:[%s509 + $0x68] sm:$0xff]
        %v524 = vld [vmem:[%s509 + $0x70] sm:$0xff]
        %v525 = vld [vmem:[%s509 + $0x78] sm:$0xff]
        %527 = vset.pattern.permute.xlu0 0
        %528 = vperm.xlu0 %527, %v510
        %v529 = vpop.permute.xlu0 %528
        %532 = vset.pattern.permute.xlu0 0
        %533 = vperm.xlu0 %532, %v511
        %v534 = vpop.permute.xlu0 %533
        %537 = vset.pattern.permute.xlu0 0
        %538 = vperm.xlu0 %537, %v512
        %v539 = vpop.permute.xlu0 %538
        %542 = vset.pattern.permute.xlu0 0
        %543 = vperm.xlu0 %542, %v513
        %v544 = vpop.permute.xlu0 %543
        %547 = vset.pattern.permute.xlu0 0
        %548 = vperm.xlu0 %547, %v514
        %v549 = vpop.permute.xlu0 %548
        %552 = vset.pattern.permute.xlu0 0
        %553 = vperm.xlu0 %552, %v515
        %v554 = vpop.permute.xlu0 %553
        %557 = vset.pattern.permute.xlu0 0
        %558 = vperm.xlu0 %557, %v516
        %v559 = vpop.permute.xlu0 %558
        %562 = vset.pattern.permute.xlu0 0
        %563 = vperm.xlu0 %562, %v517
        %v564 = vpop.permute.xlu0 %563
        %567 = vset.pattern.permute.xlu0 0
        %568 = vperm.xlu0 %567, %v518
        %v569 = vpop.permute.xlu0 %568
        %572 = vset.pattern.permute.xlu0 0
        %573 = vperm.xlu0 %572, %v519
        %v574 = vpop.permute.xlu0 %573
        %577 = vset.pattern.permute.xlu0 0
        %578 = vperm.xlu0 %577, %v520
        %v579 = vpop.permute.xlu0 %578
        %582 = vset.pattern.permute.xlu0 0
        %583 = vperm.xlu0 %582, %v521
        %v584 = vpop.permute.xlu0 %583
        %587 = vset.pattern.permute.xlu0 0
        %588 = vperm.xlu0 %587, %v522
        %v589 = vpop.permute.xlu0 %588
        %592 = vset.pattern.permute.xlu0 0
        %593 = vperm.xlu0 %592, %v523
        %v594 = vpop.permute.xlu0 %593
        %597 = vset.pattern.permute.xlu0 0
        %598 = vperm.xlu0 %597, %v524
        %v599 = vpop.permute.xlu0 %598
        %602 = vset.pattern.permute.xlu0 0
        %603 = vperm.xlu0 %602, %v525
        %v604 = vpop.permute.xlu0 %603
        %v606 = vmul.f32 %v493, %v529
        %v607 = vmul.f32 %v494, %v534
        %v608 = vmul.f32 %v495, %v539
        %v609 = vmul.f32 %v496, %v544
        %v610 = vmul.f32 %v497, %v549
        %v611 = vmul.f32 %v498, %v554
        %v612 = vmul.f32 %v499, %v559
        %v613 = vmul.f32 %v500, %v564
        %v614 = vmul.f32 %v501, %v569
        %v615 = vmul.f32 %v502, %v574
        %v616 = vmul.f32 %v503, %v579
        %v617 = vmul.f32 %v504, %v584
        %v618 = vmul.f32 %v505, %v589
        %v619 = vmul.f32 %v506, %v594
        %v620 = vmul.f32 %v507, %v599
        %v621 = vmul.f32 %v508, %v604
        %s622 = scalar_lea.vmem %s232, 32
        %v623 = vld [vmem:[%s622] sm:$0xff]
        %v624 = vld [vmem:[%s622 + $0x8] sm:$0xff]
        %v625 = vld [vmem:[%s622 + $0x10] sm:$0xff]
        %v626 = vld [vmem:[%s622 + $0x18] sm:$0xff]
        %vm627 = vcmask 261120
        %v629 = vsel %vm627, %v606, 0
        %v632 = vsel %vm627, %v607, 0
        %v635 = vsel %vm627, %v608, 0
        %v638 = vsel %vm627, %v609, 0
        %v641 = vsel %vm627, %v610, 0
        %v644 = vsel %vm627, %v611, 0
        %v647 = vsel %vm627, %v612, 0
        %v650 = vsel %vm627, %v613, 0
        %v653 = vsel %vm627, %v614, 0
        %v656 = vsel %vm627, %v615, 0
        %v659 = vsel %vm627, %v616, 0
        %v662 = vsel %vm627, %v617, 0
        %v665 = vsel %vm627, %v618, 0
        %v668 = vsel %vm627, %v619, 0
        %v671 = vsel %vm627, %v620, 0
        %v674 = vsel %vm627, %v621, 0
        %676 = vmatprep.subr.mxu0 0.0
        %677 = vmatpush1.msra.mxu0 %v623
        %678 = vmatprep.subr.mxu0 0.0
        %679 = vmatpush1.msra.mxu0 %v624
        %680 = vmatprep.subr.mxu0 0.0
        %681 = vmatpush1.msra.mxu0 %v625
        %682 = vmatprep.subr.mxu0 0.0
        %683 = vmatpush1.msra.mxu0 %v626
        %684 = vmatprep.subr.mxu0 0.0
        %685 = vmatpush1.msra.mxu0 0.0
        %686 = vmatprep.subr.mxu0 0.0
        %687 = vmatpush1.msra.mxu0 0.0
        %688 = vmatprep.subr.mxu0 0.0
        %689 = vmatpush1.msra.mxu0 0.0
        %690 = vmatprep.subr.mxu0 0.0
        %691 = vmatpush1.msra.mxu0 0.0
        %692 = vmatprep.subr.mxu0 0.0
        %693 = vmatpush1.msra.mxu0 0.0
        %694 = vmatprep.subr.mxu0 0.0
        %695 = vmatpush1.msra.mxu0 0.0
        %696 = vmatprep.subr.mxu0 0.0
        %697 = vmatpush1.msra.mxu0 0.0
        %698 = vmatprep.subr.mxu0 0.0
        %699 = vmatpush1.msra.mxu0 0.0
        %700 = vmatprep.subr.mxu0 0.0
        %701 = vmatpush1.msra.mxu0 0.0
        %702 = vmatprep.subr.mxu0 0.0
        %703 = vmatpush1.msra.mxu0 0.0
        %704 = vmatprep.subr.mxu0 0.0
        %705 = vmatpush1.msra.mxu0 0.0
        %706 = vmatprep.subr.mxu0 0.0
        %707 = vmatpush1.msra.mxu0 0.0
        %708 = vmatprep.subr.mxu0 0.0
        %709 = vmatpush1.msra.mxu0 0.0
        %710 = vmatprep.subr.mxu0 0.0
        %711 = vmatpush1.msra.mxu0 0.0
        %712 = vmatprep.subr.mxu0 0.0
        %713 = vmatpush1.msra.mxu0 0.0
        %714 = vmatprep.subr.mxu0 0.0
        %715 = vmatpush1.msra.mxu0 0.0
        %716 = vmatprep.subr.mxu0 0.0
        %717 = vmatpush1.msra.mxu0 0.0
        %718 = vmatprep.subr.mxu0 0.0
        %719 = vmatpush1.msra.mxu0 0.0
        %720 = vmatprep.subr.mxu0 0.0
        %721 = vmatpush1.msra.mxu0 0.0
        %722 = vmatprep.subr.mxu0 0.0
        %723 = vmatpush1.msra.mxu0 0.0
        %724 = vmatprep.subr.mxu0 0.0
        %725 = vmatpush1.msra.mxu0 0.0
        %726 = vmatprep.subr.mxu0 0.0
        %727 = vmatpush1.msra.mxu0 0.0
        %728 = vmatprep.subr.mxu0 0.0
        %729 = vmatpush1.msra.mxu0 0.0
        %730 = vmatprep.subr.mxu0 0.0
        %731 = vmatpush1.msra.mxu0 0.0
        %732 = vmatprep.subr.mxu0 0.0
        %733 = vmatpush1.msra.mxu0 0.0
        %734 = vmatprep.subr.mxu0 0.0
        %735 = vmatpush1.msra.mxu0 0.0
        %736 = vmatprep.subr.mxu0 0.0
        %737 = vmatpush1.msra.mxu0 0.0
        %738 = vmatprep.subr.mxu0 0.0
        %739 = vmatpush1.msra.mxu0 0.0
        %740 = vmatprep.mubr.f32.mxu0 0.0
        %741 = vmatmul.mubr.f32.gmra.mrb[0].mxu0 %v629
        %v742 = vpop.f32.mrb[0].mxu0
        %v743 = vadd.f32 0.0, %v742
        %v744 = vpop.f32.mrb[0].mxu0
        %745 = vmatprep.mubr.f32.mxu0 0.0
        %746 = vmatmul.mubr.f32.gmra.mrb[0].mxu0 %v632
        %v747 = vpop.f32.mrb[0].mxu0
        %v748 = vadd.f32 0.0, %v747
        %v749 = vpop.f32.mrb[0].mxu0
        %750 = vmatprep.mubr.f32.mxu0 0.0
        %751 = vmatmul.mubr.f32.gmra.mrb[0].mxu0 %v635
        %v752 = vpop.f32.mrb[0].mxu0
        %v753 = vadd.f32 0.0, %v752
        %v754 = vpop.f32.mrb[0].mxu0
        %755 = vmatprep.mubr.f32.mxu0 0.0
        %756 = vmatmul.mubr.f32.gmra.mrb[0].mxu0 %v638
        %v757 = vpop.f32.mrb[0].mxu0
        %v758 = vadd.f32 0.0, %v757
        %v759 = vpop.f32.mrb[0].mxu0
        %760 = vmatprep.mubr.f32.mxu0 0.0
        %761 = vmatmul.mubr.f32.gmra.mrb[0].mxu0 %v641
        %v762 = vpop.f32.mrb[0].mxu0
        %v763 = vadd.f32 0.0, %v762
        %v764 = vpop.f32.mrb[0].mxu0
        %765 = vmatprep.mubr.f32.mxu0 0.0
        %766 = vmatmul.mubr.f32.gmra.mrb[0].mxu0 %v644
        %v767 = vpop.f32.mrb[0].mxu0
        %v768 = vadd.f32 0.0, %v767
        %v769 = vpop.f32.mrb[0].mxu0
        %770 = vmatprep.mubr.f32.mxu0 0.0
        %771 = vmatmul.mubr.f32.gmra.mrb[0].mxu0 %v647
        %v772 = vpop.f32.mrb[0].mxu0
        %v773 = vadd.f32 0.0, %v772
        %v774 = vpop.f32.mrb[0].mxu0
        %775 = vmatprep.mubr.f32.mxu0 0.0
        %776 = vmatmul.mubr.f32.gmra.mrb[0].mxu0 %v650
        %v777 = vpop.f32.mrb[0].mxu0
        %v778 = vadd.f32 0.0, %v777
        %v779 = vpop.f32.mrb[0].mxu0
        %780 = vmatprep.mubr.f32.mxu0 0.0
        %781 = vmatmul.mubr.f32.gmra.mrb[0].mxu0 %v653
        %v782 = vpop.f32.mrb[0].mxu0
        %v783 = vadd.f32 0.0, %v782
        %v784 = vpop.f32.mrb[0].mxu0
        %785 = vmatprep.mubr.f32.mxu0 0.0
        %786 = vmatmul.mubr.f32.gmra.mrb[0].mxu0 %v656
        %v787 = vpop.f32.mrb[0].mxu0
        %v788 = vadd.f32 0.0, %v787
        %v789 = vpop.f32.mrb[0].mxu0
        %790 = vmatprep.mubr.f32.mxu0 0.0
        %791 = vmatmul.mubr.f32.gmra.mrb[0].mxu0 %v659
        %v792 = vpop.f32.mrb[0].mxu0
        %v793 = vadd.f32 0.0, %v792
        %v794 = vpop.f32.mrb[0].mxu0
        %795 = vmatprep.mubr.f32.mxu0 0.0
        %796 = vmatmul.mubr.f32.gmra.mrb[0].mxu0 %v662
        %v797 = vpop.f32.mrb[0].mxu0
        %v798 = vadd.f32 0.0, %v797
        %v799 = vpop.f32.mrb[0].mxu0
        %800 = vmatprep.mubr.f32.mxu0 0.0
        %801 = vmatmul.mubr.f32.gmra.mrb[0].mxu0 %v665
        %v802 = vpop.f32.mrb[0].mxu0
        %v803 = vadd.f32 0.0, %v802
        %v804 = vpop.f32.mrb[0].mxu0
        %805 = vmatprep.mubr.f32.mxu0 0.0
        %806 = vmatmul.mubr.f32.gmra.mrb[0].mxu0 %v668
        %v807 = vpop.f32.mrb[0].mxu0
        %v808 = vadd.f32 0.0, %v807
        %v809 = vpop.f32.mrb[0].mxu0
        %810 = vmatprep.mubr.f32.mxu0 0.0
        %811 = vmatmul.mubr.f32.gmra.mrb[0].mxu0 %v671
        %v812 = vpop.f32.mrb[0].mxu0
        %v813 = vadd.f32 0.0, %v812
        %v814 = vpop.f32.mrb[0].mxu0
        %815 = vmatprep.mubr.f32.mxu0 0.0
        %816 = vmatmul.mubr.f32.gmra.mrb[0].mxu0 %v674
        %v817 = vpop.f32.mrb[0].mxu0
        %v818 = vadd.f32 0.0, %v817
        %v819 = vpop.f32.mrb[0].mxu0
        %820 = vdwg.mxu0
        %v822 = vsel %vm627, %v473, 0
        %v825 = vsel %vm627, %v474, 0
        %v828 = vsel %vm627, %v475, 0
        %v831 = vsel %vm627, %v476, 0
        %v834 = vsel %vm627, %v477, 0
        %v837 = vsel %vm627, %v478, 0
        %v840 = vsel %vm627, %v479, 0
        %v843 = vsel %vm627, %v480, 0
        %v846 = vsel %vm627, %v481, 0
        %v849 = vsel %vm627, %v482, 0
        %v852 = vsel %vm627, %v483, 0
        %v855 = vsel %vm627, %v484, 0
        %v858 = vsel %vm627, %v485, 0
        %v861 = vsel %vm627, %v486, 0
        %v864 = vsel %vm627, %v487, 0
        %v867 = vsel %vm627, %v488, 0
        %869 = vmatprep.subr.mxu0 0.0
        %870 = vmatpush1.msra.mxu0 %v489
        %871 = vmatprep.subr.mxu0 0.0
        %872 = vmatpush1.msra.mxu0 %v490
        %873 = vmatprep.subr.mxu0 0.0
        %874 = vmatpush1.msra.mxu0 %v491
        %875 = vmatprep.subr.mxu0 0.0
        %876 = vmatpush1.msra.mxu0 %v492
        %877 = vmatprep.subr.mxu0 0.0
        %878 = vmatpush1.msra.mxu0 0.0
        %879 = vmatprep.subr.mxu0 0.0
        %880 = vmatpush1.msra.mxu0 0.0
        %881 = vmatprep.subr.mxu0 0.0
        %882 = vmatpush1.msra.mxu0 0.0
        %883 = vmatprep.subr.mxu0 0.0
        %884 = vmatpush1.msra.mxu0 0.0
        %885 = vmatprep.subr.mxu0 0.0
        %886 = vmatpush1.msra.mxu0 0.0
        %887 = vmatprep.subr.mxu0 0.0
        %888 = vmatpush1.msra.mxu0 0.0
        %889 = vmatprep.subr.mxu0 0.0
        %890 = vmatpush1.msra.mxu0 0.0
        %891 = vmatprep.subr.mxu0 0.0
        %892 = vmatpush1.msra.mxu0 0.0
        %893 = vmatprep.subr.mxu0 0.0
        %894 = vmatpush1.msra.mxu0 0.0
        %895 = vmatprep.subr.mxu0 0.0
        %896 = vmatpush1.msra.mxu0 0.0
        %897 = vmatprep.subr.mxu0 0.0
        %898 = vmatpush1.msra.mxu0 0.0
        %899 = vmatprep.subr.mxu0 0.0
        %900 = vmatpush1.msra.mxu0 0.0
        %901 = vmatprep.subr.mxu0 0.0
        %902 = vmatpush1.msra.mxu0 0.0
        %903 = vmatprep.subr.mxu0 0.0
        %904 = vmatpush1.msra.mxu0 0.0
        %905 = vmatprep.subr.mxu0 0.0
        %906 = vmatpush1.msra.mxu0 0.0
        %907 = vmatprep.subr.mxu0 0.0
        %908 = vmatpush1.msra.mxu0 0.0
        %909 = vmatprep.subr.mxu0 0.0
        %910 = vmatpush1.msra.mxu0 0.0
        %911 = vmatprep.subr.mxu0 0.0
        %912 = vmatpush1.msra.mxu0 0.0
        %913 = vmatprep.subr.mxu0 0.0
        %914 = vmatpush1.msra.mxu0 0.0
        %915 = vmatprep.subr.mxu0 0.0
        %916 = vmatpush1.msra.mxu0 0.0
        %917 = vmatprep.subr.mxu0 0.0
        %918 = vmatpush1.msra.mxu0 0.0
        %919 = vmatprep.subr.mxu0 0.0
        %920 = vmatpush1.msra.mxu0 0.0
        %921 = vmatprep.subr.mxu0 0.0
        %922 = vmatpush1.msra.mxu0 0.0
        %923 = vmatprep.subr.mxu0 0.0
        %924 = vmatpush1.msra.mxu0 0.0
        %925 = vmatprep.subr.mxu0 0.0
        %926 = vmatpush1.msra.mxu0 0.0
        %927 = vmatprep.subr.mxu0 0.0
        %928 = vmatpush1.msra.mxu0 0.0
        %929 = vmatprep.subr.mxu0 0.0
        %930 = vmatpush1.msra.mxu0 0.0
        %931 = vmatprep.subr.mxu0 0.0
        %932 = vmatpush1.msra.mxu0 0.0
        %933 = vmatprep.mubr.f32.mxu0 0.0
        %934 = vmatmul.mubr.f32.gmra.mrb[0].mxu0 %v822
        %v935 = vpop.f32.mrb[0].mxu0
        %v936 = vadd.f32 %v743, %v935
        %v937 = vpop.f32.mrb[0].mxu0
        %938 = vmatprep.mubr.f32.mxu0 0.0
        %939 = vmatmul.mubr.f32.gmra.mrb[0].mxu0 %v825
        %v940 = vpop.f32.mrb[0].mxu0
        %v941 = vadd.f32 %v748, %v940
        %v942 = vpop.f32.mrb[0].mxu0
        %943 = vmatprep.mubr.f32.mxu0 0.0
        %944 = vmatmul.mubr.f32.gmra.mrb[0].mxu0 %v828
        %v945 = vpop.f32.mrb[0].mxu0
        %v946 = vadd.f32 %v753, %v945
        %v947 = vpop.f32.mrb[0].mxu0
        %948 = vmatprep.mubr.f32.mxu0 0.0
        %949 = vmatmul.mubr.f32.gmra.mrb[0].mxu0 %v831
        %v950 = vpop.f32.mrb[0].mxu0
        %v951 = vadd.f32 %v758, %v950
        %v952 = vpop.f32.mrb[0].mxu0
        %953 = vmatprep.mubr.f32.mxu0 0.0
        %954 = vmatmul.mubr.f32.gmra.mrb[0].mxu0 %v834
        %v955 = vpop.f32.mrb[0].mxu0
        %v956 = vadd.f32 %v763, %v955
        %v957 = vpop.f32.mrb[0].mxu0
        %958 = vmatprep.mubr.f32.mxu0 0.0
        %959 = vmatmul.mubr.f32.gmra.mrb[0].mxu0 %v837
        %v960 = vpop.f32.mrb[0].mxu0
        %v961 = vadd.f32 %v768, %v960
        %v962 = vpop.f32.mrb[0].mxu0
        %963 = vmatprep.mubr.f32.mxu0 0.0
        %964 = vmatmul.mubr.f32.gmra.mrb[0].mxu0 %v840
        %v965 = vpop.f32.mrb[0].mxu0
        %v966 = vadd.f32 %v773, %v965
        %v967 = vpop.f32.mrb[0].mxu0
        %968 = vmatprep.mubr.f32.mxu0 0.0
        %969 = vmatmul.mubr.f32.gmra.mrb[0].mxu0 %v843
        %v970 = vpop.f32.mrb[0].mxu0
        %v971 = vadd.f32 %v778, %v970
        %v972 = vpop.f32.mrb[0].mxu0
        %973 = vmatprep.mubr.f32.mxu0 0.0
        %974 = vmatmul.mubr.f32.gmra.mrb[0].mxu0 %v846
        %v975 = vpop.f32.mrb[0].mxu0
        %v976 = vadd.f32 %v783, %v975
        %v977 = vpop.f32.mrb[0].mxu0
        %978 = vmatprep.mubr.f32.mxu0 0.0
        %979 = vmatmul.mubr.f32.gmra.mrb[0].mxu0 %v849
        %v980 = vpop.f32.mrb[0].mxu0
        %v981 = vadd.f32 %v788, %v980
        %v982 = vpop.f32.mrb[0].mxu0
        %983 = vmatprep.mubr.f32.mxu0 0.0
        %984 = vmatmul.mubr.f32.gmra.mrb[0].mxu0 %v852
        %v985 = vpop.f32.mrb[0].mxu0
        %v986 = vadd.f32 %v793, %v985
        %v987 = vpop.f32.mrb[0].mxu0
        %988 = vmatprep.mubr.f32.mxu0 0.0
        %989 = vmatmul.mubr.f32.gmra.mrb[0].mxu0 %v855
        %v990 = vpop.f32.mrb[0].mxu0
        %v991 = vadd.f32 %v798, %v990
        %v992 = vpop.f32.mrb[0].mxu0
        %993 = vmatprep.mubr.f32.mxu0 0.0
        %994 = vmatmul.mubr.f32.gmra.mrb[0].mxu0 %v858
        %v995 = vpop.f32.mrb[0].mxu0
        %v996 = vadd.f32 %v803, %v995
        %v997 = vpop.f32.mrb[0].mxu0
        %998 = vmatprep.mubr.f32.mxu0 0.0
        %999 = vmatmul.mubr.f32.gmra.mrb[0].mxu0 %v861
        %v1000 = vpop.f32.mrb[0].mxu0
        %v1001 = vadd.f32 %v808, %v1000
        %v1002 = vpop.f32.mrb[0].mxu0
        %1003 = vmatprep.mubr.f32.mxu0 0.0
        %1004 = vmatmul.mubr.f32.gmra.mrb[0].mxu0 %v864
        %v1005 = vpop.f32.mrb[0].mxu0
        %v1006 = vadd.f32 %v813, %v1005
        %v1007 = vpop.f32.mrb[0].mxu0
        %1008 = vmatprep.mubr.f32.mxu0 0.0
        %1009 = vmatmul.mubr.f32.gmra.mrb[0].mxu0 %v867
        %v1010 = vpop.f32.mrb[0].mxu0
        %v1011 = vadd.f32 %v818, %v1010
        %v1012 = vpop.f32.mrb[0].mxu0
        %1013 = vdwg.mxu0
        %v1014 = vld [vmem:[#allocation2 + $0x9] sm:$0xff]
        %v1015 = vld [vmem:[#allocation2 + $0x11] sm:$0xff]
        %v1016 = vld [vmem:[#allocation2 + $0x19] sm:$0xff]
        %v1017 = vld [vmem:[#allocation2 + $0x21] sm:$0xff]
        %v1018 = vld [vmem:[#allocation2 + $0x29] sm:$0xff]
        %v1019 = vld [vmem:[#allocation2 + $0x31] sm:$0xff]
        %v1020 = vld [vmem:[#allocation2 + $0x39] sm:$0xff]
        %v1021 = vld [vmem:[#allocation2 + $0x41] sm:$0xff]
        %v1022 = vld [vmem:[#allocation2 + $0x49] sm:$0xff]
        %v1023 = vld [vmem:[#allocation2 + $0x51] sm:$0xff]
        %v1024 = vld [vmem:[#allocation2 + $0x59] sm:$0xff]
        %v1025 = vld [vmem:[#allocation2 + $0x61] sm:$0xff]
        %v1026 = vld [vmem:[#allocation2 + $0x69] sm:$0xff]
        %v1027 = vld [vmem:[#allocation2 + $0x71] sm:$0xff]
        %v1028 = vld [vmem:[#allocation2 + $0x79] sm:$0xff]
        %v1029 = vld [vmem:[#allocation2 + $0x81] sm:$0xff]
        %s1030 = scalar_lea.vmem %s4, 256
        %v1031 = vld [vmem:[%s1030] sm:$0xff]
        %v1032 = vld [vmem:[%s1030 + $0x8] sm:$0xff]
        %v1033 = vld [vmem:[%s1030 + $0x10] sm:$0xff]
        %v1034 = vld [vmem:[%s1030 + $0x18] sm:$0xff]
        %v1035 = vld [vmem:[%s1030 + $0x20] sm:$0xff]
        %v1036 = vld [vmem:[%s1030 + $0x28] sm:$0xff]
        %v1037 = vld [vmem:[%s1030 + $0x30] sm:$0xff]
        %v1038 = vld [vmem:[%s1030 + $0x38] sm:$0xff]
        %v1039 = vld [vmem:[%s1030 + $0x40] sm:$0xff]
        %v1040 = vld [vmem:[%s1030 + $0x48] sm:$0xff]
        %v1041 = vld [vmem:[%s1030 + $0x50] sm:$0xff]
        %v1042 = vld [vmem:[%s1030 + $0x58] sm:$0xff]
        %v1043 = vld [vmem:[%s1030 + $0x60] sm:$0xff]
        %v1044 = vld [vmem:[%s1030 + $0x68] sm:$0xff]
        %v1045 = vld [vmem:[%s1030 + $0x70] sm:$0xff]
        %v1046 = vld [vmem:[%s1030 + $0x78] sm:$0xff]
        %1048 = vset.pattern.permute.xlu0 0
        %1049 = vperm.xlu0 %1048, %v1031
        %v1050 = vpop.permute.xlu0 %1049
        %1053 = vset.pattern.permute.xlu0 0
        %1054 = vperm.xlu0 %1053, %v1032
        %v1055 = vpop.permute.xlu0 %1054
        %1058 = vset.pattern.permute.xlu0 0
        %1059 = vperm.xlu0 %1058, %v1033
        %v1060 = vpop.permute.xlu0 %1059
        %1063 = vset.pattern.permute.xlu0 0
        %1064 = vperm.xlu0 %1063, %v1034
        %v1065 = vpop.permute.xlu0 %1064
        %1068 = vset.pattern.permute.xlu0 0
        %1069 = vperm.xlu0 %1068, %v1035
        %v1070 = vpop.permute.xlu0 %1069
        %1073 = vset.pattern.permute.xlu0 0
        %1074 = vperm.xlu0 %1073, %v1036
        %v1075 = vpop.permute.xlu0 %1074
        %1078 = vset.pattern.permute.xlu0 0
        %1079 = vperm.xlu0 %1078, %v1037
        %v1080 = vpop.permute.xlu0 %1079
        %1083 = vset.pattern.permute.xlu0 0
        %1084 = vperm.xlu0 %1083, %v1038
        %v1085 = vpop.permute.xlu0 %1084
        %1088 = vset.pattern.permute.xlu0 0
        %1089 = vperm.xlu0 %1088, %v1039
        %v1090 = vpop.permute.xlu0 %1089
        %1093 = vset.pattern.permute.xlu0 0
        %1094 = vperm.xlu0 %1093, %v1040
        %v1095 = vpop.permute.xlu0 %1094
        %1098 = vset.pattern.permute.xlu0 0
        %1099 = vperm.xlu0 %1098, %v1041
        %v1100 = vpop.permute.xlu0 %1099
        %1103 = vset.pattern.permute.xlu0 0
        %1104 = vperm.xlu0 %1103, %v1042
        %v1105 = vpop.permute.xlu0 %1104
        %1108 = vset.pattern.permute.xlu0 0
        %1109 = vperm.xlu0 %1108, %v1043
        %v1110 = vpop.permute.xlu0 %1109
        %1113 = vset.pattern.permute.xlu0 0
        %1114 = vperm.xlu0 %1113, %v1044
        %v1115 = vpop.permute.xlu0 %1114
        %1118 = vset.pattern.permute.xlu0 0
        %1119 = vperm.xlu0 %1118, %v1045
        %v1120 = vpop.permute.xlu0 %1119
        %1123 = vset.pattern.permute.xlu0 0
        %1124 = vperm.xlu0 %1123, %v1046
        %v1125 = vpop.permute.xlu0 %1124
        %v1127 = vmul.f32 %v1014, %v1050
        %v1128 = vmul.f32 %v1015, %v1055
        %v1129 = vmul.f32 %v1016, %v1060
        %v1130 = vmul.f32 %v1017, %v1065
        %v1131 = vmul.f32 %v1018, %v1070
        %v1132 = vmul.f32 %v1019, %v1075
        %v1133 = vmul.f32 %v1020, %v1080
        %v1134 = vmul.f32 %v1021, %v1085
        %v1135 = vmul.f32 %v1022, %v1090
        %v1136 = vmul.f32 %v1023, %v1095
        %v1137 = vmul.f32 %v1024, %v1100
        %v1138 = vmul.f32 %v1025, %v1105
        %v1139 = vmul.f32 %v1026, %v1110
        %v1140 = vmul.f32 %v1027, %v1115
        %v1141 = vmul.f32 %v1028, %v1120
        %v1142 = vmul.f32 %v1029, %v1125
        %s1143 = scalar_lea.vmem %s232, 64
        %v1144 = vld [vmem:[%s1143] sm:$0xff]
        %v1145 = vld [vmem:[%s1143 + $0x8] sm:$0xff]
        %v1146 = vld [vmem:[%s1143 + $0x10] sm:$0xff]
        %v1147 = vld [vmem:[%s1143 + $0x18] sm:$0xff]
        %v1149 = vsel %vm627, %v1127, 0
        %v1152 = vsel %vm627, %v1128, 0
        %v1155 = vsel %vm627, %v1129, 0
        %v1158 = vsel %vm627, %v1130, 0
        %v1161 = vsel %vm627, %v1131, 0
        %v1164 = vsel %vm627, %v1132, 0
        %v1167 = vsel %vm627, %v1133, 0
        %v1170 = vsel %vm627, %v1134, 0
        %v1173 = vsel %vm627, %v1135, 0
        %v1176 = vsel %vm627, %v1136, 0
        %v1179 = vsel %vm627, %v1137, 0
        %v1182 = vsel %vm627, %v1138, 0
        %v1185 = vsel %vm627, %v1139, 0
        %v1188 = vsel %vm627, %v1140, 0
        %v1191 = vsel %vm627, %v1141, 0
        %v1194 = vsel %vm627, %v1142, 0
        %1196 = vmatprep.subr.mxu0 0.0
        %1197 = vmatpush1.msra.mxu0 %v1144
        %1198 = vmatprep.subr.mxu0 0.0
        %1199 = vmatpush1.msra.mxu0 %v1145
        %1200 = vmatprep.subr.mxu0 0.0
        %1201 = vmatpush1.msra.mxu0 %v1146
        %1202 = vmatprep.subr.mxu0 0.0
        %1203 = vmatpush1.msra.mxu0 %v1147
        %1204 = vmatprep.subr.mxu0 0.0
        %1205 = vmatpush1.msra.mxu0 0.0
        %1206 = vmatprep.subr.mxu0 0.0
        %1207 = vmatpush1.msra.mxu0 0.0
        %1208 = vmatprep.subr.mxu0 0.0
        %1209 = vmatpush1.msra.mxu0 0.0
        %1210 = vmatprep.subr.mxu0 0.0
        %1211 = vmatpush1.msra.mxu0 0.0
        %1212 = vmatprep.subr.mxu0 0.0
        %1213 = vmatpush1.msra.mxu0 0.0
        %1214 = vmatprep.subr.mxu0 0.0
        %1215 = vmatpush1.msra.mxu0 0.0
        %1216 = vmatprep.subr.mxu0 0.0
        %1217 = vmatpush1.msra.mxu0 0.0
        %1218 = vmatprep.subr.mxu0 0.0
        %1219 = vmatpush1.msra.mxu0 0.0
        %1220 = vmatprep.subr.mxu0 0.0
        %1221 = vmatpush1.msra.mxu0 0.0
        %1222 = vmatprep.subr.mxu0 0.0
        %1223 = vmatpush1.msra.mxu0 0.0
        %1224 = vmatprep.subr.mxu0 0.0
        %1225 = vmatpush1.msra.mxu0 0.0
        %1226 = vmatprep.subr.mxu0 0.0
        %1227 = vmatpush1.msra.mxu0 0.0
        %1228 = vmatprep.subr.mxu0 0.0
        %1229 = vmatpush1.msra.mxu0 0.0
        %1230 = vmatprep.subr.mxu0 0.0
        %1231 = vmatpush1.msra.mxu0 0.0
        %1232 = vmatprep.subr.mxu0 0.0
        %1233 = vmatpush1.msra.mxu0 0.0
        %1234 = vmatprep.subr.mxu0 0.0
        %1235 = vmatpush1.msra.mxu0 0.0
        %1236 = vmatprep.subr.mxu0 0.0
        %1237 = vmatpush1.msra.mxu0 0.0
        %1238 = vmatprep.subr.mxu0 0.0
        %1239 = vmatpush1.msra.mxu0 0.0
        %1240 = vmatprep.subr.mxu0 0.0
        %1241 = vmatpush1.msra.mxu0 0.0
        %1242 = vmatprep.subr.mxu0 0.0
        %1243 = vmatpush1.msra.mxu0 0.0
        %1244 = vmatprep.subr.mxu0 0.0
        %1245 = vmatpush1.msra.mxu0 0.0
        %1246 = vmatprep.subr.mxu0 0.0
        %1247 = vmatpush1.msra.mxu0 0.0
        %1248 = vmatprep.subr.mxu0 0.0
        %1249 = vmatpush1.msra.mxu0 0.0
        %1250 = vmatprep.subr.mxu0 0.0
        %1251 = vmatpush1.msra.mxu0 0.0
        %1252 = vmatprep.subr.mxu0 0.0
        %1253 = vmatpush1.msra.mxu0 0.0
        %1254 = vmatprep.subr.mxu0 0.0
        %1255 = vmatpush1.msra.mxu0 0.0
        %1256 = vmatprep.subr.mxu0 0.0
        %1257 = vmatpush1.msra.mxu0 0.0
        %1258 = vmatprep.subr.mxu0 0.0
        %1259 = vmatpush1.msra.mxu0 0.0
        %1260 = vmatprep.mubr.f32.mxu0 0.0
        %1261 = vmatmul.mubr.f32.gmra.mrb[0].mxu0 %v1149
        %v1262 = vpop.f32.mrb[0].mxu0
        %v1263 = vadd.f32 0.0, %v1262
        %v1264 = vpop.f32.mrb[0].mxu0
        %1265 = vmatprep.mubr.f32.mxu0 0.0
        %1266 = vmatmul.mubr.f32.gmra.mrb[0].mxu0 %v1152
        %v1267 = vpop.f32.mrb[0].mxu0
        %v1268 = vadd.f32 0.0, %v1267
        %v1269 = vpop.f32.mrb[0].mxu0
        %1270 = vmatprep.mubr.f32.mxu0 0.0
        %1271 = vmatmul.mubr.f32.gmra.mrb[0].mxu0 %v1155
        %v1272 = vpop.f32.mrb[0].mxu0
        %v1273 = vadd.f32 0.0, %v1272
        %v1274 = vpop.f32.mrb[0].mxu0
        %1275 = vmatprep.mubr.f32.mxu0 0.0
        %1276 = vmatmul.mubr.f32.gmra.mrb[0].mxu0 %v1158
        %v1277 = vpop.f32.mrb[0].mxu0
        %v1278 = vadd.f32 0.0, %v1277
        %v1279 = vpop.f32.mrb[0].mxu0
        %1280 = vmatprep.mubr.f32.mxu0 0.0
        %1281 = vmatmul.mubr.f32.gmra.mrb[0].mxu0 %v1161
        %v1282 = vpop.f32.mrb[0].mxu0
        %v1283 = vadd.f32 0.0, %v1282
        %v1284 = vpop.f32.mrb[0].mxu0
        %1285 = vmatprep.mubr.f32.mxu0 0.0
        %1286 = vmatmul.mubr.f32.gmra.mrb[0].mxu0 %v1164
        %v1287 = vpop.f32.mrb[0].mxu0
        %v1288 = vadd.f32 0.0, %v1287
        %v1289 = vpop.f32.mrb[0].mxu0
        %1290 = vmatprep.mubr.f32.mxu0 0.0
        %1291 = vmatmul.mubr.f32.gmra.mrb[0].mxu0 %v1167
        %v1292 = vpop.f32.mrb[0].mxu0
        %v1293 = vadd.f32 0.0, %v1292
        %v1294 = vpop.f32.mrb[0].mxu0
        %1295 = vmatprep.mubr.f32.mxu0 0.0
        %1296 = vmatmul.mubr.f32.gmra.mrb[0].mxu0 %v1170
        %v1297 = vpop.f32.mrb[0].mxu0
        %v1298 = vadd.f32 0.0, %v1297
        %v1299 = vpop.f32.mrb[0].mxu0
        %1300 = vmatprep.mubr.f32.mxu0 0.0
        %1301 = vmatmul.mubr.f32.gmra.mrb[0].mxu0 %v1173
        %v1302 = vpop.f32.mrb[0].mxu0
        %v1303 = vadd.f32 0.0, %v1302
        %v1304 = vpop.f32.mrb[0].mxu0
        %1305 = vmatprep.mubr.f32.mxu0 0.0
        %1306 = vmatmul.mubr.f32.gmra.mrb[0].mxu0 %v1176
        %v1307 = vpop.f32.mrb[0].mxu0
        %v1308 = vadd.f32 0.0, %v1307
        %v1309 = vpop.f32.mrb[0].mxu0
        %1310 = vmatprep.mubr.f32.mxu0 0.0
        %1311 = vmatmul.mubr.f32.gmra.mrb[0].mxu0 %v1179
        %v1312 = vpop.f32.mrb[0].mxu0
        %v1313 = vadd.f32 0.0, %v1312
        %v1314 = vpop.f32.mrb[0].mxu0
        %1315 = vmatprep.mubr.f32.mxu0 0.0
        %1316 = vmatmul.mubr.f32.gmra.mrb[0].mxu0 %v1182
        %v1317 = vpop.f32.mrb[0].mxu0
        %v1318 = vadd.f32 0.0, %v1317
        %v1319 = vpop.f32.mrb[0].mxu0
        %1320 = vmatprep.mubr.f32.mxu0 0.0
        %1321 = vmatmul.mubr.f32.gmra.mrb[0].mxu0 %v1185
        %v1322 = vpop.f32.mrb[0].mxu0
        %v1323 = vadd.f32 0.0, %v1322
        %v1324 = vpop.f32.mrb[0].mxu0
        %1325 = vmatprep.mubr.f32.mxu0 0.0
        %1326 = vmatmul.mubr.f32.gmra.mrb[0].mxu0 %v1188
        %v1327 = vpop.f32.mrb[0].mxu0
        %v1328 = vadd.f32 0.0, %v1327
        %v1329 = vpop.f32.mrb[0].mxu0
        %1330 = vmatprep.mubr.f32.mxu0 0.0
        %1331 = vmatmul.mubr.f32.gmra.mrb[0].mxu0 %v1191
        %v1332 = vpop.f32.mrb[0].mxu0
        %v1333 = vadd.f32 0.0, %v1332
        %v1334 = vpop.f32.mrb[0].mxu0
        %1335 = vmatprep.mubr.f32.mxu0 0.0
        %1336 = vmatmul.mubr.f32.gmra.mrb[0].mxu0 %v1194
        %v1337 = vpop.f32.mrb[0].mxu0
        %v1338 = vadd.f32 0.0, %v1337
        %v1339 = vpop.f32.mrb[0].mxu0
        %1340 = vdwg.mxu0
        %v1341 = vadd.f32 %v936, %v1263
        %v1342 = vadd.f32 %v941, %v1268
        %v1343 = vadd.f32 %v946, %v1273
        %v1344 = vadd.f32 %v951, %v1278
        %v1345 = vadd.f32 %v956, %v1283
        %v1346 = vadd.f32 %v961, %v1288
        %v1347 = vadd.f32 %v966, %v1293
        %v1348 = vadd.f32 %v971, %v1298
        %v1349 = vadd.f32 %v976, %v1303
        %v1350 = vadd.f32 %v981, %v1308
        %v1351 = vadd.f32 %v986, %v1313
        %v1352 = vadd.f32 %v991, %v1318
        %v1353 = vadd.f32 %v996, %v1323
        %v1354 = vadd.f32 %v1001, %v1328
        %v1355 = vadd.f32 %v1006, %v1333
        %v1356 = vadd.f32 %v1011, %v1338
        %v1357 = vld [vmem:[#allocation2 + $0xf] sm:$0xff]
        %v1358 = vld [vmem:[#allocation2 + $0x17] sm:$0xff]
        %v1359 = vld [vmem:[#allocation2 + $0x1f] sm:$0xff]
        %v1360 = vld [vmem:[#allocation2 + $0x27] sm:$0xff]
        %v1361 = vld [vmem:[#allocation2 + $0x2f] sm:$0xff]
        %v1362 = vld [vmem:[#allocation2 + $0x37] sm:$0xff]
        %v1363 = vld [vmem:[#allocation2 + $0x3f] sm:$0xff]
        %v1364 = vld [vmem:[#allocation2 + $0x47] sm:$0xff]
        %v1365 = vld [vmem:[#allocation2 + $0x4f] sm:$0xff]
        %v1366 = vld [vmem:[#allocation2 + $0x57] sm:$0xff]
        %v1367 = vld [vmem:[#allocation2 + $0x5f] sm:$0xff]
        %v1368 = vld [vmem:[#allocation2 + $0x67] sm:$0xff]
        %v1369 = vld [vmem:[#allocation2 + $0x6f] sm:$0xff]
        %v1370 = vld [vmem:[#allocation2 + $0x77] sm:$0xff]
        %v1371 = vld [vmem:[#allocation2 + $0x7f] sm:$0xff]
        %v1372 = vld [vmem:[#allocation2 + $0x87] sm:$0xff]
        %s1373 = scalar_lea.vmem %s4, 384
        %v1374 = vld [vmem:[%s1373] sm:$0xff]
        %v1375 = vld [vmem:[%s1373 + $0x8] sm:$0xff]
        %v1376 = vld [vmem:[%s1373 + $0x10] sm:$0xff]
        %v1377 = vld [vmem:[%s1373 + $0x18] sm:$0xff]
        %v1378 = vld [vmem:[%s1373 + $0x20] sm:$0xff]
        %v1379 = vld [vmem:[%s1373 + $0x28] sm:$0xff]
        %v1380 = vld [vmem:[%s1373 + $0x30] sm:$0xff]
        %v1381 = vld [vmem:[%s1373 + $0x38] sm:$0xff]
        %v1382 = vld [vmem:[%s1373 + $0x40] sm:$0xff]
        %v1383 = vld [vmem:[%s1373 + $0x48] sm:$0xff]
        %v1384 = vld [vmem:[%s1373 + $0x50] sm:$0xff]
        %v1385 = vld [vmem:[%s1373 + $0x58] sm:$0xff]
        %v1386 = vld [vmem:[%s1373 + $0x60] sm:$0xff]
        %v1387 = vld [vmem:[%s1373 + $0x68] sm:$0xff]
        %v1388 = vld [vmem:[%s1373 + $0x70] sm:$0xff]
        %v1389 = vld [vmem:[%s1373 + $0x78] sm:$0xff]
        %1391 = vset.pattern.permute.xlu0 0
        %1392 = vperm.xlu0 %1391, %v1374
        %v1393 = vpop.permute.xlu0 %1392
        %1396 = vset.pattern.permute.xlu0 0
        %1397 = vperm.xlu0 %1396, %v1375
        %v1398 = vpop.permute.xlu0 %1397
        %1401 = vset.pattern.permute.xlu0 0
        %1402 = vperm.xlu0 %1401, %v1376
        %v1403 = vpop.permute.xlu0 %1402
        %1406 = vset.pattern.permute.xlu0 0
        %1407 = vperm.xlu0 %1406, %v1377
        %v1408 = vpop.permute.xlu0 %1407
        %1411 = vset.pattern.permute.xlu0 0
        %1412 = vperm.xlu0 %1411, %v1378
        %v1413 = vpop.permute.xlu0 %1412
        %1416 = vset.pattern.permute.xlu0 0
        %1417 = vperm.xlu0 %1416, %v1379
        %v1418 = vpop.permute.xlu0 %1417
        %1421 = vset.pattern.permute.xlu0 0
        %1422 = vperm.xlu0 %1421, %v1380
        %v1423 = vpop.permute.xlu0 %1422
        %1426 = vset.pattern.permute.xlu0 0
        %1427 = vperm.xlu0 %1426, %v1381
        %v1428 = vpop.permute.xlu0 %1427
        %1431 = vset.pattern.permute.xlu0 0
        %1432 = vperm.xlu0 %1431, %v1382
        %v1433 = vpop.permute.xlu0 %1432
        %1436 = vset.pattern.permute.xlu0 0
        %1437 = vperm.xlu0 %1436, %v1383
        %v1438 = vpop.permute.xlu0 %1437
        %1441 = vset.pattern.permute.xlu0 0
        %1442 = vperm.xlu0 %1441, %v1384
        %v1443 = vpop.permute.xlu0 %1442
        %1446 = vset.pattern.permute.xlu0 0
        %1447 = vperm.xlu0 %1446, %v1385
        %v1448 = vpop.permute.xlu0 %1447
        %1451 = vset.pattern.permute.xlu0 0
        %1452 = vperm.xlu0 %1451, %v1386
        %v1453 = vpop.permute.xlu0 %1452
        %1456 = vset.pattern.permute.xlu0 0
        %1457 = vperm.xlu0 %1456, %v1387
        %v1458 = vpop.permute.xlu0 %1457
        %1461 = vset.pattern.permute.xlu0 0
        %1462 = vperm.xlu0 %1461, %v1388
        %v1463 = vpop.permute.xlu0 %1462
        %1466 = vset.pattern.permute.xlu0 0
        %1467 = vperm.xlu0 %1466, %v1389
        %v1468 = vpop.permute.xlu0 %1467
        %v1470 = vmul.f32 %v1357, %v1393
        %v1471 = vmul.f32 %v1358, %v1398
        %v1472 = vmul.f32 %v1359, %v1403
        %v1473 = vmul.f32 %v1360, %v1408
        %v1474 = vmul.f32 %v1361, %v1413
        %v1475 = vmul.f32 %v1362, %v1418
        %v1476 = vmul.f32 %v1363, %v1423
        %v1477 = vmul.f32 %v1364, %v1428
        %v1478 = vmul.f32 %v1365, %v1433
        %v1479 = vmul.f32 %v1366, %v1438
        %v1480 = vmul.f32 %v1367, %v1443
        %v1481 = vmul.f32 %v1368, %v1448
        %v1482 = vmul.f32 %v1369, %v1453
        %v1483 = vmul.f32 %v1370, %v1458
        %v1484 = vmul.f32 %v1371, %v1463
        %v1485 = vmul.f32 %v1372, %v1468
        %s1486 = scalar_lea.vmem %s232, 96
        %v1487 = vld [vmem:[%s1486] sm:$0xff]
        %v1488 = vld [vmem:[%s1486 + $0x8] sm:$0xff]
        %v1489 = vld [vmem:[%s1486 + $0x10] sm:$0xff]
        %v1490 = vld [vmem:[%s1486 + $0x18] sm:$0xff]
        %v1492 = vsel %vm627, %v1470, 0
        %v1495 = vsel %vm627, %v1471, 0
        %v1498 = vsel %vm627, %v1472, 0
        %v1501 = vsel %vm627, %v1473, 0
        %v1504 = vsel %vm627, %v1474, 0
        %v1507 = vsel %vm627, %v1475, 0
        %v1510 = vsel %vm627, %v1476, 0
        %v1513 = vsel %vm627, %v1477, 0
        %v1516 = vsel %vm627, %v1478, 0
        %v1519 = vsel %vm627, %v1479, 0
        %v1522 = vsel %vm627, %v1480, 0
        %v1525 = vsel %vm627, %v1481, 0
        %v1528 = vsel %vm627, %v1482, 0
        %v1531 = vsel %vm627, %v1483, 0
        %v1534 = vsel %vm627, %v1484, 0
        %v1537 = vsel %vm627, %v1485, 0
        %1539 = vmatprep.subr.mxu0 0.0
        %1540 = vmatpush1.msra.mxu0 %v1487
        %1541 = vmatprep.subr.mxu0 0.0
        %1542 = vmatpush1.msra.mxu0 %v1488
        %1543 = vmatprep.subr.mxu0 0.0
        %1544 = vmatpush1.msra.mxu0 %v1489
        %1545 = vmatprep.subr.mxu0 0.0
        %1546 = vmatpush1.msra.mxu0 %v1490
        %1547 = vmatprep.subr.mxu0 0.0
        %1548 = vmatpush1.msra.mxu0 0.0
        %1549 = vmatprep.subr.mxu0 0.0
        %1550 = vmatpush1.msra.mxu0 0.0
        %1551 = vmatprep.subr.mxu0 0.0
        %1552 = vmatpush1.msra.mxu0 0.0
        %1553 = vmatprep.subr.mxu0 0.0
        %1554 = vmatpush1.msra.mxu0 0.0
        %1555 = vmatprep.subr.mxu0 0.0
        %1556 = vmatpush1.msra.mxu0 0.0
        %1557 = vmatprep.subr.mxu0 0.0
        %1558 = vmatpush1.msra.mxu0 0.0
        %1559 = vmatprep.subr.mxu0 0.0
        %1560 = vmatpush1.msra.mxu0 0.0
        %1561 = vmatprep.subr.mxu0 0.0
        %1562 = vmatpush1.msra.mxu0 0.0
        %1563 = vmatprep.subr.mxu0 0.0
        %1564 = vmatpush1.msra.mxu0 0.0
        %1565 = vmatprep.subr.mxu0 0.0
        %1566 = vmatpush1.msra.mxu0 0.0
        %1567 = vmatprep.subr.mxu0 0.0
        %1568 = vmatpush1.msra.mxu0 0.0
        %1569 = vmatprep.subr.mxu0 0.0
        %1570 = vmatpush1.msra.mxu0 0.0
        %1571 = vmatprep.subr.mxu0 0.0
        %1572 = vmatpush1.msra.mxu0 0.0
        %1573 = vmatprep.subr.mxu0 0.0
        %1574 = vmatpush1.msra.mxu0 0.0
        %1575 = vmatprep.subr.mxu0 0.0
        %1576 = vmatpush1.msra.mxu0 0.0
        %1577 = vmatprep.subr.mxu0 0.0
        %1578 = vmatpush1.msra.mxu0 0.0
        %1579 = vmatprep.subr.mxu0 0.0
        %1580 = vmatpush1.msra.mxu0 0.0
        %1581 = vmatprep.subr.mxu0 0.0
        %1582 = vmatpush1.msra.mxu0 0.0
        %1583 = vmatprep.subr.mxu0 0.0
        %1584 = vmatpush1.msra.mxu0 0.0
        %1585 = vmatprep.subr.mxu0 0.0
        %1586 = vmatpush1.msra.mxu0 0.0
        %1587 = vmatprep.subr.mxu0 0.0
        %1588 = vmatpush1.msra.mxu0 0.0
        %1589 = vmatprep.subr.mxu0 0.0
        %1590 = vmatpush1.msra.mxu0 0.0
        %1591 = vmatprep.subr.mxu0 0.0
        %1592 = vmatpush1.msra.mxu0 0.0
        %1593 = vmatprep.subr.mxu0 0.0
        %1594 = vmatpush1.msra.mxu0 0.0
        %1595 = vmatprep.subr.mxu0 0.0
        %1596 = vmatpush1.msra.mxu0 0.0
        %1597 = vmatprep.subr.mxu0 0.0
        %1598 = vmatpush1.msra.mxu0 0.0
        %1599 = vmatprep.subr.mxu0 0.0
        %1600 = vmatpush1.msra.mxu0 0.0
        %1601 = vmatprep.subr.mxu0 0.0
        %1602 = vmatpush1.msra.mxu0 0.0
        %1603 = vmatprep.mubr.f32.mxu0 0.0
        %1604 = vmatmul.mubr.f32.gmra.mrb[0].mxu0 %v1492
        %v1605 = vpop.f32.mrb[0].mxu0
        %v1606 = vadd.f32 0.0, %v1605
        %v1607 = vpop.f32.mrb[0].mxu0
        %1608 = vmatprep.mubr.f32.mxu0 0.0
        %1609 = vmatmul.mubr.f32.gmra.mrb[0].mxu0 %v1495
        %v1610 = vpop.f32.mrb[0].mxu0
        %v1611 = vadd.f32 0.0, %v1610
        %v1612 = vpop.f32.mrb[0].mxu0
        %1613 = vmatprep.mubr.f32.mxu0 0.0
        %1614 = vmatmul.mubr.f32.gmra.mrb[0].mxu0 %v1498
        %v1615 = vpop.f32.mrb[0].mxu0
        %v1616 = vadd.f32 0.0, %v1615
        %v1617 = vpop.f32.mrb[0].mxu0
        %1618 = vmatprep.mubr.f32.mxu0 0.0
        %1619 = vmatmul.mubr.f32.gmra.mrb[0].mxu0 %v1501
        %v1620 = vpop.f32.mrb[0].mxu0
        %v1621 = vadd.f32 0.0, %v1620
        %v1622 = vpop.f32.mrb[0].mxu0
        %1623 = vmatprep.mubr.f32.mxu0 0.0
        %1624 = vmatmul.mubr.f32.gmra.mrb[0].mxu0 %v1504
        %v1625 = vpop.f32.mrb[0].mxu0
        %v1626 = vadd.f32 0.0, %v1625
        %v1627 = vpop.f32.mrb[0].mxu0
        %1628 = vmatprep.mubr.f32.mxu0 0.0
        %1629 = vmatmul.mubr.f32.gmra.mrb[0].mxu0 %v1507
        %v1630 = vpop.f32.mrb[0].mxu0
        %v1631 = vadd.f32 0.0, %v1630
        %v1632 = vpop.f32.mrb[0].mxu0
        %1633 = vmatprep.mubr.f32.mxu0 0.0
        %1634 = vmatmul.mubr.f32.gmra.mrb[0].mxu0 %v1510
        %v1635 = vpop.f32.mrb[0].mxu0
        %v1636 = vadd.f32 0.0, %v1635
        %v1637 = vpop.f32.mrb[0].mxu0
        %1638 = vmatprep.mubr.f32.mxu0 0.0
        %1639 = vmatmul.mubr.f32.gmra.mrb[0].mxu0 %v1513
        %v1640 = vpop.f32.mrb[0].mxu0
        %v1641 = vadd.f32 0.0, %v1640
        %v1642 = vpop.f32.mrb[0].mxu0
        %1643 = vmatprep.mubr.f32.mxu0 0.0
        %1644 = vmatmul.mubr.f32.gmra.mrb[0].mxu0 %v1516
        %v1645 = vpop.f32.mrb[0].mxu0
        %v1646 = vadd.f32 0.0, %v1645
        %v1647 = vpop.f32.mrb[0].mxu0
        %1648 = vmatprep.mubr.f32.mxu0 0.0
        %1649 = vmatmul.mubr.f32.gmra.mrb[0].mxu0 %v1519
        %v1650 = vpop.f32.mrb[0].mxu0
        %v1651 = vadd.f32 0.0, %v1650
        %v1652 = vpop.f32.mrb[0].mxu0
        %1653 = vmatprep.mubr.f32.mxu0 0.0
        %1654 = vmatmul.mubr.f32.gmra.mrb[0].mxu0 %v1522
        %v1655 = vpop.f32.mrb[0].mxu0
        %v1656 = vadd.f32 0.0, %v1655
        %v1657 = vpop.f32.mrb[0].mxu0
        %1658 = vmatprep.mubr.f32.mxu0 0.0
        %1659 = vmatmul.mubr.f32.gmra.mrb[0].mxu0 %v1525
        %v1660 = vpop.f32.mrb[0].mxu0
        %v1661 = vadd.f32 0.0, %v1660
        %v1662 = vpop.f32.mrb[0].mxu0
        %1663 = vmatprep.mubr.f32.mxu0 0.0
        %1664 = vmatmul.mubr.f32.gmra.mrb[0].mxu0 %v1528
        %v1665 = vpop.f32.mrb[0].mxu0
        %v1666 = vadd.f32 0.0, %v1665
        %v1667 = vpop.f32.mrb[0].mxu0
        %1668 = vmatprep.mubr.f32.mxu0 0.0
        %1669 = vmatmul.mubr.f32.gmra.mrb[0].mxu0 %v1531
        %v1670 = vpop.f32.mrb[0].mxu0
        %v1671 = vadd.f32 0.0, %v1670
        %v1672 = vpop.f32.mrb[0].mxu0
        %1673 = vmatprep.mubr.f32.mxu0 0.0
        %1674 = vmatmul.mubr.f32.gmra.mrb[0].mxu0 %v1534
        %v1675 = vpop.f32.mrb[0].mxu0
        %v1676 = vadd.f32 0.0, %v1675
        %v1677 = vpop.f32.mrb[0].mxu0
        %1678 = vmatprep.mubr.f32.mxu0 0.0
        %1679 = vmatmul.mubr.f32.gmra.mrb[0].mxu0 %v1537
        %v1680 = vpop.f32.mrb[0].mxu0
        %v1681 = vadd.f32 0.0, %v1680
        %v1682 = vpop.f32.mrb[0].mxu0
        %1683 = vdwg.mxu0
        %v1684 = vadd.f32 %v1341, %v1606
        %v1685 = vadd.f32 %v1342, %v1611
        %v1686 = vadd.f32 %v1343, %v1616
        %v1687 = vadd.f32 %v1344, %v1621
        %v1688 = vadd.f32 %v1345, %v1626
        %v1689 = vadd.f32 %v1346, %v1631
        %v1690 = vadd.f32 %v1347, %v1636
        %v1691 = vadd.f32 %v1348, %v1641
        %v1692 = vadd.f32 %v1349, %v1646
        %v1693 = vadd.f32 %v1350, %v1651
        %v1694 = vadd.f32 %v1351, %v1656
        %v1695 = vadd.f32 %v1352, %v1661
        %v1696 = vadd.f32 %v1353, %v1666
        %v1697 = vadd.f32 %v1354, %v1671
        %v1698 = vadd.f32 %v1355, %v1676
        %v1699 = vadd.f32 %v1356, %v1681
        %v1700 = vld [vmem:[#allocation2 + $0x10] sm:$0xff]
        %v1701 = vld [vmem:[#allocation2 + $0x18] sm:$0xff]
        %v1702 = vld [vmem:[#allocation2 + $0x20] sm:$0xff]
        %v1703 = vld [vmem:[#allocation2 + $0x28] sm:$0xff]
        %v1704 = vld [vmem:[#allocation2 + $0x30] sm:$0xff]
        %v1705 = vld [vmem:[#allocation2 + $0x38] sm:$0xff]
        %v1706 = vld [vmem:[#allocation2 + $0x40] sm:$0xff]
        %v1707 = vld [vmem:[#allocation2 + $0x48] sm:$0xff]
        %v1708 = vld [vmem:[#allocation2 + $0x50] sm:$0xff]
        %v1709 = vld [vmem:[#allocation2 + $0x58] sm:$0xff]
        %v1710 = vld [vmem:[#allocation2 + $0x60] sm:$0xff]
        %v1711 = vld [vmem:[#allocation2 + $0x68] sm:$0xff]
        %v1712 = vld [vmem:[#allocation2 + $0x70] sm:$0xff]
        %v1713 = vld [vmem:[#allocation2 + $0x78] sm:$0xff]
        %v1714 = vld [vmem:[#allocation2 + $0x80] sm:$0xff]
        %v1715 = vld [vmem:[#allocation2 + $0x88] sm:$0xff]
        %s1716 = scalar_lea.vmem %s4, 512
        %v1717 = vld [vmem:[%s1716] sm:$0xff]
        %v1718 = vld [vmem:[%s1716 + $0x8] sm:$0xff]
        %v1719 = vld [vmem:[%s1716 + $0x10] sm:$0xff]
        %v1720 = vld [vmem:[%s1716 + $0x18] sm:$0xff]
        %v1721 = vld [vmem:[%s1716 + $0x20] sm:$0xff]
        %v1722 = vld [vmem:[%s1716 + $0x28] sm:$0xff]
        %v1723 = vld [vmem:[%s1716 + $0x30] sm:$0xff]
        %v1724 = vld [vmem:[%s1716 + $0x38] sm:$0xff]
        %v1725 = vld [vmem:[%s1716 + $0x40] sm:$0xff]
        %v1726 = vld [vmem:[%s1716 + $0x48] sm:$0xff]
        %v1727 = vld [vmem:[%s1716 + $0x50] sm:$0xff]
        %v1728 = vld [vmem:[%s1716 + $0x58] sm:$0xff]
        %v1729 = vld [vmem:[%s1716 + $0x60] sm:$0xff]
        %v1730 = vld [vmem:[%s1716 + $0x68] sm:$0xff]
        %v1731 = vld [vmem:[%s1716 + $0x70] sm:$0xff]
        %v1732 = vld [vmem:[%s1716 + $0x78] sm:$0xff]
        %1734 = vset.pattern.permute.xlu0 0
        %1735 = vperm.xlu0 %1734, %v1717
        %v1736 = vpop.permute.xlu0 %1735
        %1739 = vset.pattern.permute.xlu0 0
        %1740 = vperm.xlu0 %1739, %v1718
        %v1741 = vpop.permute.xlu0 %1740
        %1744 = vset.pattern.permute.xlu0 0
        %1745 = vperm.xlu0 %1744, %v1719
        %v1746 = vpop.permute.xlu0 %1745
        %1749 = vset.pattern.permute.xlu0 0
        %1750 = vperm.xlu0 %1749, %v1720
        %v1751 = vpop.permute.xlu0 %1750
        %1754 = vset.pattern.permute.xlu0 0
        %1755 = vperm.xlu0 %1754, %v1721
        %v1756 = vpop.permute.xlu0 %1755
        %1759 = vset.pattern.permute.xlu0 0
        %1760 = vperm.xlu0 %1759, %v1722
        %v1761 = vpop.permute.xlu0 %1760
        %1764 = vset.pattern.permute.xlu0 0
        %1765 = vperm.xlu0 %1764, %v1723
        %v1766 = vpop.permute.xlu0 %1765
        %1769 = vset.pattern.permute.xlu0 0
        %1770 = vperm.xlu0 %1769, %v1724
        %v1771 = vpop.permute.xlu0 %1770
        %1774 = vset.pattern.permute.xlu0 0
        %1775 = vperm.xlu0 %1774, %v1725
        %v1776 = vpop.permute.xlu0 %1775
        %1779 = vset.pattern.permute.xlu0 0
        %1780 = vperm.xlu0 %1779, %v1726
        %v1781 = vpop.permute.xlu0 %1780
        %1784 = vset.pattern.permute.xlu0 0
        %1785 = vperm.xlu0 %1784, %v1727
        %v1786 = vpop.permute.xlu0 %1785
        %1789 = vset.pattern.permute.xlu0 0
        %1790 = vperm.xlu0 %1789, %v1728
        %v1791 = vpop.permute.xlu0 %1790
        %1794 = vset.pattern.permute.xlu0 0
        %1795 = vperm.xlu0 %1794, %v1729
        %v1796 = vpop.permute.xlu0 %1795
        %1799 = vset.pattern.permute.xlu0 0
        %1800 = vperm.xlu0 %1799, %v1730
        %v1801 = vpop.permute.xlu0 %1800
        %1804 = vset.pattern.permute.xlu0 0
        %1805 = vperm.xlu0 %1804, %v1731
        %v1806 = vpop.permute.xlu0 %1805
        %1809 = vset.pattern.permute.xlu0 0
        %1810 = vperm.xlu0 %1809, %v1732
        %v1811 = vpop.permute.xlu0 %1810
        %v1813 = vmul.f32 %v1700, %v1736
        %v1814 = vmul.f32 %v1701, %v1741
        %v1815 = vmul.f32 %v1702, %v1746
        %v1816 = vmul.f32 %v1703, %v1751
        %v1817 = vmul.f32 %v1704, %v1756
        %v1818 = vmul.f32 %v1705, %v1761
        %v1819 = vmul.f32 %v1706, %v1766
        %v1820 = vmul.f32 %v1707, %v1771
        %v1821 = vmul.f32 %v1708, %v1776
        %v1822 = vmul.f32 %v1709, %v1781
        %v1823 = vmul.f32 %v1710, %v1786
        %v1824 = vmul.f32 %v1711, %v1791
        %v1825 = vmul.f32 %v1712, %v1796
        %v1826 = vmul.f32 %v1713, %v1801
        %v1827 = vmul.f32 %v1714, %v1806
        %v1828 = vmul.f32 %v1715, %v1811
        %s1829 = scalar_lea.vmem %s232, 128
        %v1830 = vld [vmem:[%s1829] sm:$0xff]
        %v1831 = vld [vmem:[%s1829 + $0x8] sm:$0xff]
        %v1832 = vld [vmem:[%s1829 + $0x10] sm:$0xff]
        %v1833 = vld [vmem:[%s1829 + $0x18] sm:$0xff]
        %v1835 = vsel %vm627, %v1813, 0
        %v1838 = vsel %vm627, %v1814, 0
        %v1841 = vsel %vm627, %v1815, 0
        %v1844 = vsel %vm627, %v1816, 0
        %v1847 = vsel %vm627, %v1817, 0
        %v1850 = vsel %vm627, %v1818, 0
        %v1853 = vsel %vm627, %v1819, 0
        %v1856 = vsel %vm627, %v1820, 0
        %v1859 = vsel %vm627, %v1821, 0
        %v1862 = vsel %vm627, %v1822, 0
        %v1865 = vsel %vm627, %v1823, 0
        %v1868 = vsel %vm627, %v1824, 0
        %v1871 = vsel %vm627, %v1825, 0
        %v1874 = vsel %vm627, %v1826, 0
        %v1877 = vsel %vm627, %v1827, 0
        %v1880 = vsel %vm627, %v1828, 0
        %1882 = vmatprep.subr.mxu0 0.0
        %1883 = vmatpush1.msra.mxu0 %v1830
        %1884 = vmatprep.subr.mxu0 0.0
        %1885 = vmatpush1.msra.mxu0 %v1831
        %1886 = vmatprep.subr.mxu0 0.0
        %1887 = vmatpush1.msra.mxu0 %v1832
        %1888 = vmatprep.subr.mxu0 0.0
        %1889 = vmatpush1.msra.mxu0 %v1833
        %1890 = vmatprep.subr.mxu0 0.0
        %1891 = vmatpush1.msra.mxu0 0.0
        %1892 = vmatprep.subr.mxu0 0.0
        %1893 = vmatpush1.msra.mxu0 0.0
        %1894 = vmatprep.subr.mxu0 0.0
        %1895 = vmatpush1.msra.mxu0 0.0
        %1896 = vmatprep.subr.mxu0 0.0
        %1897 = vmatpush1.msra.mxu0 0.0
        %1898 = vmatprep.subr.mxu0 0.0
        %1899 = vmatpush1.msra.mxu0 0.0
        %1900 = vmatprep.subr.mxu0 0.0
        %1901 = vmatpush1.msra.mxu0 0.0
        %1902 = vmatprep.subr.mxu0 0.0
        %1903 = vmatpush1.msra.mxu0 0.0
        %1904 = vmatprep.subr.mxu0 0.0
        %1905 = vmatpush1.msra.mxu0 0.0
        %1906 = vmatprep.subr.mxu0 0.0
        %1907 = vmatpush1.msra.mxu0 0.0
        %1908 = vmatprep.subr.mxu0 0.0
        %1909 = vmatpush1.msra.mxu0 0.0
        %1910 = vmatprep.subr.mxu0 0.0
        %1911 = vmatpush1.msra.mxu0 0.0
        %1912 = vmatprep.subr.mxu0 0.0
        %1913 = vmatpush1.msra.mxu0 0.0
        %1914 = vmatprep.subr.mxu0 0.0
        %1915 = vmatpush1.msra.mxu0 0.0
        %1916 = vmatprep.subr.mxu0 0.0
        %1917 = vmatpush1.msra.mxu0 0.0
        %1918 = vmatprep.subr.mxu0 0.0
        %1919 = vmatpush1.msra.mxu0 0.0
        %1920 = vmatprep.subr.mxu0 0.0
        %1921 = vmatpush1.msra.mxu0 0.0
        %1922 = vmatprep.subr.mxu0 0.0
        %1923 = vmatpush1.msra.mxu0 0.0
        %1924 = vmatprep.subr.mxu0 0.0
        %1925 = vmatpush1.msra.mxu0 0.0
        %1926 = vmatprep.subr.mxu0 0.0
        %1927 = vmatpush1.msra.mxu0 0.0
        %1928 = vmatprep.subr.mxu0 0.0
        %1929 = vmatpush1.msra.mxu0 0.0
        %1930 = vmatprep.subr.mxu0 0.0
        %1931 = vmatpush1.msra.mxu0 0.0
        %1932 = vmatprep.subr.mxu0 0.0
        %1933 = vmatpush1.msra.mxu0 0.0
        %1934 = vmatprep.subr.mxu0 0.0
        %1935 = vmatpush1.msra.mxu0 0.0
        %1936 = vmatprep.subr.mxu0 0.0
        %1937 = vmatpush1.msra.mxu0 0.0
        %1938 = vmatprep.subr.mxu0 0.0
        %1939 = vmatpush1.msra.mxu0 0.0
        %1940 = vmatprep.subr.mxu0 0.0
        %1941 = vmatpush1.msra.mxu0 0.0
        %1942 = vmatprep.subr.mxu0 0.0
        %1943 = vmatpush1.msra.mxu0 0.0
        %1944 = vmatprep.subr.mxu0 0.0
        %1945 = vmatpush1.msra.mxu0 0.0
        %1946 = vmatprep.mubr.f32.mxu0 0.0
        %1947 = vmatmul.mubr.f32.gmra.mrb[0].mxu0 %v1835
        %v1948 = vpop.f32.mrb[0].mxu0
        %v1949 = vadd.f32 0.0, %v1948
        %v1950 = vpop.f32.mrb[0].mxu0
        %1951 = vmatprep.mubr.f32.mxu0 0.0
        %1952 = vmatmul.mubr.f32.gmra.mrb[0].mxu0 %v1838
        %v1953 = vpop.f32.mrb[0].mxu0
        %v1954 = vadd.f32 0.0, %v1953
        %v1955 = vpop.f32.mrb[0].mxu0
        %1956 = vmatprep.mubr.f32.mxu0 0.0
        %1957 = vmatmul.mubr.f32.gmra.mrb[0].mxu0 %v1841
        %v1958 = vpop.f32.mrb[0].mxu0
        %v1959 = vadd.f32 0.0, %v1958
        %v1960 = vpop.f32.mrb[0].mxu0
        %1961 = vmatprep.mubr.f32.mxu0 0.0
        %1962 = vmatmul.mubr.f32.gmra.mrb[0].mxu0 %v1844
        %v1963 = vpop.f32.mrb[0].mxu0
        %v1964 = vadd.f32 0.0, %v1963
        %v1965 = vpop.f32.mrb[0].mxu0
        %1966 = vmatprep.mubr.f32.mxu0 0.0
        %1967 = vmatmul.mubr.f32.gmra.mrb[0].mxu0 %v1847
        %v1968 = vpop.f32.mrb[0].mxu0
        %v1969 = vadd.f32 0.0, %v1968
        %v1970 = vpop.f32.mrb[0].mxu0
        %1971 = vmatprep.mubr.f32.mxu0 0.0
        %1972 = vmatmul.mubr.f32.gmra.mrb[0].mxu0 %v1850
        %v1973 = vpop.f32.mrb[0].mxu0
        %v1974 = vadd.f32 0.0, %v1973
        %v1975 = vpop.f32.mrb[0].mxu0
        %1976 = vmatprep.mubr.f32.mxu0 0.0
        %1977 = vmatmul.mubr.f32.gmra.mrb[0].mxu0 %v1853
        %v1978 = vpop.f32.mrb[0].mxu0
        %v1979 = vadd.f32 0.0, %v1978
        %v1980 = vpop.f32.mrb[0].mxu0
        %1981 = vmatprep.mubr.f32.mxu0 0.0
        %1982 = vmatmul.mubr.f32.gmra.mrb[0].mxu0 %v1856
        %v1983 = vpop.f32.mrb[0].mxu0
        %v1984 = vadd.f32 0.0, %v1983
        %v1985 = vpop.f32.mrb[0].mxu0
        %1986 = vmatprep.mubr.f32.mxu0 0.0
        %1987 = vmatmul.mubr.f32.gmra.mrb[0].mxu0 %v1859
        %v1988 = vpop.f32.mrb[0].mxu0
        %v1989 = vadd.f32 0.0, %v1988
        %v1990 = vpop.f32.mrb[0].mxu0
        %1991 = vmatprep.mubr.f32.mxu0 0.0
        %1992 = vmatmul.mubr.f32.gmra.mrb[0].mxu0 %v1862
        %v1993 = vpop.f32.mrb[0].mxu0
        %v1994 = vadd.f32 0.0, %v1993
        %v1995 = vpop.f32.mrb[0].mxu0
        %1996 = vmatprep.mubr.f32.mxu0 0.0
        %1997 = vmatmul.mubr.f32.gmra.mrb[0].mxu0 %v1865
        %v1998 = vpop.f32.mrb[0].mxu0
        %v1999 = vadd.f32 0.0, %v1998
        %v2000 = vpop.f32.mrb[0].mxu0
        %2001 = vmatprep.mubr.f32.mxu0 0.0
        %2002 = vmatmul.mubr.f32.gmra.mrb[0].mxu0 %v1868
        %v2003 = vpop.f32.mrb[0].mxu0
        %v2004 = vadd.f32 0.0, %v2003
        %v2005 = vpop.f32.mrb[0].mxu0
        %2006 = vmatprep.mubr.f32.mxu0 0.0
        %2007 = vmatmul.mubr.f32.gmra.mrb[0].mxu0 %v1871
        %v2008 = vpop.f32.mrb[0].mxu0
        %v2009 = vadd.f32 0.0, %v2008
        %v2010 = vpop.f32.mrb[0].mxu0
        %2011 = vmatprep.mubr.f32.mxu0 0.0
        %2012 = vmatmul.mubr.f32.gmra.mrb[0].mxu0 %v1874
        %v2013 = vpop.f32.mrb[0].mxu0
        %v2014 = vadd.f32 0.0, %v2013
        %v2015 = vpop.f32.mrb[0].mxu0
        %2016 = vmatprep.mubr.f32.mxu0 0.0
        %2017 = vmatmul.mubr.f32.gmra.mrb[0].mxu0 %v1877
        %v2018 = vpop.f32.mrb[0].mxu0
        %v2019 = vadd.f32 0.0, %v2018
        %v2020 = vpop.f32.mrb[0].mxu0
        %2021 = vmatprep.mubr.f32.mxu0 0.0
        %2022 = vmatmul.mubr.f32.gmra.mrb[0].mxu0 %v1880
        %v2023 = vpop.f32.mrb[0].mxu0
        %v2024 = vadd.f32 0.0, %v2023
        %v2025 = vpop.f32.mrb[0].mxu0
        %2026 = vdwg.mxu0
        %v2027 = vadd.f32 %v1684, %v1949
        %v2028 = vadd.f32 %v1685, %v1954
        %v2029 = vadd.f32 %v1686, %v1959
        %v2030 = vadd.f32 %v1687, %v1964
        %v2031 = vadd.f32 %v1688, %v1969
        %v2032 = vadd.f32 %v1689, %v1974
        %v2033 = vadd.f32 %v1690, %v1979
        %v2034 = vadd.f32 %v1691, %v1984
        %v2035 = vadd.f32 %v1692, %v1989
        %v2036 = vadd.f32 %v1693, %v1994
        %v2037 = vadd.f32 %v1694, %v1999
        %v2038 = vadd.f32 %v1695, %v2004
        %v2039 = vadd.f32 %v1696, %v2009
        %v2040 = vadd.f32 %v1697, %v2014
        %v2041 = vadd.f32 %v1698, %v2019
        %v2042 = vadd.f32 %v1699, %v2024
        %v2043 = vld [vmem:[#allocation2 + $0x11] sm:$0xff]
        %v2044 = vld [vmem:[#allocation2 + $0x19] sm:$0xff]
        %v2045 = vld [vmem:[#allocation2 + $0x21] sm:$0xff]
        %v2046 = vld [vmem:[#allocation2 + $0x29] sm:$0xff]
        %v2047 = vld [vmem:[#allocation2 + $0x31] sm:$0xff]
        %v2048 = vld [vmem:[#allocation2 + $0x39] sm:$0xff]
        %v2049 = vld [vmem:[#allocation2 + $0x41] sm:$0xff]
        %v2050 = vld [vmem:[#allocation2 + $0x49] sm:$0xff]
        %v2051 = vld [vmem:[#allocation2 + $0x51] sm:$0xff]
        %v2052 = vld [vmem:[#allocation2 + $0x59] sm:$0xff]
        %v2053 = vld [vmem:[#allocation2 + $0x61] sm:$0xff]
        %v2054 = vld [vmem:[#allocation2 + $0x69] sm:$0xff]
        %v2055 = vld [vmem:[#allocation2 + $0x71] sm:$0xff]
        %v2056 = vld [vmem:[#allocation2 + $0x79] sm:$0xff]
        %v2057 = vld [vmem:[#allocation2 + $0x81] sm:$0xff]
        %v2058 = vld [vmem:[#allocation2 + $0x89] sm:$0xff]
        %s2059 = scalar_lea.vmem %s4, 640
        %v2060 = vld [vmem:[%s2059] sm:$0xff]
        %v2061 = vld [vmem:[%s2059 + $0x8] sm:$0xff]
        %v2062 = vld [vmem:[%s2059 + $0x10] sm:$0xff]
        %v2063 = vld [vmem:[%s2059 + $0x18] sm:$0xff]
        %v2064 = vld [vmem:[%s2059 + $0x20] sm:$0xff]
        %v2065 = vld [vmem:[%s2059 + $0x28] sm:$0xff]
        %v2066 = vld [vmem:[%s2059 + $0x30] sm:$0xff]
        %v2067 = vld [vmem:[%s2059 + $0x38] sm:$0xff]
        %v2068 = vld [vmem:[%s2059 + $0x40] sm:$0xff]
        %v2069 = vld [vmem:[%s2059 + $0x48] sm:$0xff]
        %v2070 = vld [vmem:[%s2059 + $0x50] sm:$0xff]
        %v2071 = vld [vmem:[%s2059 + $0x58] sm:$0xff]
        %v2072 = vld [vmem:[%s2059 + $0x60] sm:$0xff]
        %v2073 = vld [vmem:[%s2059 + $0x68] sm:$0xff]
        %v2074 = vld [vmem:[%s2059 + $0x70] sm:$0xff]
        %v2075 = vld [vmem:[%s2059 + $0x78] sm:$0xff]
        %2077 = vset.pattern.permute.xlu0 0
        %2078 = vperm.xlu0 %2077, %v2060
        %v2079 = vpop.permute.xlu0 %2078
        %2082 = vset.pattern.permute.xlu0 0
        %2083 = vperm.xlu0 %2082, %v2061
        %v2084 = vpop.permute.xlu0 %2083
        %2087 = vset.pattern.permute.xlu0 0
        %2088 = vperm.xlu0 %2087, %v2062
        %v2089 = vpop.permute.xlu0 %2088
        %2092 = vset.pattern.permute.xlu0 0
        %2093 = vperm.xlu0 %2092, %v2063
        %v2094 = vpop.permute.xlu0 %2093
        %2097 = vset.pattern.permute.xlu0 0
        %2098 = vperm.xlu0 %2097, %v2064
        %v2099 = vpop.permute.xlu0 %2098
        %2102 = vset.pattern.permute.xlu0 0
        %2103 = vperm.xlu0 %2102, %v2065
        %v2104 = vpop.permute.xlu0 %2103
        %2107 = vset.pattern.permute.xlu0 0
        %2108 = vperm.xlu0 %2107, %v2066
        %v2109 = vpop.permute.xlu0 %2108
        %2112 = vset.pattern.permute.xlu0 0
        %2113 = vperm.xlu0 %2112, %v2067
        %v2114 = vpop.permute.xlu0 %2113
        %2117 = vset.pattern.permute.xlu0 0
        %2118 = vperm.xlu0 %2117, %v2068
        %v2119 = vpop.permute.xlu0 %2118
        %2122 = vset.pattern.permute.xlu0 0
        %2123 = vperm.xlu0 %2122, %v2069
        %v2124 = vpop.permute.xlu0 %2123
        %2127 = vset.pattern.permute.xlu0 0
        %2128 = vperm.xlu0 %2127, %v2070
        %v2129 = vpop.permute.xlu0 %2128
        %2132 = vset.pattern.permute.xlu0 0
        %2133 = vperm.xlu0 %2132, %v2071
        %v2134 = vpop.permute.xlu0 %2133
        %2137 = vset.pattern.permute.xlu0 0
        %2138 = vperm.xlu0 %2137, %v2072
        %v2139 = vpop.permute.xlu0 %2138
        %2142 = vset.pattern.permute.xlu0 0
        %2143 = vperm.xlu0 %2142, %v2073
        %v2144 = vpop.permute.xlu0 %2143
        %2147 = vset.pattern.permute.xlu0 0
        %2148 = vperm.xlu0 %2147, %v2074
        %v2149 = vpop.permute.xlu0 %2148
        %2152 = vset.pattern.permute.xlu0 0
        %2153 = vperm.xlu0 %2152, %v2075
        %v2154 = vpop.permute.xlu0 %2153
        %v2156 = vmul.f32 %v2043, %v2079
        %v2157 = vmul.f32 %v2044, %v2084
        %v2158 = vmul.f32 %v2045, %v2089
        %v2159 = vmul.f32 %v2046, %v2094
        %v2160 = vmul.f32 %v2047, %v2099
        %v2161 = vmul.f32 %v2048, %v2104
        %v2162 = vmul.f32 %v2049, %v2109
        %v2163 = vmul.f32 %v2050, %v2114
        %v2164 = vmul.f32 %v2051, %v2119
        %v2165 = vmul.f32 %v2052, %v2124
        %v2166 = vmul.f32 %v2053, %v2129
        %v2167 = vmul.f32 %v2054, %v2134
        %v2168 = vmul.f32 %v2055, %v2139
        %v2169 = vmul.f32 %v2056, %v2144
        %v2170 = vmul.f32 %v2057, %v2149
        %v2171 = vmul.f32 %v2058, %v2154
        %s2172 = scalar_lea.vmem %s232, 160
        %v2173 = vld [vmem:[%s2172] sm:$0xff]
        %v2174 = vld [vmem:[%s2172 + $0x8] sm:$0xff]
        %v2175 = vld [vmem:[%s2172 + $0x10] sm:$0xff]
        %v2176 = vld [vmem:[%s2172 + $0x18] sm:$0xff]
        %v2178 = vsel %vm627, %v2156, 0
        %v2181 = vsel %vm627, %v2157, 0
        %v2184 = vsel %vm627, %v2158, 0
        %v2187 = vsel %vm627, %v2159, 0
        %v2190 = vsel %vm627, %v2160, 0
        %v2193 = vsel %vm627, %v2161, 0
        %v2196 = vsel %vm627, %v2162, 0
        %v2199 = vsel %vm627, %v2163, 0
        %v2202 = vsel %vm627, %v2164, 0
        %v2205 = vsel %vm627, %v2165, 0
        %v2208 = vsel %vm627, %v2166, 0
        %v2211 = vsel %vm627, %v2167, 0
        %v2214 = vsel %vm627, %v2168, 0
        %v2217 = vsel %vm627, %v2169, 0
        %v2220 = vsel %vm627, %v2170, 0
        %v2223 = vsel %vm627, %v2171, 0
        %2225 = vmatprep.subr.mxu0 0.0
        %2226 = vmatpush1.msra.mxu0 %v2173
        %2227 = vmatprep.subr.mxu0 0.0
        %2228 = vmatpush1.msra.mxu0 %v2174
        %2229 = vmatprep.subr.mxu0 0.0
        %2230 = vmatpush1.msra.mxu0 %v2175
        %2231 = vmatprep.subr.mxu0 0.0
        %2232 = vmatpush1.msra.mxu0 %v2176
        %2233 = vmatprep.subr.mxu0 0.0
        %2234 = vmatpush1.msra.mxu0 0.0
        %2235 = vmatprep.subr.mxu0 0.0
        %2236 = vmatpush1.msra.mxu0 0.0
        %2237 = vmatprep.subr.mxu0 0.0
        %2238 = vmatpush1.msra.mxu0 0.0
        %2239 = vmatprep.subr.mxu0 0.0
        %2240 = vmatpush1.msra.mxu0 0.0
        %2241 = vmatprep.subr.mxu0 0.0
        %2242 = vmatpush1.msra.mxu0 0.0
        %2243 = vmatprep.subr.mxu0 0.0
        %2244 = vmatpush1.msra.mxu0 0.0
        %2245 = vmatprep.subr.mxu0 0.0
        %2246 = vmatpush1.msra.mxu0 0.0
        %2247 = vmatprep.subr.mxu0 0.0
        %2248 = vmatpush1.msra.mxu0 0.0
        %2249 = vmatprep.subr.mxu0 0.0
        %2250 = vmatpush1.msra.mxu0 0.0
        %2251 = vmatprep.subr.mxu0 0.0
        %2252 = vmatpush1.msra.mxu0 0.0
        %2253 = vmatprep.subr.mxu0 0.0
        %2254 = vmatpush1.msra.mxu0 0.0
        %2255 = vmatprep.subr.mxu0 0.0
        %2256 = vmatpush1.msra.mxu0 0.0
        %2257 = vmatprep.subr.mxu0 0.0
        %2258 = vmatpush1.msra.mxu0 0.0
        %2259 = vmatprep.subr.mxu0 0.0
        %2260 = vmatpush1.msra.mxu0 0.0
        %2261 = vmatprep.subr.mxu0 0.0
        %2262 = vmatpush1.msra.mxu0 0.0
        %2263 = vmatprep.subr.mxu0 0.0
        %2264 = vmatpush1.msra.mxu0 0.0
        %2265 = vmatprep.subr.mxu0 0.0
        %2266 = vmatpush1.msra.mxu0 0.0
        %2267 = vmatprep.subr.mxu0 0.0
        %2268 = vmatpush1.msra.mxu0 0.0
        %2269 = vmatprep.subr.mxu0 0.0
        %2270 = vmatpush1.msra.mxu0 0.0
        %2271 = vmatprep.subr.mxu0 0.0
        %2272 = vmatpush1.msra.mxu0 0.0
        %2273 = vmatprep.subr.mxu0 0.0
        %2274 = vmatpush1.msra.mxu0 0.0
        %2275 = vmatprep.subr.mxu0 0.0
        %2276 = vmatpush1.msra.mxu0 0.0
        %2277 = vmatprep.subr.mxu0 0.0
        %2278 = vmatpush1.msra.mxu0 0.0
        %2279 = vmatprep.subr.mxu0 0.0
        %2280 = vmatpush1.msra.mxu0 0.0
        %2281 = vmatprep.subr.mxu0 0.0
        %2282 = vmatpush1.msra.mxu0 0.0
        %2283 = vmatprep.subr.mxu0 0.0
        %2284 = vmatpush1.msra.mxu0 0.0
        %2285 = vmatprep.subr.mxu0 0.0
        %2286 = vmatpush1.msra.mxu0 0.0
        %2287 = vmatprep.subr.mxu0 0.0
        %2288 = vmatpush1.msra.mxu0 0.0
        %2289 = vmatprep.mubr.f32.mxu0 0.0
        %2290 = vmatmul.mubr.f32.gmra.mrb[0].mxu0 %v2178
        %v2291 = vpop.f32.mrb[0].mxu0
        %v2292 = vadd.f32 0.0, %v2291
        %v2293 = vpop.f32.mrb[0].mxu0
        %2294 = vmatprep.mubr.f32.mxu0 0.0
        %2295 = vmatmul.mubr.f32.gmra.mrb[0].mxu0 %v2181
        %v2296 = vpop.f32.mrb[0].mxu0
        %v2297 = vadd.f32 0.0, %v2296
        %v2298 = vpop.f32.mrb[0].mxu0
        %2299 = vmatprep.mubr.f32.mxu0 0.0
        %2300 = vmatmul.mubr.f32.gmra.mrb[0].mxu0 %v2184
        %v2301 = vpop.f32.mrb[0].mxu0
        %v2302 = vadd.f32 0.0, %v2301
        %v2303 = vpop.f32.mrb[0].mxu0
        %2304 = vmatprep.mubr.f32.mxu0 0.0
        %2305 = vmatmul.mubr.f32.gmra.mrb[0].mxu0 %v2187
        %v2306 = vpop.f32.mrb[0].mxu0
        %v2307 = vadd.f32 0.0, %v2306
        %v2308 = vpop.f32.mrb[0].mxu0
        %2309 = vmatprep.mubr.f32.mxu0 0.0
        %2310 = vmatmul.mubr.f32.gmra.mrb[0].mxu0 %v2190
        %v2311 = vpop.f32.mrb[0].mxu0
        %v2312 = vadd.f32 0.0, %v2311
        %v2313 = vpop.f32.mrb[0].mxu0
        %2314 = vmatprep.mubr.f32.mxu0 0.0
        %2315 = vmatmul.mubr.f32.gmra.mrb[0].mxu0 %v2193
        %v2316 = vpop.f32.mrb[0].mxu0
        %v2317 = vadd.f32 0.0, %v2316
        %v2318 = vpop.f32.mrb[0].mxu0
        %2319 = vmatprep.mubr.f32.mxu0 0.0
        %2320 = vmatmul.mubr.f32.gmra.mrb[0].mxu0 %v2196
        %v2321 = vpop.f32.mrb[0].mxu0
        %v2322 = vadd.f32 0.0, %v2321
        %v2323 = vpop.f32.mrb[0].mxu0
        %2324 = vmatprep.mubr.f32.mxu0 0.0
        %2325 = vmatmul.mubr.f32.gmra.mrb[0].mxu0 %v2199
        %v2326 = vpop.f32.mrb[0].mxu0
        %v2327 = vadd.f32 0.0, %v2326
        %v2328 = vpop.f32.mrb[0].mxu0
        %2329 = vmatprep.mubr.f32.mxu0 0.0
        %2330 = vmatmul.mubr.f32.gmra.mrb[0].mxu0 %v2202
        %v2331 = vpop.f32.mrb[0].mxu0
        %v2332 = vadd.f32 0.0, %v2331
        %v2333 = vpop.f32.mrb[0].mxu0
        %2334 = vmatprep.mubr.f32.mxu0 0.0
        %2335 = vmatmul.mubr.f32.gmra.mrb[0].mxu0 %v2205
        %v2336 = vpop.f32.mrb[0].mxu0
        %v2337 = vadd.f32 0.0, %v2336
        %v2338 = vpop.f32.mrb[0].mxu0
        %2339 = vmatprep.mubr.f32.mxu0 0.0
        %2340 = vmatmul.mubr.f32.gmra.mrb[0].mxu0 %v2208
        %v2341 = vpop.f32.mrb[0].mxu0
        %v2342 = vadd.f32 0.0, %v2341
        %v2343 = vpop.f32.mrb[0].mxu0
        %2344 = vmatprep.mubr.f32.mxu0 0.0
        %2345 = vmatmul.mubr.f32.gmra.mrb[0].mxu0 %v2211
        %v2346 = vpop.f32.mrb[0].mxu0
        %v2347 = vadd.f32 0.0, %v2346
        %v2348 = vpop.f32.mrb[0].mxu0
        %2349 = vmatprep.mubr.f32.mxu0 0.0
        %2350 = vmatmul.mubr.f32.gmra.mrb[0].mxu0 %v2214
        %v2351 = vpop.f32.mrb[0].mxu0
        %v2352 = vadd.f32 0.0, %v2351
        %v2353 = vpop.f32.mrb[0].mxu0
        %2354 = vmatprep.mubr.f32.mxu0 0.0
        %2355 = vmatmul.mubr.f32.gmra.mrb[0].mxu0 %v2217
        %v2356 = vpop.f32.mrb[0].mxu0
        %v2357 = vadd.f32 0.0, %v2356
        %v2358 = vpop.f32.mrb[0].mxu0
        %2359 = vmatprep.mubr.f32.mxu0 0.0
        %2360 = vmatmul.mubr.f32.gmra.mrb[0].mxu0 %v2220
        %v2361 = vpop.f32.mrb[0].mxu0
        %v2362 = vadd.f32 0.0, %v2361
        %v2363 = vpop.f32.mrb[0].mxu0
        %2364 = vmatprep.mubr.f32.mxu0 0.0
        %2365 = vmatmul.mubr.f32.gmra.mrb[0].mxu0 %v2223
        %v2366 = vpop.f32.mrb[0].mxu0
        %v2367 = vadd.f32 0.0, %v2366
        %v2368 = vpop.f32.mrb[0].mxu0
        %2369 = vdwg.mxu0
        %v2370 = vadd.f32 %v2027, %v2292
        %v2371 = vadd.f32 %v2028, %v2297
        %v2372 = vadd.f32 %v2029, %v2302
        %v2373 = vadd.f32 %v2030, %v2307
        %v2374 = vadd.f32 %v2031, %v2312
        %v2375 = vadd.f32 %v2032, %v2317
        %v2376 = vadd.f32 %v2033, %v2322
        %v2377 = vadd.f32 %v2034, %v2327
        %v2378 = vadd.f32 %v2035, %v2332
        %v2379 = vadd.f32 %v2036, %v2337
        %v2380 = vadd.f32 %v2037, %v2342
        %v2381 = vadd.f32 %v2038, %v2347
        %v2382 = vadd.f32 %v2039, %v2352
        %v2383 = vadd.f32 %v2040, %v2357
        %v2384 = vadd.f32 %v2041, %v2362
        %v2385 = vadd.f32 %v2042, %v2367
        %v2386 = vld [vmem:[#allocation2 + $0x17] sm:$0xff]
        %v2387 = vld [vmem:[#allocation2 + $0x1f] sm:$0xff]
        %v2388 = vld [vmem:[#allocation2 + $0x27] sm:$0xff]
        %v2389 = vld [vmem:[#allocation2 + $0x2f] sm:$0xff]
        %v2390 = vld [vmem:[#allocation2 + $0x37] sm:$0xff]
        %v2391 = vld [vmem:[#allocation2 + $0x3f] sm:$0xff]
        %v2392 = vld [vmem:[#allocation2 + $0x47] sm:$0xff]
        %v2393 = vld [vmem:[#allocation2 + $0x4f] sm:$0xff]
        %v2394 = vld [vmem:[#allocation2 + $0x57] sm:$0xff]
        %v2395 = vld [vmem:[#allocation2 + $0x5f] sm:$0xff]
        %v2396 = vld [vmem:[#allocation2 + $0x67] sm:$0xff]
        %v2397 = vld [vmem:[#allocation2 + $0x6f] sm:$0xff]
        %v2398 = vld [vmem:[#allocation2 + $0x77] sm:$0xff]
        %v2399 = vld [vmem:[#allocation2 + $0x7f] sm:$0xff]
        %v2400 = vld [vmem:[#allocation2 + $0x87] sm:$0xff]
        %v2401 = vld [vmem:[#allocation2 + $0x8f] sm:$0xff]
        %s2402 = scalar_lea.vmem %s4, 768
        %v2403 = vld [vmem:[%s2402] sm:$0xff]
        %v2404 = vld [vmem:[%s2402 + $0x8] sm:$0xff]
        %v2405 = vld [vmem:[%s2402 + $0x10] sm:$0xff]
        %v2406 = vld [vmem:[%s2402 + $0x18] sm:$0xff]
        %v2407 = vld [vmem:[%s2402 + $0x20] sm:$0xff]
        %v2408 = vld [vmem:[%s2402 + $0x28] sm:$0xff]
        %v2409 = vld [vmem:[%s2402 + $0x30] sm:$0xff]
        %v2410 = vld [vmem:[%s2402 + $0x38] sm:$0xff]
        %v2411 = vld [vmem:[%s2402 + $0x40] sm:$0xff]
        %v2412 = vld [vmem:[%s2402 + $0x48] sm:$0xff]
        %v2413 = vld [vmem:[%s2402 + $0x50] sm:$0xff]
        %v2414 = vld [vmem:[%s2402 + $0x58] sm:$0xff]
        %v2415 = vld [vmem:[%s2402 + $0x60] sm:$0xff]
        %v2416 = vld [vmem:[%s2402 + $0x68] sm:$0xff]
        %v2417 = vld [vmem:[%s2402 + $0x70] sm:$0xff]
        %v2418 = vld [vmem:[%s2402 + $0x78] sm:$0xff]
        %2420 = vset.pattern.permute.xlu0 0
        %2421 = vperm.xlu0 %2420, %v2403
        %v2422 = vpop.permute.xlu0 %2421
        %2425 = vset.pattern.permute.xlu0 0
        %2426 = vperm.xlu0 %2425, %v2404
        %v2427 = vpop.permute.xlu0 %2426
        %2430 = vset.pattern.permute.xlu0 0
        %2431 = vperm.xlu0 %2430, %v2405
        %v2432 = vpop.permute.xlu0 %2431
        %2435 = vset.pattern.permute.xlu0 0
        %2436 = vperm.xlu0 %2435, %v2406
        %v2437 = vpop.permute.xlu0 %2436
        %2440 = vset.pattern.permute.xlu0 0
        %2441 = vperm.xlu0 %2440, %v2407
        %v2442 = vpop.permute.xlu0 %2441
        %2445 = vset.pattern.permute.xlu0 0
        %2446 = vperm.xlu0 %2445, %v2408
        %v2447 = vpop.permute.xlu0 %2446
        %2450 = vset.pattern.permute.xlu0 0
        %2451 = vperm.xlu0 %2450, %v2409
        %v2452 = vpop.permute.xlu0 %2451
        %2455 = vset.pattern.permute.xlu0 0
        %2456 = vperm.xlu0 %2455, %v2410
        %v2457 = vpop.permute.xlu0 %2456
        %2460 = vset.pattern.permute.xlu0 0
        %2461 = vperm.xlu0 %2460, %v2411
        %v2462 = vpop.permute.xlu0 %2461
        %2465 = vset.pattern.permute.xlu0 0
        %2466 = vperm.xlu0 %2465, %v2412
        %v2467 = vpop.permute.xlu0 %2466
        %2470 = vset.pattern.permute.xlu0 0
        %2471 = vperm.xlu0 %2470, %v2413
        %v2472 = vpop.permute.xlu0 %2471
        %2475 = vset.pattern.permute.xlu0 0
        %2476 = vperm.xlu0 %2475, %v2414
        %v2477 = vpop.permute.xlu0 %2476
        %2480 = vset.pattern.permute.xlu0 0
        %2481 = vperm.xlu0 %2480, %v2415
        %v2482 = vpop.permute.xlu0 %2481
        %2485 = vset.pattern.permute.xlu0 0
        %2486 = vperm.xlu0 %2485, %v2416
        %v2487 = vpop.permute.xlu0 %2486
        %2490 = vset.pattern.permute.xlu0 0
        %2491 = vperm.xlu0 %2490, %v2417
        %v2492 = vpop.permute.xlu0 %2491
        %2495 = vset.pattern.permute.xlu0 0
        %2496 = vperm.xlu0 %2495, %v2418
        %v2497 = vpop.permute.xlu0 %2496
        %v2499 = vmul.f32 %v2386, %v2422
        %v2500 = vmul.f32 %v2387, %v2427
        %v2501 = vmul.f32 %v2388, %v2432
        %v2502 = vmul.f32 %v2389, %v2437
        %v2503 = vmul.f32 %v2390, %v2442
        %v2504 = vmul.f32 %v2391, %v2447
        %v2505 = vmul.f32 %v2392, %v2452
        %v2506 = vmul.f32 %v2393, %v2457
        %v2507 = vmul.f32 %v2394, %v2462
        %v2508 = vmul.f32 %v2395, %v2467
        %v2509 = vmul.f32 %v2396, %v2472
        %v2510 = vmul.f32 %v2397, %v2477
        %v2511 = vmul.f32 %v2398, %v2482
        %v2512 = vmul.f32 %v2399, %v2487
        %v2513 = vmul.f32 %v2400, %v2492
        %v2514 = vmul.f32 %v2401, %v2497
        %s2515 = scalar_lea.vmem %s232, 192
        %v2516 = vld [vmem:[%s2515] sm:$0xff]
        %v2517 = vld [vmem:[%s2515 + $0x8] sm:$0xff]
        %v2518 = vld [vmem:[%s2515 + $0x10] sm:$0xff]
        %v2519 = vld [vmem:[%s2515 + $0x18] sm:$0xff]
        %v2521 = vsel %vm627, %v2499, 0
        %v2524 = vsel %vm627, %v2500, 0
        %v2527 = vsel %vm627, %v2501, 0
        %v2530 = vsel %vm627, %v2502, 0
        %v2533 = vsel %vm627, %v2503, 0
        %v2536 = vsel %vm627, %v2504, 0
        %v2539 = vsel %vm627, %v2505, 0
        %v2542 = vsel %vm627, %v2506, 0
        %v2545 = vsel %vm627, %v2507, 0
        %v2548 = vsel %vm627, %v2508, 0
        %v2551 = vsel %vm627, %v2509, 0
        %v2554 = vsel %vm627, %v2510, 0
        %v2557 = vsel %vm627, %v2511, 0
        %v2560 = vsel %vm627, %v2512, 0
        %v2563 = vsel %vm627, %v2513, 0
        %v2566 = vsel %vm627, %v2514, 0
        %2568 = vmatprep.subr.mxu0 0.0
        %2569 = vmatpush1.msra.mxu0 %v2516
        %2570 = vmatprep.subr.mxu0 0.0
        %2571 = vmatpush1.msra.mxu0 %v2517
        %2572 = vmatprep.subr.mxu0 0.0
        %2573 = vmatpush1.msra.mxu0 %v2518
        %2574 = vmatprep.subr.mxu0 0.0
        %2575 = vmatpush1.msra.mxu0 %v2519
        %2576 = vmatprep.subr.mxu0 0.0
        %2577 = vmatpush1.msra.mxu0 0.0
        %2578 = vmatprep.subr.mxu0 0.0
        %2579 = vmatpush1.msra.mxu0 0.0
        %2580 = vmatprep.subr.mxu0 0.0
        %2581 = vmatpush1.msra.mxu0 0.0
        %2582 = vmatprep.subr.mxu0 0.0
        %2583 = vmatpush1.msra.mxu0 0.0
        %2584 = vmatprep.subr.mxu0 0.0
        %2585 = vmatpush1.msra.mxu0 0.0
        %2586 = vmatprep.subr.mxu0 0.0
        %2587 = vmatpush1.msra.mxu0 0.0
        %2588 = vmatprep.subr.mxu0 0.0
        %2589 = vmatpush1.msra.mxu0 0.0
        %2590 = vmatprep.subr.mxu0 0.0
        %2591 = vmatpush1.msra.mxu0 0.0
        %2592 = vmatprep.subr.mxu0 0.0
        %2593 = vmatpush1.msra.mxu0 0.0
        %2594 = vmatprep.subr.mxu0 0.0
        %2595 = vmatpush1.msra.mxu0 0.0
        %2596 = vmatprep.subr.mxu0 0.0
        %2597 = vmatpush1.msra.mxu0 0.0
        %2598 = vmatprep.subr.mxu0 0.0
        %2599 = vmatpush1.msra.mxu0 0.0
        %2600 = vmatprep.subr.mxu0 0.0
        %2601 = vmatpush1.msra.mxu0 0.0
        %2602 = vmatprep.subr.mxu0 0.0
        %2603 = vmatpush1.msra.mxu0 0.0
        %2604 = vmatprep.subr.mxu0 0.0
        %2605 = vmatpush1.msra.mxu0 0.0
        %2606 = vmatprep.subr.mxu0 0.0
        %2607 = vmatpush1.msra.mxu0 0.0
        %2608 = vmatprep.subr.mxu0 0.0
        %2609 = vmatpush1.msra.mxu0 0.0
        %2610 = vmatprep.subr.mxu0 0.0
        %2611 = vmatpush1.msra.mxu0 0.0
        %2612 = vmatprep.subr.mxu0 0.0
        %2613 = vmatpush1.msra.mxu0 0.0
        %2614 = vmatprep.subr.mxu0 0.0
        %2615 = vmatpush1.msra.mxu0 0.0
        %2616 = vmatprep.subr.mxu0 0.0
        %2617 = vmatpush1.msra.mxu0 0.0
        %2618 = vmatprep.subr.mxu0 0.0
        %2619 = vmatpush1.msra.mxu0 0.0
        %2620 = vmatprep.subr.mxu0 0.0
        %2621 = vmatpush1.msra.mxu0 0.0
        %2622 = vmatprep.subr.mxu0 0.0
        %2623 = vmatpush1.msra.mxu0 0.0
        %2624 = vmatprep.subr.mxu0 0.0
        %2625 = vmatpush1.msra.mxu0 0.0
        %2626 = vmatprep.subr.mxu0 0.0
        %2627 = vmatpush1.msra.mxu0 0.0
        %2628 = vmatprep.subr.mxu0 0.0
        %2629 = vmatpush1.msra.mxu0 0.0
        %2630 = vmatprep.subr.mxu0 0.0
        %2631 = vmatpush1.msra.mxu0 0.0
        %2632 = vmatprep.mubr.f32.mxu0 0.0
        %2633 = vmatmul.mubr.f32.gmra.mrb[0].mxu0 %v2521
        %v2634 = vpop.f32.mrb[0].mxu0
        %v2635 = vadd.f32 0.0, %v2634
        %v2636 = vpop.f32.mrb[0].mxu0
        %2637 = vmatprep.mubr.f32.mxu0 0.0
        %2638 = vmatmul.mubr.f32.gmra.mrb[0].mxu0 %v2524
        %v2639 = vpop.f32.mrb[0].mxu0
        %v2640 = vadd.f32 0.0, %v2639
        %v2641 = vpop.f32.mrb[0].mxu0
        %2642 = vmatprep.mubr.f32.mxu0 0.0
        %2643 = vmatmul.mubr.f32.gmra.mrb[0].mxu0 %v2527
        %v2644 = vpop.f32.mrb[0].mxu0
        %v2645 = vadd.f32 0.0, %v2644
        %v2646 = vpop.f32.mrb[0].mxu0
        %2647 = vmatprep.mubr.f32.mxu0 0.0
        %2648 = vmatmul.mubr.f32.gmra.mrb[0].mxu0 %v2530
        %v2649 = vpop.f32.mrb[0].mxu0
        %v2650 = vadd.f32 0.0, %v2649
        %v2651 = vpop.f32.mrb[0].mxu0
        %2652 = vmatprep.mubr.f32.mxu0 0.0
        %2653 = vmatmul.mubr.f32.gmra.mrb[0].mxu0 %v2533
        %v2654 = vpop.f32.mrb[0].mxu0
        %v2655 = vadd.f32 0.0, %v2654
        %v2656 = vpop.f32.mrb[0].mxu0
        %2657 = vmatprep.mubr.f32.mxu0 0.0
        %2658 = vmatmul.mubr.f32.gmra.mrb[0].mxu0 %v2536
        %v2659 = vpop.f32.mrb[0].mxu0
        %v2660 = vadd.f32 0.0, %v2659
        %v2661 = vpop.f32.mrb[0].mxu0
        %2662 = vmatprep.mubr.f32.mxu0 0.0
        %2663 = vmatmul.mubr.f32.gmra.mrb[0].mxu0 %v2539
        %v2664 = vpop.f32.mrb[0].mxu0
        %v2665 = vadd.f32 0.0, %v2664
        %v2666 = vpop.f32.mrb[0].mxu0
        %2667 = vmatprep.mubr.f32.mxu0 0.0
        %2668 = vmatmul.mubr.f32.gmra.mrb[0].mxu0 %v2542
        %v2669 = vpop.f32.mrb[0].mxu0
        %v2670 = vadd.f32 0.0, %v2669
        %v2671 = vpop.f32.mrb[0].mxu0
        %2672 = vmatprep.mubr.f32.mxu0 0.0
        %2673 = vmatmul.mubr.f32.gmra.mrb[0].mxu0 %v2545
        %v2674 = vpop.f32.mrb[0].mxu0
        %v2675 = vadd.f32 0.0, %v2674
        %v2676 = vpop.f32.mrb[0].mxu0
        %2677 = vmatprep.mubr.f32.mxu0 0.0
        %2678 = vmatmul.mubr.f32.gmra.mrb[0].mxu0 %v2548
        %v2679 = vpop.f32.mrb[0].mxu0
        %v2680 = vadd.f32 0.0, %v2679
        %v2681 = vpop.f32.mrb[0].mxu0
        %2682 = vmatprep.mubr.f32.mxu0 0.0
        %2683 = vmatmul.mubr.f32.gmra.mrb[0].mxu0 %v2551
        %v2684 = vpop.f32.mrb[0].mxu0
        %v2685 = vadd.f32 0.0, %v2684
        %v2686 = vpop.f32.mrb[0].mxu0
        %2687 = vmatprep.mubr.f32.mxu0 0.0
        %2688 = vmatmul.mubr.f32.gmra.mrb[0].mxu0 %v2554
        %v2689 = vpop.f32.mrb[0].mxu0
        %v2690 = vadd.f32 0.0, %v2689
        %v2691 = vpop.f32.mrb[0].mxu0
        %2692 = vmatprep.mubr.f32.mxu0 0.0
        %2693 = vmatmul.mubr.f32.gmra.mrb[0].mxu0 %v2557
        %v2694 = vpop.f32.mrb[0].mxu0
        %v2695 = vadd.f32 0.0, %v2694
        %v2696 = vpop.f32.mrb[0].mxu0
        %2697 = vmatprep.mubr.f32.mxu0 0.0
        %2698 = vmatmul.mubr.f32.gmra.mrb[0].mxu0 %v2560
        %v2699 = vpop.f32.mrb[0].mxu0
        %v2700 = vadd.f32 0.0, %v2699
        %v2701 = vpop.f32.mrb[0].mxu0
        %2702 = vmatprep.mubr.f32.mxu0 0.0
        %2703 = vmatmul.mubr.f32.gmra.mrb[0].mxu0 %v2563
        %v2704 = vpop.f32.mrb[0].mxu0
        %v2705 = vadd.f32 0.0, %v2704
        %v2706 = vpop.f32.mrb[0].mxu0
        %2707 = vmatprep.mubr.f32.mxu0 0.0
        %2708 = vmatmul.mubr.f32.gmra.mrb[0].mxu0 %v2566
        %v2709 = vpop.f32.mrb[0].mxu0
        %v2710 = vadd.f32 0.0, %v2709
        %v2711 = vpop.f32.mrb[0].mxu0
        %2712 = vdwg.mxu0
        %v2713 = vadd.f32 %v2370, %v2635
        %v2714 = vadd.f32 %v2371, %v2640
        %v2715 = vadd.f32 %v2372, %v2645
        %v2716 = vadd.f32 %v2373, %v2650
        %v2717 = vadd.f32 %v2374, %v2655
        %v2718 = vadd.f32 %v2375, %v2660
        %v2719 = vadd.f32 %v2376, %v2665
        %v2720 = vadd.f32 %v2377, %v2670
        %v2721 = vadd.f32 %v2378, %v2675
        %v2722 = vadd.f32 %v2379, %v2680
        %v2723 = vadd.f32 %v2380, %v2685
        %v2724 = vadd.f32 %v2381, %v2690
        %v2725 = vadd.f32 %v2382, %v2695
        %v2726 = vadd.f32 %v2383, %v2700
        %v2727 = vadd.f32 %v2384, %v2705
        %v2728 = vadd.f32 %v2385, %v2710
        %v2729 = vld [vmem:[#allocation2 + $0x18] sm:$0xff]
        %v2730 = vld [vmem:[#allocation2 + $0x20] sm:$0xff]
        %v2731 = vld [vmem:[#allocation2 + $0x28] sm:$0xff]
        %v2732 = vld [vmem:[#allocation2 + $0x30] sm:$0xff]
        %v2733 = vld [vmem:[#allocation2 + $0x38] sm:$0xff]
        %v2734 = vld [vmem:[#allocation2 + $0x40] sm:$0xff]
        %v2735 = vld [vmem:[#allocation2 + $0x48] sm:$0xff]
        %v2736 = vld [vmem:[#allocation2 + $0x50] sm:$0xff]
        %v2737 = vld [vmem:[#allocation2 + $0x58] sm:$0xff]
        %v2738 = vld [vmem:[#allocation2 + $0x60] sm:$0xff]
        %v2739 = vld [vmem:[#allocation2 + $0x68] sm:$0xff]
        %v2740 = vld [vmem:[#allocation2 + $0x70] sm:$0xff]
        %v2741 = vld [vmem:[#allocation2 + $0x78] sm:$0xff]
        %v2742 = vld [vmem:[#allocation2 + $0x80] sm:$0xff]
        %v2743 = vld [vmem:[#allocation2 + $0x88] sm:$0xff]
        %v2744 = vld [vmem:[#allocation2 + $0x90] sm:$0xff]
        %s2745 = scalar_lea.vmem %s4, 896
        %v2746 = vld [vmem:[%s2745] sm:$0xff]
        %v2747 = vld [vmem:[%s2745 + $0x8] sm:$0xff]
        %v2748 = vld [vmem:[%s2745 + $0x10] sm:$0xff]
        %v2749 = vld [vmem:[%s2745 + $0x18] sm:$0xff]
        %v2750 = vld [vmem:[%s2745 + $0x20] sm:$0xff]
        %v2751 = vld [vmem:[%s2745 + $0x28] sm:$0xff]
        %v2752 = vld [vmem:[%s2745 + $0x30] sm:$0xff]
        %v2753 = vld [vmem:[%s2745 + $0x38] sm:$0xff]
        %v2754 = vld [vmem:[%s2745 + $0x40] sm:$0xff]
        %v2755 = vld [vmem:[%s2745 + $0x48] sm:$0xff]
        %v2756 = vld [vmem:[%s2745 + $0x50] sm:$0xff]
        %v2757 = vld [vmem:[%s2745 + $0x58] sm:$0xff]
        %v2758 = vld [vmem:[%s2745 + $0x60] sm:$0xff]
        %v2759 = vld [vmem:[%s2745 + $0x68] sm:$0xff]
        %v2760 = vld [vmem:[%s2745 + $0x70] sm:$0xff]
        %v2761 = vld [vmem:[%s2745 + $0x78] sm:$0xff]
        %2763 = vset.pattern.permute.xlu0 0
        %2764 = vperm.xlu0 %2763, %v2746
        %v2765 = vpop.permute.xlu0 %2764
        %2768 = vset.pattern.permute.xlu0 0
        %2769 = vperm.xlu0 %2768, %v2747
        %v2770 = vpop.permute.xlu0 %2769
        %2773 = vset.pattern.permute.xlu0 0
        %2774 = vperm.xlu0 %2773, %v2748
        %v2775 = vpop.permute.xlu0 %2774
        %2778 = vset.pattern.permute.xlu0 0
        %2779 = vperm.xlu0 %2778, %v2749
        %v2780 = vpop.permute.xlu0 %2779
        %2783 = vset.pattern.permute.xlu0 0
        %2784 = vperm.xlu0 %2783, %v2750
        %v2785 = vpop.permute.xlu0 %2784
        %2788 = vset.pattern.permute.xlu0 0
        %2789 = vperm.xlu0 %2788, %v2751
        %v2790 = vpop.permute.xlu0 %2789
        %2793 = vset.pattern.permute.xlu0 0
        %2794 = vperm.xlu0 %2793, %v2752
        %v2795 = vpop.permute.xlu0 %2794
        %2798 = vset.pattern.permute.xlu0 0
        %2799 = vperm.xlu0 %2798, %v2753
        %v2800 = vpop.permute.xlu0 %2799
        %2803 = vset.pattern.permute.xlu0 0
        %2804 = vperm.xlu0 %2803, %v2754
        %v2805 = vpop.permute.xlu0 %2804
        %2808 = vset.pattern.permute.xlu0 0
        %2809 = vperm.xlu0 %2808, %v2755
        %v2810 = vpop.permute.xlu0 %2809
        %2813 = vset.pattern.permute.xlu0 0
        %2814 = vperm.xlu0 %2813, %v2756
        %v2815 = vpop.permute.xlu0 %2814
        %2818 = vset.pattern.permute.xlu0 0
        %2819 = vperm.xlu0 %2818, %v2757
        %v2820 = vpop.permute.xlu0 %2819
        %2823 = vset.pattern.permute.xlu0 0
        %2824 = vperm.xlu0 %2823, %v2758
        %v2825 = vpop.permute.xlu0 %2824
        %2828 = vset.pattern.permute.xlu0 0
        %2829 = vperm.xlu0 %2828, %v2759
        %v2830 = vpop.permute.xlu0 %2829
        %2833 = vset.pattern.permute.xlu0 0
        %2834 = vperm.xlu0 %2833, %v2760
        %v2835 = vpop.permute.xlu0 %2834
        %2838 = vset.pattern.permute.xlu0 0
        %2839 = vperm.xlu0 %2838, %v2761
        %v2840 = vpop.permute.xlu0 %2839
        %v2842 = vmul.f32 %v2729, %v2765
        %v2843 = vmul.f32 %v2730, %v2770
        %v2844 = vmul.f32 %v2731, %v2775
        %v2845 = vmul.f32 %v2732, %v2780
        %v2846 = vmul.f32 %v2733, %v2785
        %v2847 = vmul.f32 %v2734, %v2790
        %v2848 = vmul.f32 %v2735, %v2795
        %v2849 = vmul.f32 %v2736, %v2800
        %v2850 = vmul.f32 %v2737, %v2805
        %v2851 = vmul.f32 %v2738, %v2810
        %v2852 = vmul.f32 %v2739, %v2815
        %v2853 = vmul.f32 %v2740, %v2820
        %v2854 = vmul.f32 %v2741, %v2825
        %v2855 = vmul.f32 %v2742, %v2830
        %v2856 = vmul.f32 %v2743, %v2835
        %v2857 = vmul.f32 %v2744, %v2840
        %s2858 = scalar_lea.vmem %s232, 224
        %v2859 = vld [vmem:[%s2858] sm:$0xff]
        %v2860 = vld [vmem:[%s2858 + $0x8] sm:$0xff]
        %v2861 = vld [vmem:[%s2858 + $0x10] sm:$0xff]
        %v2862 = vld [vmem:[%s2858 + $0x18] sm:$0xff]
        %v2864 = vsel %vm627, %v2842, 0
        %v2867 = vsel %vm627, %v2843, 0
        %v2870 = vsel %vm627, %v2844, 0
        %v2873 = vsel %vm627, %v2845, 0
        %v2876 = vsel %vm627, %v2846, 0
        %v2879 = vsel %vm627, %v2847, 0
        %v2882 = vsel %vm627, %v2848, 0
        %v2885 = vsel %vm627, %v2849, 0
        %v2888 = vsel %vm627, %v2850, 0
        %v2891 = vsel %vm627, %v2851, 0
        %v2894 = vsel %vm627, %v2852, 0
        %v2897 = vsel %vm627, %v2853, 0
        %v2900 = vsel %vm627, %v2854, 0
        %v2903 = vsel %vm627, %v2855, 0
        %v2906 = vsel %vm627, %v2856, 0
        %v2909 = vsel %vm627, %v2857, 0
        %2911 = vmatprep.subr.mxu0 0.0
        %2912 = vmatpush1.msra.mxu0 %v2859
        %2913 = vmatprep.subr.mxu0 0.0
        %2914 = vmatpush1.msra.mxu0 %v2860
        %2915 = vmatprep.subr.mxu0 0.0
        %2916 = vmatpush1.msra.mxu0 %v2861
        %2917 = vmatprep.subr.mxu0 0.0
        %2918 = vmatpush1.msra.mxu0 %v2862
        %2919 = vmatprep.subr.mxu0 0.0
        %2920 = vmatpush1.msra.mxu0 0.0
        %2921 = vmatprep.subr.mxu0 0.0
        %2922 = vmatpush1.msra.mxu0 0.0
        %2923 = vmatprep.subr.mxu0 0.0
        %2924 = vmatpush1.msra.mxu0 0.0
        %2925 = vmatprep.subr.mxu0 0.0
        %2926 = vmatpush1.msra.mxu0 0.0
        %2927 = vmatprep.subr.mxu0 0.0
        %2928 = vmatpush1.msra.mxu0 0.0
        %2929 = vmatprep.subr.mxu0 0.0
        %2930 = vmatpush1.msra.mxu0 0.0
        %2931 = vmatprep.subr.mxu0 0.0
        %2932 = vmatpush1.msra.mxu0 0.0
        %2933 = vmatprep.subr.mxu0 0.0
        %2934 = vmatpush1.msra.mxu0 0.0
        %2935 = vmatprep.subr.mxu0 0.0
        %2936 = vmatpush1.msra.mxu0 0.0
        %2937 = vmatprep.subr.mxu0 0.0
        %2938 = vmatpush1.msra.mxu0 0.0
        %2939 = vmatprep.subr.mxu0 0.0
        %2940 = vmatpush1.msra.mxu0 0.0
        %2941 = vmatprep.subr.mxu0 0.0
        %2942 = vmatpush1.msra.mxu0 0.0
        %2943 = vmatprep.subr.mxu0 0.0
        %2944 = vmatpush1.msra.mxu0 0.0
        %2945 = vmatprep.subr.mxu0 0.0
        %2946 = vmatpush1.msra.mxu0 0.0
        %2947 = vmatprep.subr.mxu0 0.0
        %2948 = vmatpush1.msra.mxu0 0.0
        %2949 = vmatprep.subr.mxu0 0.0
        %2950 = vmatpush1.msra.mxu0 0.0
        %2951 = vmatprep.subr.mxu0 0.0
        %2952 = vmatpush1.msra.mxu0 0.0
        %2953 = vmatprep.subr.mxu0 0.0
        %2954 = vmatpush1.msra.mxu0 0.0
        %2955 = vmatprep.subr.mxu0 0.0
        %2956 = vmatpush1.msra.mxu0 0.0
        %2957 = vmatprep.subr.mxu0 0.0
        %2958 = vmatpush1.msra.mxu0 0.0
        %2959 = vmatprep.subr.mxu0 0.0
        %2960 = vmatpush1.msra.mxu0 0.0
        %2961 = vmatprep.subr.mxu0 0.0
        %2962 = vmatpush1.msra.mxu0 0.0
        %2963 = vmatprep.subr.mxu0 0.0
        %2964 = vmatpush1.msra.mxu0 0.0
        %2965 = vmatprep.subr.mxu0 0.0
        %2966 = vmatpush1.msra.mxu0 0.0
        %2967 = vmatprep.subr.mxu0 0.0
        %2968 = vmatpush1.msra.mxu0 0.0
        %2969 = vmatprep.subr.mxu0 0.0
        %2970 = vmatpush1.msra.mxu0 0.0
        %2971 = vmatprep.subr.mxu0 0.0
        %2972 = vmatpush1.msra.mxu0 0.0
        %2973 = vmatprep.subr.mxu0 0.0
        %2974 = vmatpush1.msra.mxu0 0.0
        %2975 = vmatprep.mubr.f32.mxu0 0.0
        %2976 = vmatmul.mubr.f32.gmra.mrb[0].mxu0 %v2864
        %v2977 = vpop.f32.mrb[0].mxu0
        %v2978 = vadd.f32 0.0, %v2977
        %v2979 = vpop.f32.mrb[0].mxu0
        %2980 = vmatprep.mubr.f32.mxu0 0.0
        %2981 = vmatmul.mubr.f32.gmra.mrb[0].mxu0 %v2867
        %v2982 = vpop.f32.mrb[0].mxu0
        %v2983 = vadd.f32 0.0, %v2982
        %v2984 = vpop.f32.mrb[0].mxu0
        %2985 = vmatprep.mubr.f32.mxu0 0.0
        %2986 = vmatmul.mubr.f32.gmra.mrb[0].mxu0 %v2870
        %v2987 = vpop.f32.mrb[0].mxu0
        %v2988 = vadd.f32 0.0, %v2987
        %v2989 = vpop.f32.mrb[0].mxu0
        %2990 = vmatprep.mubr.f32.mxu0 0.0
        %2991 = vmatmul.mubr.f32.gmra.mrb[0].mxu0 %v2873
        %v2992 = vpop.f32.mrb[0].mxu0
        %v2993 = vadd.f32 0.0, %v2992
        %v2994 = vpop.f32.mrb[0].mxu0
        %2995 = vmatprep.mubr.f32.mxu0 0.0
        %2996 = vmatmul.mubr.f32.gmra.mrb[0].mxu0 %v2876
        %v2997 = vpop.f32.mrb[0].mxu0
        %v2998 = vadd.f32 0.0, %v2997
        %v2999 = vpop.f32.mrb[0].mxu0
        %3000 = vmatprep.mubr.f32.mxu0 0.0
        %3001 = vmatmul.mubr.f32.gmra.mrb[0].mxu0 %v2879
        %v3002 = vpop.f32.mrb[0].mxu0
        %v3003 = vadd.f32 0.0, %v3002
        %v3004 = vpop.f32.mrb[0].mxu0
        %3005 = vmatprep.mubr.f32.mxu0 0.0
        %3006 = vmatmul.mubr.f32.gmra.mrb[0].mxu0 %v2882
        %v3007 = vpop.f32.mrb[0].mxu0
        %v3008 = vadd.f32 0.0, %v3007
        %v3009 = vpop.f32.mrb[0].mxu0
        %3010 = vmatprep.mubr.f32.mxu0 0.0
        %3011 = vmatmul.mubr.f32.gmra.mrb[0].mxu0 %v2885
        %v3012 = vpop.f32.mrb[0].mxu0
        %v3013 = vadd.f32 0.0, %v3012
        %v3014 = vpop.f32.mrb[0].mxu0
        %3015 = vmatprep.mubr.f32.mxu0 0.0
        %3016 = vmatmul.mubr.f32.gmra.mrb[0].mxu0 %v2888
        %v3017 = vpop.f32.mrb[0].mxu0
        %v3018 = vadd.f32 0.0, %v3017
        %v3019 = vpop.f32.mrb[0].mxu0
        %3020 = vmatprep.mubr.f32.mxu0 0.0
        %3021 = vmatmul.mubr.f32.gmra.mrb[0].mxu0 %v2891
        %v3022 = vpop.f32.mrb[0].mxu0
        %v3023 = vadd.f32 0.0, %v3022
        %v3024 = vpop.f32.mrb[0].mxu0
        %3025 = vmatprep.mubr.f32.mxu0 0.0
        %3026 = vmatmul.mubr.f32.gmra.mrb[0].mxu0 %v2894
        %v3027 = vpop.f32.mrb[0].mxu0
        %v3028 = vadd.f32 0.0, %v3027
        %v3029 = vpop.f32.mrb[0].mxu0
        %3030 = vmatprep.mubr.f32.mxu0 0.0
        %3031 = vmatmul.mubr.f32.gmra.mrb[0].mxu0 %v2897
        %v3032 = vpop.f32.mrb[0].mxu0
        %v3033 = vadd.f32 0.0, %v3032
        %v3034 = vpop.f32.mrb[0].mxu0
        %3035 = vmatprep.mubr.f32.mxu0 0.0
        %3036 = vmatmul.mubr.f32.gmra.mrb[0].mxu0 %v2900
        %v3037 = vpop.f32.mrb[0].mxu0
        %v3038 = vadd.f32 0.0, %v3037
        %v3039 = vpop.f32.mrb[0].mxu0
        %3040 = vmatprep.mubr.f32.mxu0 0.0
        %3041 = vmatmul.mubr.f32.gmra.mrb[0].mxu0 %v2903
        %v3042 = vpop.f32.mrb[0].mxu0
        %v3043 = vadd.f32 0.0, %v3042
        %v3044 = vpop.f32.mrb[0].mxu0
        %3045 = vmatprep.mubr.f32.mxu0 0.0
        %3046 = vmatmul.mubr.f32.gmra.mrb[0].mxu0 %v2906
        %v3047 = vpop.f32.mrb[0].mxu0
        %v3048 = vadd.f32 0.0, %v3047
        %v3049 = vpop.f32.mrb[0].mxu0
        %3050 = vmatprep.mubr.f32.mxu0 0.0
        %3051 = vmatmul.mubr.f32.gmra.mrb[0].mxu0 %v2909
        %v3052 = vpop.f32.mrb[0].mxu0
        %v3053 = vadd.f32 0.0, %v3052
        %v3054 = vpop.f32.mrb[0].mxu0
        %3055 = vdwg.mxu0
        %v3056 = vadd.f32 %v2713, %v2978
        %v3057 = vadd.f32 %v2714, %v2983
        %v3058 = vadd.f32 %v2715, %v2988
        %v3059 = vadd.f32 %v2716, %v2993
        %v3060 = vadd.f32 %v2717, %v2998
        %v3061 = vadd.f32 %v2718, %v3003
        %v3062 = vadd.f32 %v2719, %v3008
        %v3063 = vadd.f32 %v2720, %v3013
        %v3064 = vadd.f32 %v2721, %v3018
        %v3065 = vadd.f32 %v2722, %v3023
        %v3066 = vadd.f32 %v2723, %v3028
        %v3067 = vadd.f32 %v2724, %v3033
        %v3068 = vadd.f32 %v2725, %v3038
        %v3069 = vadd.f32 %v2726, %v3043
        %v3070 = vadd.f32 %v2727, %v3048
        %v3071 = vadd.f32 %v2728, %v3053
        %v3072 = vld [vmem:[#allocation2 + $0x19] sm:$0xff]
        %v3073 = vld [vmem:[#allocation2 + $0x21] sm:$0xff]
        %v3074 = vld [vmem:[#allocation2 + $0x29] sm:$0xff]
        %v3075 = vld [vmem:[#allocation2 + $0x31] sm:$0xff]
        %v3076 = vld [vmem:[#allocation2 + $0x39] sm:$0xff]
        %v3077 = vld [vmem:[#allocation2 + $0x41] sm:$0xff]
        %v3078 = vld [vmem:[#allocation2 + $0x49] sm:$0xff]
        %v3079 = vld [vmem:[#allocation2 + $0x51] sm:$0xff]
        %v3080 = vld [vmem:[#allocation2 + $0x59] sm:$0xff]
        %v3081 = vld [vmem:[#allocation2 + $0x61] sm:$0xff]
        %v3082 = vld [vmem:[#allocation2 + $0x69] sm:$0xff]
        %v3083 = vld [vmem:[#allocation2 + $0x71] sm:$0xff]
        %v3084 = vld [vmem:[#allocation2 + $0x79] sm:$0xff]
        %v3085 = vld [vmem:[#allocation2 + $0x81] sm:$0xff]
        %v3086 = vld [vmem:[#allocation2 + $0x89] sm:$0xff]
        %v3087 = vld [vmem:[#allocation2 + $0x91] sm:$0xff]
        %s3088 = scalar_lea.vmem %s4, 1024
        %v3089 = vld [vmem:[%s3088] sm:$0xff]
        %v3090 = vld [vmem:[%s3088 + $0x8] sm:$0xff]
        %v3091 = vld [vmem:[%s3088 + $0x10] sm:$0xff]
        %v3092 = vld [vmem:[%s3088 + $0x18] sm:$0xff]
        %v3093 = vld [vmem:[%s3088 + $0x20] sm:$0xff]
        %v3094 = vld [vmem:[%s3088 + $0x28] sm:$0xff]
        %v3095 = vld [vmem:[%s3088 + $0x30] sm:$0xff]
        %v3096 = vld [vmem:[%s3088 + $0x38] sm:$0xff]
        %v3097 = vld [vmem:[%s3088 + $0x40] sm:$0xff]
        %v3098 = vld [vmem:[%s3088 + $0x48] sm:$0xff]
        %v3099 = vld [vmem:[%s3088 + $0x50] sm:$0xff]
        %v3100 = vld [vmem:[%s3088 + $0x58] sm:$0xff]
        %v3101 = vld [vmem:[%s3088 + $0x60] sm:$0xff]
        %v3102 = vld [vmem:[%s3088 + $0x68] sm:$0xff]
        %v3103 = vld [vmem:[%s3088 + $0x70] sm:$0xff]
        %v3104 = vld [vmem:[%s3088 + $0x78] sm:$0xff]
        %3106 = vset.pattern.permute.xlu0 0
        %3107 = vperm.xlu0 %3106, %v3089
        %v3108 = vpop.permute.xlu0 %3107
        %3111 = vset.pattern.permute.xlu0 0
        %3112 = vperm.xlu0 %3111, %v3090
        %v3113 = vpop.permute.xlu0 %3112
        %3116 = vset.pattern.permute.xlu0 0
        %3117 = vperm.xlu0 %3116, %v3091
        %v3118 = vpop.permute.xlu0 %3117
        %3121 = vset.pattern.permute.xlu0 0
        %3122 = vperm.xlu0 %3121, %v3092
        %v3123 = vpop.permute.xlu0 %3122
        %3126 = vset.pattern.permute.xlu0 0
        %3127 = vperm.xlu0 %3126, %v3093
        %v3128 = vpop.permute.xlu0 %3127
        %3131 = vset.pattern.permute.xlu0 0
        %3132 = vperm.xlu0 %3131, %v3094
        %v3133 = vpop.permute.xlu0 %3132
        %3136 = vset.pattern.permute.xlu0 0
        %3137 = vperm.xlu0 %3136, %v3095
        %v3138 = vpop.permute.xlu0 %3137
        %3141 = vset.pattern.permute.xlu0 0
        %3142 = vperm.xlu0 %3141, %v3096
        %v3143 = vpop.permute.xlu0 %3142
        %3146 = vset.pattern.permute.xlu0 0
        %3147 = vperm.xlu0 %3146, %v3097
        %v3148 = vpop.permute.xlu0 %3147
        %3151 = vset.pattern.permute.xlu0 0
        %3152 = vperm.xlu0 %3151, %v3098
        %v3153 = vpop.permute.xlu0 %3152
        %3156 = vset.pattern.permute.xlu0 0
        %3157 = vperm.xlu0 %3156, %v3099
        %v3158 = vpop.permute.xlu0 %3157
        %3161 = vset.pattern.permute.xlu0 0
        %3162 = vperm.xlu0 %3161, %v3100
        %v3163 = vpop.permute.xlu0 %3162
        %3166 = vset.pattern.permute.xlu0 0
        %3167 = vperm.xlu0 %3166, %v3101
        %v3168 = vpop.permute.xlu0 %3167
        %3171 = vset.pattern.permute.xlu0 0
        %3172 = vperm.xlu0 %3171, %v3102
        %v3173 = vpop.permute.xlu0 %3172
        %3176 = vset.pattern.permute.xlu0 0
        %3177 = vperm.xlu0 %3176, %v3103
        %v3178 = vpop.permute.xlu0 %3177
        %3181 = vset.pattern.permute.xlu0 0
        %3182 = vperm.xlu0 %3181, %v3104
        %v3183 = vpop.permute.xlu0 %3182
        %v3185 = vmul.f32 %v3072, %v3108
        %v3186 = vmul.f32 %v3073, %v3113
        %v3187 = vmul.f32 %v3074, %v3118
        %v3188 = vmul.f32 %v3075, %v3123
        %v3189 = vmul.f32 %v3076, %v3128
        %v3190 = vmul.f32 %v3077, %v3133
        %v3191 = vmul.f32 %v3078, %v3138
        %v3192 = vmul.f32 %v3079, %v3143
        %v3193 = vmul.f32 %v3080, %v3148
        %v3194 = vmul.f32 %v3081, %v3153
        %v3195 = vmul.f32 %v3082, %v3158
        %v3196 = vmul.f32 %v3083, %v3163
        %v3197 = vmul.f32 %v3084, %v3168
        %v3198 = vmul.f32 %v3085, %v3173
        %v3199 = vmul.f32 %v3086, %v3178
        %v3200 = vmul.f32 %v3087, %v3183
        %s3201 = scalar_lea.vmem %s232, 256
        %v3202 = vld [vmem:[%s3201] sm:$0xff]
        %v3203 = vld [vmem:[%s3201 + $0x8] sm:$0xff]
        %v3204 = vld [vmem:[%s3201 + $0x10] sm:$0xff]
        %v3205 = vld [vmem:[%s3201 + $0x18] sm:$0xff]
        %v3207 = vsel %vm627, %v3185, 0
        %v3210 = vsel %vm627, %v3186, 0
        %v3213 = vsel %vm627, %v3187, 0
        %v3216 = vsel %vm627, %v3188, 0
        %v3219 = vsel %vm627, %v3189, 0
        %v3222 = vsel %vm627, %v3190, 0
        %v3225 = vsel %vm627, %v3191, 0
        %v3228 = vsel %vm627, %v3192, 0
        %v3231 = vsel %vm627, %v3193, 0
        %v3234 = vsel %vm627, %v3194, 0
        %v3237 = vsel %vm627, %v3195, 0
        %v3240 = vsel %vm627, %v3196, 0
        %v3243 = vsel %vm627, %v3197, 0
        %v3246 = vsel %vm627, %v3198, 0
        %v3249 = vsel %vm627, %v3199, 0
        %v3252 = vsel %vm627, %v3200, 0
        %3254 = vmatprep.subr.mxu0 0.0
        %3255 = vmatpush1.msra.mxu0 %v3202
        %3256 = vmatprep.subr.mxu0 0.0
        %3257 = vmatpush1.msra.mxu0 %v3203
        %3258 = vmatprep.subr.mxu0 0.0
        %3259 = vmatpush1.msra.mxu0 %v3204
        %3260 = vmatprep.subr.mxu0 0.0
        %3261 = vmatpush1.msra.mxu0 %v3205
        %3262 = vmatprep.subr.mxu0 0.0
        %3263 = vmatpush1.msra.mxu0 0.0
        %3264 = vmatprep.subr.mxu0 0.0
        %3265 = vmatpush1.msra.mxu0 0.0
        %3266 = vmatprep.subr.mxu0 0.0
        %3267 = vmatpush1.msra.mxu0 0.0
        %3268 = vmatprep.subr.mxu0 0.0
        %3269 = vmatpush1.msra.mxu0 0.0
        %3270 = vmatprep.subr.mxu0 0.0
        %3271 = vmatpush1.msra.mxu0 0.0
        %3272 = vmatprep.subr.mxu0 0.0
        %3273 = vmatpush1.msra.mxu0 0.0
        %3274 = vmatprep.subr.mxu0 0.0
        %3275 = vmatpush1.msra.mxu0 0.0
        %3276 = vmatprep.subr.mxu0 0.0
        %3277 = vmatpush1.msra.mxu0 0.0
        %3278 = vmatprep.subr.mxu0 0.0
        %3279 = vmatpush1.msra.mxu0 0.0
        %3280 = vmatprep.subr.mxu0 0.0
        %3281 = vmatpush1.msra.mxu0 0.0
        %3282 = vmatprep.subr.mxu0 0.0
        %3283 = vmatpush1.msra.mxu0 0.0
        %3284 = vmatprep.subr.mxu0 0.0
        %3285 = vmatpush1.msra.mxu0 0.0
        %3286 = vmatprep.subr.mxu0 0.0
        %3287 = vmatpush1.msra.mxu0 0.0
        %3288 = vmatprep.subr.mxu0 0.0
        %3289 = vmatpush1.msra.mxu0 0.0
        %3290 = vmatprep.subr.mxu0 0.0
        %3291 = vmatpush1.msra.mxu0 0.0
        %3292 = vmatprep.subr.mxu0 0.0
        %3293 = vmatpush1.msra.mxu0 0.0
        %3294 = vmatprep.subr.mxu0 0.0
        %3295 = vmatpush1.msra.mxu0 0.0
        %3296 = vmatprep.subr.mxu0 0.0
        %3297 = vmatpush1.msra.mxu0 0.0
        %3298 = vmatprep.subr.mxu0 0.0
        %3299 = vmatpush1.msra.mxu0 0.0
        %3300 = vmatprep.subr.mxu0 0.0
        %3301 = vmatpush1.msra.mxu0 0.0
        %3302 = vmatprep.subr.mxu0 0.0
        %3303 = vmatpush1.msra.mxu0 0.0
        %3304 = vmatprep.subr.mxu0 0.0
        %3305 = vmatpush1.msra.mxu0 0.0
        %3306 = vmatprep.subr.mxu0 0.0
        %3307 = vmatpush1.msra.mxu0 0.0
        %3308 = vmatprep.subr.mxu0 0.0
        %3309 = vmatpush1.msra.mxu0 0.0
        %3310 = vmatprep.subr.mxu0 0.0
        %3311 = vmatpush1.msra.mxu0 0.0
        %3312 = vmatprep.subr.mxu0 0.0
        %3313 = vmatpush1.msra.mxu0 0.0
        %3314 = vmatprep.subr.mxu0 0.0
        %3315 = vmatpush1.msra.mxu0 0.0
        %3316 = vmatprep.subr.mxu0 0.0
        %3317 = vmatpush1.msra.mxu0 0.0
        %3318 = vmatprep.mubr.f32.mxu0 0.0
        %3319 = vmatmul.mubr.f32.gmra.mrb[0].mxu0 %v3207
        %v3320 = vpop.f32.mrb[0].mxu0
        %v3321 = vadd.f32 0.0, %v3320
        %v3322 = vpop.f32.mrb[0].mxu0
        %3323 = vmatprep.mubr.f32.mxu0 0.0
        %3324 = vmatmul.mubr.f32.gmra.mrb[0].mxu0 %v3210
        %v3325 = vpop.f32.mrb[0].mxu0
        %v3326 = vadd.f32 0.0, %v3325
        %v3327 = vpop.f32.mrb[0].mxu0
        %3328 = vmatprep.mubr.f32.mxu0 0.0
        %3329 = vmatmul.mubr.f32.gmra.mrb[0].mxu0 %v3213
        %v3330 = vpop.f32.mrb[0].mxu0
        %v3331 = vadd.f32 0.0, %v3330
        %v3332 = vpop.f32.mrb[0].mxu0
        %3333 = vmatprep.mubr.f32.mxu0 0.0
        %3334 = vmatmul.mubr.f32.gmra.mrb[0].mxu0 %v3216
        %v3335 = vpop.f32.mrb[0].mxu0
        %v3336 = vadd.f32 0.0, %v3335
        %v3337 = vpop.f32.mrb[0].mxu0
        %3338 = vmatprep.mubr.f32.mxu0 0.0
        %3339 = vmatmul.mubr.f32.gmra.mrb[0].mxu0 %v3219
        %v3340 = vpop.f32.mrb[0].mxu0
        %v3341 = vadd.f32 0.0, %v3340
        %v3342 = vpop.f32.mrb[0].mxu0
        %3343 = vmatprep.mubr.f32.mxu0 0.0
        %3344 = vmatmul.mubr.f32.gmra.mrb[0].mxu0 %v3222
        %v3345 = vpop.f32.mrb[0].mxu0
        %v3346 = vadd.f32 0.0, %v3345
        %v3347 = vpop.f32.mrb[0].mxu0
        %3348 = vmatprep.mubr.f32.mxu0 0.0
        %3349 = vmatmul.mubr.f32.gmra.mrb[0].mxu0 %v3225
        %v3350 = vpop.f32.mrb[0].mxu0
        %v3351 = vadd.f32 0.0, %v3350
        %v3352 = vpop.f32.mrb[0].mxu0
        %3353 = vmatprep.mubr.f32.mxu0 0.0
        %3354 = vmatmul.mubr.f32.gmra.mrb[0].mxu0 %v3228
        %v3355 = vpop.f32.mrb[0].mxu0
        %v3356 = vadd.f32 0.0, %v3355
        %v3357 = vpop.f32.mrb[0].mxu0
        %3358 = vmatprep.mubr.f32.mxu0 0.0
        %3359 = vmatmul.mubr.f32.gmra.mrb[0].mxu0 %v3231
        %v3360 = vpop.f32.mrb[0].mxu0
        %v3361 = vadd.f32 0.0, %v3360
        %v3362 = vpop.f32.mrb[0].mxu0
        %3363 = vmatprep.mubr.f32.mxu0 0.0
        %3364 = vmatmul.mubr.f32.gmra.mrb[0].mxu0 %v3234
        %v3365 = vpop.f32.mrb[0].mxu0
        %v3366 = vadd.f32 0.0, %v3365
        %v3367 = vpop.f32.mrb[0].mxu0
        %3368 = vmatprep.mubr.f32.mxu0 0.0
        %3369 = vmatmul.mubr.f32.gmra.mrb[0].mxu0 %v3237
        %v3370 = vpop.f32.mrb[0].mxu0
        %v3371 = vadd.f32 0.0, %v3370
        %v3372 = vpop.f32.mrb[0].mxu0
        %3373 = vmatprep.mubr.f32.mxu0 0.0
        %3374 = vmatmul.mubr.f32.gmra.mrb[0].mxu0 %v3240
        %v3375 = vpop.f32.mrb[0].mxu0
        %v3376 = vadd.f32 0.0, %v3375
        %v3377 = vpop.f32.mrb[0].mxu0
        %3378 = vmatprep.mubr.f32.mxu0 0.0
        %3379 = vmatmul.mubr.f32.gmra.mrb[0].mxu0 %v3243
        %v3380 = vpop.f32.mrb[0].mxu0
        %v3381 = vadd.f32 0.0, %v3380
        %v3382 = vpop.f32.mrb[0].mxu0
        %3383 = vmatprep.mubr.f32.mxu0 0.0
        %3384 = vmatmul.mubr.f32.gmra.mrb[0].mxu0 %v3246
        %v3385 = vpop.f32.mrb[0].mxu0
        %v3386 = vadd.f32 0.0, %v3385
        %v3387 = vpop.f32.mrb[0].mxu0
        %3388 = vmatprep.mubr.f32.mxu0 0.0
        %3389 = vmatmul.mubr.f32.gmra.mrb[0].mxu0 %v3249
        %v3390 = vpop.f32.mrb[0].mxu0
        %v3391 = vadd.f32 0.0, %v3390
        %v3392 = vpop.f32.mrb[0].mxu0
        %3393 = vmatprep.mubr.f32.mxu0 0.0
        %3394 = vmatmul.mubr.f32.gmra.mrb[0].mxu0 %v3252
        %v3395 = vpop.f32.mrb[0].mxu0
        %v3396 = vadd.f32 0.0, %v3395
        %v3397 = vpop.f32.mrb[0].mxu0
        %3398 = vdwg.mxu0
        %v3399 = vadd.f32 %v3056, %v3321
        %v3400 = vadd.f32 %v3057, %v3326
        %v3401 = vadd.f32 %v3058, %v3331
        %v3402 = vadd.f32 %v3059, %v3336
        %v3403 = vadd.f32 %v3060, %v3341
        %v3404 = vadd.f32 %v3061, %v3346
        %v3405 = vadd.f32 %v3062, %v3351
        %v3406 = vadd.f32 %v3063, %v3356
        %v3407 = vadd.f32 %v3064, %v3361
        %v3408 = vadd.f32 %v3065, %v3366
        %v3409 = vadd.f32 %v3066, %v3371
        %v3410 = vadd.f32 %v3067, %v3376
        %v3411 = vadd.f32 %v3068, %v3381
        %v3412 = vadd.f32 %v3069, %v3386
        %v3413 = vadd.f32 %v3070, %v3391
        %v3414 = vadd.f32 %v3071, %v3396
        %v3415 = vld [vmem:[%s235] sm:$0x1]
        %v3417 = vlaneseq
        %v3418 = vshrl.u32 %v3417, 7
        %v3419 = vsub.s32 0, %v3418
        %v3420 = vrot.slane %v3415, %v3419
        %v3422 = vadd.f32 %v3399, %v3420
        %v3423 = vadd.f32 %v3400, %v3420
        %v3424 = vadd.f32 %v3401, %v3420
        %v3425 = vadd.f32 %v3402, %v3420
        %v3426 = vadd.f32 %v3403, %v3420
        %v3427 = vadd.f32 %v3404, %v3420
        %v3428 = vadd.f32 %v3405, %v3420
        %v3429 = vadd.f32 %v3406, %v3420
        %v3430 = vadd.f32 %v3407, %v3420
        %v3431 = vadd.f32 %v3408, %v3420
        %v3432 = vadd.f32 %v3409, %v3420
        %v3433 = vadd.f32 %v3410, %v3420
        %v3434 = vadd.f32 %v3411, %v3420
        %v3435 = vadd.f32 %v3412, %v3420
        %v3436 = vadd.f32 %v3413, %v3420
        %v3437 = vadd.f32 %v3414, %v3420
        %v3438 = vld [vmem:[%s238] sm:$0x1]
        %v3439 = vld [vmem:[#allocation3] sm:$0xff]
        %v3440 = vld [vmem:[#allocation3 + $0x8] sm:$0xff]
        %v3441 = vld [vmem:[#allocation3 + $0x10] sm:$0xff]
        %v3442 = vld [vmem:[#allocation3 + $0x18] sm:$0xff]
        %v3443 = vld [vmem:[#allocation3 + $0x20] sm:$0xff]
        %v3444 = vld [vmem:[#allocation3 + $0x28] sm:$0xff]
        %v3445 = vld [vmem:[#allocation3 + $0x30] sm:$0xff]
        %v3446 = vld [vmem:[#allocation3 + $0x38] sm:$0xff]
        %v3447 = vld [vmem:[#allocation3 + $0x40] sm:$0xff]
        %v3448 = vld [vmem:[#allocation3 + $0x48] sm:$0xff]
        %v3449 = vld [vmem:[#allocation3 + $0x50] sm:$0xff]
        %v3450 = vld [vmem:[#allocation3 + $0x58] sm:$0xff]
        %v3451 = vld [vmem:[#allocation3 + $0x60] sm:$0xff]
        %v3452 = vld [vmem:[#allocation3 + $0x68] sm:$0xff]
        %v3453 = vld [vmem:[#allocation3 + $0x70] sm:$0xff]
        %v3454 = vld [vmem:[#allocation3 + $0x78] sm:$0xff]
        %v3456 = vlaneseq
        %v3457 = vshrl.u32 %v3456, 7
        %v3458 = vsub.s32 0, %v3457
        %v3459 = vrot.slane %v3438, %v3458
        %3460 = vset.pattern.permute.xlu0 0
        %3461 = vperm.xlu0 %3460, %v3459
        %v3462 = vpop.permute.xlu0 %3461
        %v3464 = vmul.f32 %v3462, %v3439
        %v3465 = vmul.f32 %v3462, %v3440
        %v3466 = vmul.f32 %v3462, %v3441
        %v3467 = vmul.f32 %v3462, %v3442
        %v3468 = vmul.f32 %v3462, %v3443
        %v3469 = vmul.f32 %v3462, %v3444
        %v3470 = vmul.f32 %v3462, %v3445
        %v3471 = vmul.f32 %v3462, %v3446
        %v3472 = vmul.f32 %v3462, %v3447
        %v3473 = vmul.f32 %v3462, %v3448
        %v3474 = vmul.f32 %v3462, %v3449
        %v3475 = vmul.f32 %v3462, %v3450
        %v3476 = vmul.f32 %v3462, %v3451
        %v3477 = vmul.f32 %v3462, %v3452
        %v3478 = vmul.f32 %v3462, %v3453
        %v3479 = vmul.f32 %v3462, %v3454
        %v3480 = vadd.f32 %v3422, %v3464
        %v3481 = vadd.f32 %v3423, %v3465
        %v3482 = vadd.f32 %v3424, %v3466
        %v3483 = vadd.f32 %v3425, %v3467
        %v3484 = vadd.f32 %v3426, %v3468
        %v3485 = vadd.f32 %v3427, %v3469
        %v3486 = vadd.f32 %v3428, %v3470
        %v3487 = vadd.f32 %v3429, %v3471
        %v3488 = vadd.f32 %v3430, %v3472
        %v3489 = vadd.f32 %v3431, %v3473
        %v3490 = vadd.f32 %v3432, %v3474
        %v3491 = vadd.f32 %v3433, %v3475
        %v3492 = vadd.f32 %v3434, %v3476
        %v3493 = vadd.f32 %v3435, %v3477
        %v3494 = vadd.f32 %v3436, %v3478
        %v3495 = vadd.f32 %v3437, %v3479
        %v3496 = vmax.f32 %v3480, 0.0
        %v3497 = vmax.f32 %v3481, 0.0
        %v3498 = vmax.f32 %v3482, 0.0
        %v3499 = vmax.f32 %v3483, 0.0
        %v3500 = vmax.f32 %v3484, 0.0
        %v3501 = vmax.f32 %v3485, 0.0
        %v3502 = vmax.f32 %v3486, 0.0
        %v3503 = vmax.f32 %v3487, 0.0
        %v3504 = vmax.f32 %v3488, 0.0
        %v3505 = vmax.f32 %v3489, 0.0
        %v3506 = vmax.f32 %v3490, 0.0
        %v3507 = vmax.f32 %v3491, 0.0
        %v3508 = vmax.f32 %v3492, 0.0
        %v3509 = vmax.f32 %v3493, 0.0
        %v3510 = vmax.f32 %v3494, 0.0
        %v3511 = vmax.f32 %v3495, 0.0
        %3512 = vst.msk [vmem:[#allocation2 + $0x10] sm:$0xff] %vm627, %v3496
        %3513 = vst.msk [vmem:[#allocation2 + $0x18] sm:$0xff] %vm627, %v3497
        %3514 = vst.msk [vmem:[#allocation2 + $0x20] sm:$0xff] %vm627, %v3498
        %3515 = vst.msk [vmem:[#allocation2 + $0x28] sm:$0xff] %vm627, %v3499
        %3516 = vst.msk [vmem:[#allocation2 + $0x30] sm:$0xff] %vm627, %v3500
        %3517 = vst.msk [vmem:[#allocation2 + $0x38] sm:$0xff] %vm627, %v3501
        %3518 = vst.msk [vmem:[#allocation2 + $0x40] sm:$0xff] %vm627, %v3502
        %3519 = vst.msk [vmem:[#allocation2 + $0x48] sm:$0xff] %vm627, %v3503
        %3520 = vst.msk [vmem:[#allocation2 + $0x50] sm:$0xff] %vm627, %v3504
        %3521 = vst.msk [vmem:[#allocation2 + $0x58] sm:$0xff] %vm627, %v3505
        %3522 = vst.msk [vmem:[#allocation2 + $0x60] sm:$0xff] %vm627, %v3506
        %3523 = vst.msk [vmem:[#allocation2 + $0x68] sm:$0xff] %vm627, %v3507
        %3524 = vst.msk [vmem:[#allocation2 + $0x70] sm:$0xff] %vm627, %v3508
        %3525 = vst.msk [vmem:[#allocation2 + $0x78] sm:$0xff] %vm627, %v3509
        %3526 = vst.msk [vmem:[#allocation2 + $0x80] sm:$0xff] %vm627, %v3510
        %3527 = vst.msk [vmem:[#allocation2 + $0x88] sm:$0xff] %vm627, %v3511
        %p3528 = scmp.eq.s32.totalorder %s17, 32
        // Predicated region
        $region49: #{dynamics_forward.1} parent=39 // pred_check
          %p3529 = pneg %p3528
        $region50: #{dynamics_forward.1} parent=39 // pred_check_branch
          %3531 = sbr.rel (%p3529) target = $region52
        $region51: #{dynamics_forward.1} parent=39 // pred_region
          %3532 = vst.msk [vmem:[#allocation4] sm:$0xff] %vm627, %v3496
          %3533 = vst.msk [vmem:[#allocation4 + $0x8] sm:$0xff] %vm627, %v3497
          %3534 = vst.msk [vmem:[#allocation4 + $0x10] sm:$0xff] %vm627, %v3498
          %3535 = vst.msk [vmem:[#allocation4 + $0x18] sm:$0xff] %vm627, %v3499
          %3536 = vst.msk [vmem:[#allocation4 + $0x20] sm:$0xff] %vm627, %v3500
          %3537 = vst.msk [vmem:[#allocation4 + $0x28] sm:$0xff] %vm627, %v3501
          %3538 = vst.msk [vmem:[#allocation4 + $0x30] sm:$0xff] %vm627, %v3502
          %3539 = vst.msk [vmem:[#allocation4 + $0x38] sm:$0xff] %vm627, %v3503
          %3540 = vst.msk [vmem:[#allocation4 + $0x40] sm:$0xff] %vm627, %v3504
          %3541 = vst.msk [vmem:[#allocation4 + $0x48] sm:$0xff] %vm627, %v3505
          %3542 = vst.msk [vmem:[#allocation4 + $0x50] sm:$0xff] %vm627, %v3506
          %3543 = vst.msk [vmem:[#allocation4 + $0x58] sm:$0xff] %vm627, %v3507
          %3544 = vst.msk [vmem:[#allocation4 + $0x60] sm:$0xff] %vm627, %v3508
          %3545 = vst.msk [vmem:[#allocation4 + $0x68] sm:$0xff] %vm627, %v3509
          %3546 = vst.msk [vmem:[#allocation4 + $0x70] sm:$0xff] %vm627, %v3510
          %3547 = vst.msk [vmem:[#allocation4 + $0x78] sm:$0xff] %vm627, %v3511
        $region52: #{dynamics_forward.1} parent=39 // pred_fallthru
          _
        // Predicated region
        $region53: #{dynamics_forward.1} parent=39 // pred_check
          %p3548 = pneg %p150
        $region54: #{dynamics_forward.1} parent=39 // pred_check_branch
          %3550 = sbr.rel (%p3548) target = $region56
        $region55: #{dynamics_forward.1} parent=39 // pred_region
          %s3552 = ssub.s32 2048, 2048
          %3553 = vsyncadd [#allocation5], %s3552
          %s3554 = sshll.u32 [#allocation4], 4
          %s3555 = int_to_ptr.vmem [resolvable:$true] %s3554
          %3560 = dma.vmem_to_hbm [thread:$0]  %s3555, 2048, %s5, [#allocation5], 128, 128, 8
        $region56: #{dynamics_forward.1} parent=39 // pred_fallthru
          _
        // Predicated region
        $region57: #{dynamics_forward.1} parent=39 // pred_check
          %p3561 = pneg %p150
        $region58: #{dynamics_forward.1} parent=39 // pred_check_branch
          %3563 = sbr.rel (%p3561) target = $region60
        $region59: #{dynamics_forward.1} parent=39 // pred_region
          %3564 = dma.done [#allocation5], 2048
        $region60: #{dynamics_forward.1} parent=39 // pred_fallthru
          _
      $region40: #{dynamics_forward.1} parent=5 // pred_fallthru
        _
      %p3565 = scmp.le.s32.totalorder 2, %s12
      // Predicated region
      $region61: #{dynamics_forward.1} parent=5 // pred_check
        %p3566 = pneg %p3565
      $region62: #{dynamics_forward.1} parent=5 // pred_check_branch
        %3568 = sbr.rel (%p3566) target = $region64
      $region63: #{dynamics_forward.1} parent=5 // pred_region
        %s3569 = ssub.s32 %s12, 2
      $region64: #{dynamics_forward.1} parent=5 // pred_fallthru
        _
    $region6: #{dynamics_forward.1} parent=1 // loop_footer
      %s16 = sadd.s32 1, %s12
    $region7: #{dynamics_forward.1} parent=1 // loop_footer_branch
      %11 = sbr.rel target = $region3
    $region8: #{dynamics_forward.1} parent=1 // loop_exit
      _
    %3570 = vsyncpa [#allocation5], 1
    %s3571 = scalar_lea.sflag [#allocation5], 1
    %3572 = vsyncpa %s3571, 1

</llo_original>
